<compile_context>
chip_gen: v6e
topology: v6e:2x2x1
jax: 0.10.0
libtpu: 0.0.40
codegen_flags: <defaults>
</compile_context>

<pallas_src>
import functools

import jax
import jax.numpy as jnp
from jax.experimental import pallas as pl
from jax.experimental.pallas import tpu as pltpu

EPS = 1e-5
_LANE = 128
_SUBLANE = 8
_BF16_PACK = 16                       # bf16 second-minor packing granule
_VMEM_LIMIT = 48 * 1024 * 1024        # > 32 MiB default, still < v7x 64 MiB physical


def _round_up(x, m):
    return (x + m - 1) // m * m


def _fold_upsample_weights(w_oihw, cin_p, cout_p):
    """Fold 2x-nearest-upsample + 3x3 conv into 4 parity-dependent 2x2 convs.

    Output pixel (2i+pr, 2j+pc) of conv3x3(upsample2x(x)) reads low-res pixel
    x[i + floor((pr+ky-1)/2), j + floor((pc+kx-1)/2)] for original tap (ky, kx).
    Grouping the 3x3 taps by that floor map gives, per parity (pr, pc), a 2x2 kernel
    over the 1-padded low-res input.  Folding is done in f32, cast to bf16 once.
    Returns (2, 2, 2, 2, cin_p, cout_p) = (pr, pc, a, b, ci, co).
    """
    cout, cin = w_oihw.shape[0], w_oihw.shape[1]
    w = jnp.transpose(w_oihw, (2, 3, 1, 0)).astype(jnp.float32)      # (ky, kx, ci, co)
    kf = jnp.zeros((2, 2, 2, 2, cin_p, cout_p), jnp.float32)
    for pr in range(2):
        for pc in range(2):
            for ky in range(3):
                a = 1 + (pr + ky - 1) // 2 - pr                      # in {0, 1}
                for kx in range(3):
                    b = 1 + (pc + kx - 1) // 2 - pc                  # in {0, 1}
                    kf = kf.at[pr, pc, a, b, :cin, :cout].add(w[ky, kx])
    return kf.astype(jnp.bfloat16)


# ------------- kernel 1: fused upsample + 3x3 conv + BN partial stats -------------
def _conv_stats_kernel(x_ref, w_ref, conv_ref, stats_ref, *, H, W, Wp):
    """One low-res image per grid step.

    x_ref    : (1, (H+3)*Wp, Cin_p)     bf16, flattened 1-padded low-res image
    w_ref    : (2, 2, 2, 2, Cin_p, Cp)  bf16, parity-folded 2x2 weights
    conv_ref : (1, H, 2, W, 2*Cp)       bf16, memory-identical to (1, 2H, 2W, Cp)
    stats_ref: (1, 8, Cp)               f32, rows 0/1 = per-image sum / sum-of-squares
    """
    Cp = stats_ref.shape[-1]
    M = H * Wp                               # flat output positions (garbage cols incl.)

    xf = x_ref[0]                            # ((H+3)*Wp, Cin_p) bf16

    # Flattened-conv trick: output flat position p = i*Wp + j needs input flat
    # position p + ry*Wp + cx for row/col offsets (ry, cx) in {0,1,2}^2.
    shifted = {}
    for ry in range(3):
        for cx in range(3):
            off = ry * Wp + cx
            shifted[(ry, cx)] = xf[off:off + M, :]

    s = jnp.zeros((1, Cp), jnp.float32)
    ss = jnp.zeros((1, Cp), jnp.float32)
    rows = []
    for pr in range(2):
        parts = []
        for pc in range(2):
            acc = None
            for a in range(2):
                for b in range(2):
                    # Accumulating tap matmul, bf16 in / f32 accumulate on the MXU.
                    prod = jnp.dot(shifted[(pr + a, pc + b)], w_ref[pr, pc, a, b],
                                   preferred_element_type=jnp.float32)
                    acc = prod if acc is None else acc + prod
            # Drop the flat-trick garbage columns before stats / store.
            y = acc.reshape(H, Wp, Cp)[:, :W, :]                      # (H, W, Cp) f32
            s = s + jnp.sum(y, axis=(0, 1), keepdims=True).reshape(1, Cp)
            ss = ss + jnp.sum(y * y, axis=(0, 1), keepdims=True).reshape(1, Cp)
            parts.append(y.astype(jnp.bfloat16))
        rows.append(jnp.concatenate(parts, axis=-1))                  # (H, W, 2*Cp)
    # (H, 2, W, 2*Cp): row-major identical to the interleaved (2H, 2W, Cp) output.
    conv_ref[0] = jnp.stack(rows, axis=1)
    stats_ref[0] = jnp.concatenate(
        [s, ss, jnp.zeros((6, Cp), jnp.float32)], axis=0)             # lane-dense (8, Cp)


# ----------------- kernel 2: normalize + affine + ReLU (lane-dense) -----------------
def _bn_relu_kernel(conv_ref, scale_ref, shift_ref, o_ref):
    c = conv_ref[...].astype(jnp.float32)
    scale = scale_ref[...].reshape(1, 1, 1, -1)
    shift = shift_ref[...].reshape(1, 1, 1, -1)
    o_ref[...] = jnp.maximum(c * scale + shift, 0.0)


def up_conv_forward(x_nchw, w_oihw, bias, gamma, beta):
    """Forward pass of `up_conv` with the PyTorch NCHW interface.

    `bias` is accepted for interface fidelity but is a mathematical no-op in front of
    training-mode BatchNorm (cancelled exactly by the batch-mean subtraction).
    """
    del bias
    N, Cin, H, W = x_nchw.shape
    Cout = w_oihw.shape[0]
    Hu, Wu = 2 * H, 2 * W

    Cin_p = _round_up(Cin, _BF16_PACK)          # NOT 128: only the bf16 packing granule
    Cout_p = _round_up(Cout, _LANE)             # matmul N / lane axis stays 128-dense
    Wp = _round_up(W + 2, _SUBLANE)             # 1-pixel pad + sublane alignment
    rows_p = H + 3                              # 1-pixel pad + flat-trick slack rows

    # Low-res padded input built once (small: ~1/4 of the old padded upsampled array).
    x = jnp.transpose(x_nchw, (0, 2, 3, 1)).astype(jnp.bfloat16)      # NHWC
    xpad = jnp.zeros((N, rows_p, Wp, Cin_p), jnp.bfloat16)
    xpad = xpad.at[:, 1:H + 1, 1:W + 1, :Cin].set(x)
    x_flat = xpad.reshape(N, rows_p * Wp, Cin_p)                      # free bitcast

    w_fold = _fold_upsample_weights(w_oihw, Cin_p, Cout_p)

    compiler_params = pltpu.CompilerParams(
        dimension_semantics=("parallel",),      # images are independent
        vmem_limit_bytes=_VMEM_LIMIT,
    )

    kernel1 = functools.partial(_conv_stats_kernel, H=H, W=W, Wp=Wp)
    conv5d, stats = pl.pallas_call(
        kernel1,
        grid=(N,),
        in_specs=[
            pl.BlockSpec((1, rows_p * Wp, Cin_p), lambda n: (n, 0, 0)),
            # Grid-invariant weight block (tiny at these channel counts).
            pl.BlockSpec((2, 2, 2, 2, Cin_p, Cout_p),
                         lambda n: (0, 0, 0, 0, 0, 0)),
        ],
        out_specs=(
            pl.BlockSpec((1, H, 2, W, 2 * Cout_p), lambda n: (n, 0, 0, 0, 0)),
            pl.BlockSpec((1, 8, Cout_p), lambda n: (n, 0, 0)),
        ),
        out_shape=(
            jax.ShapeDtypeStruct((N, H, 2, W, 2 * Cout_p), jnp.bfloat16),
            jax.ShapeDtypeStruct((N, 8, Cout_p), jnp.float32),
        ),
        compiler_params=compiler_params,
    )(x_flat, w_fold)

    # (N, H, 2, W, 2*Cp) is memory-identical to NHWC (N, 2H, 2W, Cp): free reshape.
    conv_nhwc = conv5d.reshape(N, Hu, Wu, Cout_p)

    # Finalize BN statistics (tiny per-channel math) and fold gamma/beta into one
    # scale/shift:  y = conv * scale + shift.
    # TODO(synk): shifted / Welford accumulation for production-size images.
    count = float(N * Hu * Wu)
    s_tot = jnp.sum(stats[:, 0, :], axis=0)
    ss_tot = jnp.sum(stats[:, 1, :], axis=0)
    mean = s_tot / count
    var = jnp.maximum(ss_tot / count - mean * mean, 0.0)
    gamma_p = jnp.zeros((Cout_p,), jnp.float32).at[:Cout].set(gamma.astype(jnp.float32))
    beta_p = jnp.zeros((Cout_p,), jnp.float32).at[:Cout].set(beta.astype(jnp.float32))
    scale = gamma_p * jax.lax.rsqrt(var + EPS)
    shift = beta_p - mean * scale

    y = pl.pallas_call(
        _bn_relu_kernel,
        grid=(N,),
        in_specs=[
            pl.BlockSpec((1, Hu, Wu, Cout_p), lambda n: (n, 0, 0, 0)),
            pl.BlockSpec((1, Cout_p), lambda n: (0, 0)),
            pl.BlockSpec((1, Cout_p), lambda n: (0, 0)),
        ],
        out_specs=pl.BlockSpec((1, Hu, Wu, Cout_p), lambda n: (n, 0, 0, 0)),
        out_shape=jax.ShapeDtypeStruct((N, Hu, Wu, Cout_p), jnp.float32),
        compiler_params=compiler_params,
    )(conv_nhwc, scale.reshape(1, Cout_p), shift.reshape(1, Cout_p))

    y = y[:, :, :, :Cout]                       # drop channel padding
    return jnp.transpose(y, (0, 3, 1, 2))       # back to NCHW (PyTorch interface)


# -------------------- pure-JAX reference (PyTorch semantics, f32) --------------------
def _ref_up_conv(x_nchw, w_oihw, bias, gamma, beta):
    x = jnp.repeat(jnp.repeat(x_nchw, 2, axis=2), 2, axis=3)   # nearest 2x upsample
    y = jax.lax.conv_general_dilated(
        x, w_oihw, window_strides=(1, 1), padding=((1, 1), (1, 1)),
        dimension_numbers=("NCHW", "OIHW", "NCHW"))
    y = y + bias[None, :, None, None]
    mean = y.mean(axis=(0, 2, 3), keepdims=True)
    var = ((y - mean) ** 2).mean(axis=(0, 2, 3), keepdims=True)   # biased var (training BN)
    y = (y - mean) / jnp.sqrt(var + EPS)
    y = y * gamma[None, :, None, None] + beta[None, :, None, None]
    return jnp.maximum(y, 0.0)


if __name__ == "__main__":
    key = jax.random.PRNGKey(0)
    kx, kw, kb, kg, kbe = jax.random.split(key, 5)

    N, Cin, Cout, H, W = 2, 4, 4, 16, 16

    x = jax.random.normal(kx, (N, Cin, H, W), dtype=jnp.float32)
    w = jax.random.normal(kw, (Cout, Cin, 3, 3), dtype=jnp.float32) * 0.1   # Conv2d OIHW
    bias = jax.random.normal(kb, (Cout,), dtype=jnp.float32) * 0.1          # Conv2d bias
    gamma = 1.0 + 0.1 * jax.random.normal(kg, (Cout,), dtype=jnp.float32)   # BN weight
    beta = 0.1 * jax.random.normal(kbe, (Cout,), dtype=jnp.float32)         # BN bias

    out = up_conv_forward(x, w, bias, gamma, beta)
    out = jax.block_until_ready(out)

    ref = _ref_up_conv(x, w, bias, gamma, beta)
    assert out.shape == (N, Cout, 2 * H, 2 * W)
    # Tolerance relaxed vs pure-f32 because the conv runs bf16-in / f32-accumulate on
    # the MXU and the intermediate is stored bf16; BN renormalization keeps it stable.
    assert jnp.allclose(out, ref, atol=3e-2, rtol=3e-2), \
        f"max abs diff = {float(jnp.max(jnp.abs(out - ref)))}"

    print("KERNEL_OK")
</pallas_src>

<mosaic_0001>
module attributes {stable_mosaic.version = 11 : i64} {
  func.func @_conv_stats_kernel(%arg0: i32, %arg1: memref<1x456x16xbf16, #tpu.memory_space<vmem>>, %arg2: memref<2x2x2x2x16x128xbf16, #tpu.memory_space<vmem>>, %arg3: memref<1x16x2x16x256xbf16, #tpu.memory_space<vmem>>, %arg4: memref<1x8x128xf32, #tpu.memory_space<vmem>>) attributes {dimension_semantics = [#tpu.dimension_semantics<parallel>], iteration_bounds = array<i64: 2>, scalar_prefetch = 0 : i64, scratch_operands = 0 : i64, tpu.core_type = #tpu.core_type<tc>, window_params = [{transform_indices = @transform_0, window_bounds = array<i64: 1, 456, 16>}, {pipeline_mode = #tpu.pipeline_mode<synchronous>, transform_indices = @transform_1, window_bounds = array<i64: 2, 2, 2, 2, 16, 128>}, {transform_indices = @transform_2, window_bounds = array<i64: 1, 16, 2, 16, 256>}, {transform_indices = @transform_3, window_bounds = array<i64: 1, 8, 128>}]} {
    %c0 = arith.constant 0 : index
    %c0_0 = arith.constant 0 : index
    %c0_1 = arith.constant 0 : index
    %0 = vector.load %arg1[%c0, %c0_0, %c0_1] : memref<1x456x16xbf16, #tpu.memory_space<vmem>>, vector<1x456x16xbf16>
    %1 = vector.shape_cast %0 : vector<1x456x16xbf16> to vector<456x16xbf16>
    %2 = vector.extract_strided_slice %1 {offsets = [0, 0], sizes = [384, 16], strides = [1, 1]} : vector<456x16xbf16> to vector<384x16xbf16>
    %3 = vector.extract_strided_slice %1 {offsets = [1, 0], sizes = [384, 16], strides = [1, 1]} : vector<456x16xbf16> to vector<384x16xbf16>
    %4 = vector.extract_strided_slice %1 {offsets = [2, 0], sizes = [384, 16], strides = [1, 1]} : vector<456x16xbf16> to vector<384x16xbf16>
    %5 = vector.extract_strided_slice %1 {offsets = [24, 0], sizes = [384, 16], strides = [1, 1]} : vector<456x16xbf16> to vector<384x16xbf16>
    %6 = vector.extract_strided_slice %1 {offsets = [25, 0], sizes = [384, 16], strides = [1, 1]} : vector<456x16xbf16> to vector<384x16xbf16>
    %7 = vector.extract_strided_slice %1 {offsets = [26, 0], sizes = [384, 16], strides = [1, 1]} : vector<456x16xbf16> to vector<384x16xbf16>
    %8 = vector.extract_strided_slice %1 {offsets = [48, 0], sizes = [384, 16], strides = [1, 1]} : vector<456x16xbf16> to vector<384x16xbf16>
    %9 = vector.extract_strided_slice %1 {offsets = [49, 0], sizes = [384, 16], strides = [1, 1]} : vector<456x16xbf16> to vector<384x16xbf16>
    %10 = vector.extract_strided_slice %1 {offsets = [50, 0], sizes = [384, 16], strides = [1, 1]} : vector<456x16xbf16> to vector<384x16xbf16>
    %cst = arith.constant 0.000000e+00 : f32
    %11 = vector.broadcast %cst : f32 to vector<1x128xf32>
    %cst_2 = arith.constant 0.000000e+00 : f32
    %12 = vector.broadcast %cst_2 : f32 to vector<1x128xf32>
    %c0_3 = arith.constant 0 : index
    %c0_4 = arith.constant 0 : index
    %c0_5 = arith.constant 0 : index
    %c0_6 = arith.constant 0 : index
    %c0_7 = arith.constant 0 : index
    %c0_8 = arith.constant 0 : index
    %13 = vector.load %arg2[%c0_3, %c0_4, %c0_5, %c0_6, %c0_7, %c0_8] : memref<2x2x2x2x16x128xbf16, #tpu.memory_space<vmem>>, vector<1x1x1x1x16x128xbf16>
    %14 = vector.shape_cast %13 : vector<1x1x1x1x16x128xbf16> to vector<16x128xbf16>
    %cst_9 = arith.constant dense<0.000000e+00> : vector<384x128xf32>
    %15 = tpu.matmul %2, %14, %cst_9 {dimension_numbers = #tpu.dot_dimension_numbers<[1], [0], [0], [1], [0, 0, 1, 1], [], []>} : vector<384x16xbf16>, vector<16x128xbf16>, vector<384x128xf32> -> vector<384x128xf32>
    %c0_10 = arith.constant 0 : index
    %c0_11 = arith.constant 0 : index
    %c0_12 = arith.constant 0 : index
    %c1 = arith.constant 1 : index
    %c0_13 = arith.constant 0 : index
    %c0_14 = arith.constant 0 : index
    %16 = vector.load %arg2[%c0_10, %c0_11, %c0_12, %c1, %c0_13, %c0_14] : memref<2x2x2x2x16x128xbf16, #tpu.memory_space<vmem>>, vector<1x1x1x1x16x128xbf16>
    %17 = vector.shape_cast %16 : vector<1x1x1x1x16x128xbf16> to vector<16x128xbf16>
    %cst_15 = arith.constant dense<0.000000e+00> : vector<384x128xf32>
    %18 = tpu.matmul %3, %17, %cst_15 {dimension_numbers = #tpu.dot_dimension_numbers<[1], [0], [0], [1], [0, 0, 1, 1], [], []>} : vector<384x16xbf16>, vector<16x128xbf16>, vector<384x128xf32> -> vector<384x128xf32>
    %19 = arith.addf %15, %18 : vector<384x128xf32>
    %c0_16 = arith.constant 0 : index
    %c0_17 = arith.constant 0 : index
    %c1_18 = arith.constant 1 : index
    %c0_19 = arith.constant 0 : index
    %c0_20 = arith.constant 0 : index
    %c0_21 = arith.constant 0 : index
    %20 = vector.load %arg2[%c0_16, %c0_17, %c1_18, %c0_19, %c0_20, %c0_21] : memref<2x2x2x2x16x128xbf16, #tpu.memory_space<vmem>>, vector<1x1x1x1x16x128xbf16>
    %21 = vector.shape_cast %20 : vector<1x1x1x1x16x128xbf16> to vector<16x128xbf16>
    %cst_22 = arith.constant dense<0.000000e+00> : vector<384x128xf32>
    %22 = tpu.matmul %5, %21, %cst_22 {dimension_numbers = #tpu.dot_dimension_numbers<[1], [0], [0], [1], [0, 0, 1, 1], [], []>} : vector<384x16xbf16>, vector<16x128xbf16>, vector<384x128xf32> -> vector<384x128xf32>
    %23 = arith.addf %19, %22 : vector<384x128xf32>
    %c0_23 = arith.constant 0 : index
    %c0_24 = arith.constant 0 : index
    %c1_25 = arith.constant 1 : index
    %c1_26 = arith.constant 1 : index
    %c0_27 = arith.constant 0 : index
    %c0_28 = arith.constant 0 : index
    %24 = vector.load %arg2[%c0_23, %c0_24, %c1_25, %c1_26, %c0_27, %c0_28] : memref<2x2x2x2x16x128xbf16, #tpu.memory_space<vmem>>, vector<1x1x1x1x16x128xbf16>
    %25 = vector.shape_cast %24 : vector<1x1x1x1x16x128xbf16> to vector<16x128xbf16>
    %cst_29 = arith.constant dense<0.000000e+00> : vector<384x128xf32>
    %26 = tpu.matmul %6, %25, %cst_29 {dimension_numbers = #tpu.dot_dimension_numbers<[1], [0], [0], [1], [0, 0, 1, 1], [], []>} : vector<384x16xbf16>, vector<16x128xbf16>, vector<384x128xf32> -> vector<384x128xf32>
    %27 = arith.addf %23, %26 : vector<384x128xf32>
    %28 = vector.shape_cast %27 : vector<384x128xf32> to vector<16x24x128xf32>
    %29 = vector.extract_strided_slice %28 {offsets = [0, 0, 0], sizes = [16, 16, 128], strides = [1, 1, 1]} : vector<16x24x128xf32> to vector<16x16x128xf32>
    %cst_30 = arith.constant dense<0.000000e+00> : vector<128xf32>
    %30 = vector.multi_reduction <add>, %29, %cst_30 [0, 1] : vector<16x16x128xf32> to vector<128xf32>
    %31 = vector.shape_cast %30 : vector<128xf32> to vector<1x1x128xf32>
    %32 = vector.shape_cast %31 : vector<1x1x128xf32> to vector<1x128xf32>
    %33 = arith.addf %11, %32 : vector<1x128xf32>
    %34 = arith.mulf %29, %29 : vector<16x16x128xf32>
    %cst_31 = arith.constant dense<0.000000e+00> : vector<128xf32>
    %35 = vector.multi_reduction <add>, %34, %cst_31 [0, 1] : vector<16x16x128xf32> to vector<128xf32>
    %36 = vector.shape_cast %35 : vector<128xf32> to vector<1x1x128xf32>
    %37 = vector.shape_cast %36 : vector<1x1x128xf32> to vector<1x128xf32>
    %38 = arith.addf %12, %37 : vector<1x128xf32>
    %39 = arith.truncf %29 : vector<16x16x128xf32> to vector<16x16x128xbf16>
    %c0_32 = arith.constant 0 : index
    %c1_33 = arith.constant 1 : index
    %c0_34 = arith.constant 0 : index
    %c0_35 = arith.constant 0 : index
    %c0_36 = arith.constant 0 : index
    %c0_37 = arith.constant 0 : index
    %40 = vector.load %arg2[%c0_32, %c1_33, %c0_34, %c0_35, %c0_36, %c0_37] : memref<2x2x2x2x16x128xbf16, #tpu.memory_space<vmem>>, vector<1x1x1x1x16x128xbf16>
    %41 = vector.shape_cast %40 : vector<1x1x1x1x16x128xbf16> to vector<16x128xbf16>
    %cst_38 = arith.constant dense<0.000000e+00> : vector<384x128xf32>
    %42 = tpu.matmul %3, %41, %cst_38 {dimension_numbers = #tpu.dot_dimension_numbers<[1], [0], [0], [1], [0, 0, 1, 1], [], []>} : vector<384x16xbf16>, vector<16x128xbf16>, vector<384x128xf32> -> vector<384x128xf32>
    %c0_39 = arith.constant 0 : index
    %c1_40 = arith.constant 1 : index
    %c0_41 = arith.constant 0 : index
    %c1_42 = arith.constant 1 : index
    %c0_43 = arith.constant 0 : index
    %c0_44 = arith.constant 0 : index
    %43 = vector.load %arg2[%c0_39, %c1_40, %c0_41, %c1_42, %c0_43, %c0_44] : memref<2x2x2x2x16x128xbf16, #tpu.memory_space<vmem>>, vector<1x1x1x1x16x128xbf16>
    %44 = vector.shape_cast %43 : vector<1x1x1x1x16x128xbf16> to vector<16x128xbf16>
    %cst_45 = arith.constant dense<0.000000e+00> : vector<384x128xf32>
    %45 = tpu.matmul %4, %44, %cst_45 {dimension_numbers = #tpu.dot_dimension_numbers<[1], [0], [0], [1], [0, 0, 1, 1], [], []>} : vector<384x16xbf16>, vector<16x128xbf16>, vector<384x128xf32> -> vector<384x128xf32>
    %46 = arith.addf %42, %45 : vector<384x128xf32>
    %c0_46 = arith.constant 0 : index
    %c1_47 = arith.constant 1 : index
    %c1_48 = arith.constant 1 : index
    %c0_49 = arith.constant 0 : index
    %c0_50 = arith.constant 0 : index
    %c0_51 = arith.constant 0 : index
    %47 = vector.load %arg2[%c0_46, %c1_47, %c1_48, %c0_49, %c0_50, %c0_51] : memref<2x2x2x2x16x128xbf16, #tpu.memory_space<vmem>>, vector<1x1x1x1x16x128xbf16>
    %48 = vector.shape_cast %47 : vector<1x1x1x1x16x128xbf16> to vector<16x128xbf16>
    %cst_52 = arith.constant dense<0.000000e+00> : vector<384x128xf32>
    %49 = tpu.matmul %6, %48, %cst_52 {dimension_numbers = #tpu.dot_dimension_numbers<[1], [0], [0], [1], [0, 0, 1, 1], [], []>} : vector<384x16xbf16>, vector<16x128xbf16>, vector<384x128xf32> -> vector<384x128xf32>
    %50 = arith.addf %46, %49 : vector<384x128xf32>
    %c0_53 = arith.constant 0 : index
    %c1_54 = arith.constant 1 : index
    %c1_55 = arith.constant 1 : index
    %c1_56 = arith.constant 1 : index
    %c0_57 = arith.constant 0 : index
    %c0_58 = arith.constant 0 : index
    %51 = vector.load %arg2[%c0_53, %c1_54, %c1_55, %c1_56, %c0_57, %c0_58] : memref<2x2x2x2x16x128xbf16, #tpu.memory_space<vmem>>, vector<1x1x1x1x16x128xbf16>
    %52 = vector.shape_cast %51 : vector<1x1x1x1x16x128xbf16> to vector<16x128xbf16>
    %cst_59 = arith.constant dense<0.000000e+00> : vector<384x128xf32>
    %53 = tpu.matmul %7, %52, %cst_59 {dimension_numbers = #tpu.dot_dimension_numbers<[1], [0], [0], [1], [0, 0, 1, 1], [], []>} : vector<384x16xbf16>, vector<16x128xbf16>, vector<384x128xf32> -> vector<384x128xf32>
    %54 = arith.addf %50, %53 : vector<384x128xf32>
    %55 = vector.shape_cast %54 : vector<384x128xf32> to vector<16x24x128xf32>
    %56 = vector.extract_strided_slice %55 {offsets = [0, 0, 0], sizes = [16, 16, 128], strides = [1, 1, 1]} : vector<16x24x128xf32> to vector<16x16x128xf32>
    %cst_60 = arith.constant dense<0.000000e+00> : vector<128xf32>
    %57 = vector.multi_reduction <add>, %56, %cst_60 [0, 1] : vector<16x16x128xf32> to vector<128xf32>
    %58 = vector.shape_cast %57 : vector<128xf32> to vector<1x1x128xf32>
    %59 = vector.shape_cast %58 : vector<1x1x128xf32> to vector<1x128xf32>
    %60 = arith.addf %33, %59 : vector<1x128xf32>
    %61 = arith.mulf %56, %56 : vector<16x16x128xf32>
    %cst_61 = arith.constant dense<0.000000e+00> : vector<128xf32>
    %62 = vector.multi_reduction <add>, %61, %cst_61 [0, 1] : vector<16x16x128xf32> to vector<128xf32>
    %63 = vector.shape_cast %62 : vector<128xf32> to vector<1x1x128xf32>
    %64 = vector.shape_cast %63 : vector<1x1x128xf32> to vector<1x128xf32>
    %65 = arith.addf %38, %64 : vector<1x128xf32>
    %66 = arith.truncf %56 : vector<16x16x128xf32> to vector<16x16x128xbf16>
    %67 = tpu.concatenate %39, %66 in 2 : vector<16x16x128xbf16>, vector<16x16x128xbf16> -> vector<16x16x256xbf16>
    %c1_62 = arith.constant 1 : index
    %c0_63 = arith.constant 0 : index
    %c0_64 = arith.constant 0 : index
    %c0_65 = arith.constant 0 : index
    %c0_66 = arith.constant 0 : index
    %c0_67 = arith.constant 0 : index
    %68 = vector.load %arg2[%c1_62, %c0_63, %c0_64, %c0_65, %c0_66, %c0_67] : memref<2x2x2x2x16x128xbf16, #tpu.memory_space<vmem>>, vector<1x1x1x1x16x128xbf16>
    %69 = vector.shape_cast %68 : vector<1x1x1x1x16x128xbf16> to vector<16x128xbf16>
    %cst_68 = arith.constant dense<0.000000e+00> : vector<384x128xf32>
    %70 = tpu.matmul %5, %69, %cst_68 {dimension_numbers = #tpu.dot_dimension_numbers<[1], [0], [0], [1], [0, 0, 1, 1], [], []>} : vector<384x16xbf16>, vector<16x128xbf16>, vector<384x128xf32> -> vector<384x128xf32>
    %c1_69 = arith.constant 1 : index
    %c0_70 = arith.constant 0 : index
    %c0_71 = arith.constant 0 : index
    %c1_72 = arith.constant 1 : index
    %c0_73 = arith.constant 0 : index
    %c0_74 = arith.constant 0 : index
    %71 = vector.load %arg2[%c1_69, %c0_70, %c0_71, %c1_72, %c0_73, %c0_74] : memref<2x2x2x2x16x128xbf16, #tpu.memory_space<vmem>>, vector<1x1x1x1x16x128xbf16>
    %72 = vector.shape_cast %71 : vector<1x1x1x1x16x128xbf16> to vector<16x128xbf16>
    %cst_75 = arith.constant dense<0.000000e+00> : vector<384x128xf32>
    %73 = tpu.matmul %6, %72, %cst_75 {dimension_numbers = #tpu.dot_dimension_numbers<[1], [0], [0], [1], [0, 0, 1, 1], [], []>} : vector<384x16xbf16>, vector<16x128xbf16>, vector<384x128xf32> -> vector<384x128xf32>
    %74 = arith.addf %70, %73 : vector<384x128xf32>
    %c1_76 = arith.constant 1 : index
    %c0_77 = arith.constant 0 : index
    %c1_78 = arith.constant 1 : index
    %c0_79 = arith.constant 0 : index
    %c0_80 = arith.constant 0 : index
    %c0_81 = arith.constant 0 : index
    %75 = vector.load %arg2[%c1_76, %c0_77, %c1_78, %c0_79, %c0_80, %c0_81] : memref<2x2x2x2x16x128xbf16, #tpu.memory_space<vmem>>, vector<1x1x1x1x16x128xbf16>
    %76 = vector.shape_cast %75 : vector<1x1x1x1x16x128xbf16> to vector<16x128xbf16>
    %cst_82 = arith.constant dense<0.000000e+00> : vector<384x128xf32>
    %77 = tpu.matmul %8, %76, %cst_82 {dimension_numbers = #tpu.dot_dimension_numbers<[1], [0], [0], [1], [0, 0, 1, 1], [], []>} : vector<384x16xbf16>, vector<16x128xbf16>, vector<384x128xf32> -> vector<384x128xf32>
    %78 = arith.addf %74, %77 : vector<384x128xf32>
    %c1_83 = arith.constant 1 : index
    %c0_84 = arith.constant 0 : index
    %c1_85 = arith.constant 1 : index
    %c1_86 = arith.constant 1 : index
    %c0_87 = arith.constant 0 : index
    %c0_88 = arith.constant 0 : index
    %79 = vector.load %arg2[%c1_83, %c0_84, %c1_85, %c1_86, %c0_87, %c0_88] : memref<2x2x2x2x16x128xbf16, #tpu.memory_space<vmem>>, vector<1x1x1x1x16x128xbf16>
    %80 = vector.shape_cast %79 : vector<1x1x1x1x16x128xbf16> to vector<16x128xbf16>
    %cst_89 = arith.constant dense<0.000000e+00> : vector<384x128xf32>
    %81 = tpu.matmul %9, %80, %cst_89 {dimension_numbers = #tpu.dot_dimension_numbers<[1], [0], [0], [1], [0, 0, 1, 1], [], []>} : vector<384x16xbf16>, vector<16x128xbf16>, vector<384x128xf32> -> vector<384x128xf32>
    %82 = arith.addf %78, %81 : vector<384x128xf32>
    %83 = vector.shape_cast %82 : vector<384x128xf32> to vector<16x24x128xf32>
    %84 = vector.extract_strided_slice %83 {offsets = [0, 0, 0], sizes = [16, 16, 128], strides = [1, 1, 1]} : vector<16x24x128xf32> to vector<16x16x128xf32>
    %cst_90 = arith.constant dense<0.000000e+00> : vector<128xf32>
    %85 = vector.multi_reduction <add>, %84, %cst_90 [0, 1] : vector<16x16x128xf32> to vector<128xf32>
    %86 = vector.shape_cast %85 : vector<128xf32> to vector<1x1x128xf32>
    %87 = vector.shape_cast %86 : vector<1x1x128xf32> to vector<1x128xf32>
    %88 = arith.addf %60, %87 : vector<1x128xf32>
    %89 = arith.mulf %84, %84 : vector<16x16x128xf32>
    %cst_91 = arith.constant dense<0.000000e+00> : vector<128xf32>
    %90 = vector.multi_reduction <add>, %89, %cst_91 [0, 1] : vector<16x16x128xf32> to vector<128xf32>
    %91 = vector.shape_cast %90 : vector<128xf32> to vector<1x1x128xf32>
    %92 = vector.shape_cast %91 : vector<1x1x128xf32> to vector<1x128xf32>
    %93 = arith.addf %65, %92 : vector<1x128xf32>
    %94 = arith.truncf %84 : vector<16x16x128xf32> to vector<16x16x128xbf16>
    %c1_92 = arith.constant 1 : index
    %c1_93 = arith.constant 1 : index
    %c0_94 = arith.constant 0 : index
    %c0_95 = arith.constant 0 : index
    %c0_96 = arith.constant 0 : index
    %c0_97 = arith.constant 0 : index
    %95 = vector.load %arg2[%c1_92, %c1_93, %c0_94, %c0_95, %c0_96, %c0_97] : memref<2x2x2x2x16x128xbf16, #tpu.memory_space<vmem>>, vector<1x1x1x1x16x128xbf16>
    %96 = vector.shape_cast %95 : vector<1x1x1x1x16x128xbf16> to vector<16x128xbf16>
    %cst_98 = arith.constant dense<0.000000e+00> : vector<384x128xf32>
    %97 = tpu.matmul %6, %96, %cst_98 {dimension_numbers = #tpu.dot_dimension_numbers<[1], [0], [0], [1], [0, 0, 1, 1], [], []>} : vector<384x16xbf16>, vector<16x128xbf16>, vector<384x128xf32> -> vector<384x128xf32>
    %c1_99 = arith.constant 1 : index
    %c1_100 = arith.constant 1 : index
    %c0_101 = arith.constant 0 : index
    %c1_102 = arith.constant 1 : index
    %c0_103 = arith.constant 0 : index
    %c0_104 = arith.constant 0 : index
    %98 = vector.load %arg2[%c1_99, %c1_100, %c0_101, %c1_102, %c0_103, %c0_104] : memref<2x2x2x2x16x128xbf16, #tpu.memory_space<vmem>>, vector<1x1x1x1x16x128xbf16>
    %99 = vector.shape_cast %98 : vector<1x1x1x1x16x128xbf16> to vector<16x128xbf16>
    %cst_105 = arith.constant dense<0.000000e+00> : vector<384x128xf32>
    %100 = tpu.matmul %7, %99, %cst_105 {dimension_numbers = #tpu.dot_dimension_numbers<[1], [0], [0], [1], [0, 0, 1, 1], [], []>} : vector<384x16xbf16>, vector<16x128xbf16>, vector<384x128xf32> -> vector<384x128xf32>
    %101 = arith.addf %97, %100 : vector<384x128xf32>
    %c1_106 = arith.constant 1 : index
    %c1_107 = arith.constant 1 : index
    %c1_108 = arith.constant 1 : index
    %c0_109 = arith.constant 0 : index
    %c0_110 = arith.constant 0 : index
    %c0_111 = arith.constant 0 : index
    %102 = vector.load %arg2[%c1_106, %c1_107, %c1_108, %c0_109, %c0_110, %c0_111] : memref<2x2x2x2x16x128xbf16, #tpu.memory_space<vmem>>, vector<1x1x1x1x16x128xbf16>
    %103 = vector.shape_cast %102 : vector<1x1x1x1x16x128xbf16> to vector<16x128xbf16>
    %cst_112 = arith.constant dense<0.000000e+00> : vector<384x128xf32>
    %104 = tpu.matmul %9, %103, %cst_112 {dimension_numbers = #tpu.dot_dimension_numbers<[1], [0], [0], [1], [0, 0, 1, 1], [], []>} : vector<384x16xbf16>, vector<16x128xbf16>, vector<384x128xf32> -> vector<384x128xf32>
    %105 = arith.addf %101, %104 : vector<384x128xf32>
    %c1_113 = arith.constant 1 : index
    %c1_114 = arith.constant 1 : index
    %c1_115 = arith.constant 1 : index
    %c1_116 = arith.constant 1 : index
    %c0_117 = arith.constant 0 : index
    %c0_118 = arith.constant 0 : index
    %106 = vector.load %arg2[%c1_113, %c1_114, %c1_115, %c1_116, %c0_117, %c0_118] : memref<2x2x2x2x16x128xbf16, #tpu.memory_space<vmem>>, vector<1x1x1x1x16x128xbf16>
    %107 = vector.shape_cast %106 : vector<1x1x1x1x16x128xbf16> to vector<16x128xbf16>
    %cst_119 = arith.constant dense<0.000000e+00> : vector<384x128xf32>
    %108 = tpu.matmul %10, %107, %cst_119 {dimension_numbers = #tpu.dot_dimension_numbers<[1], [0], [0], [1], [0, 0, 1, 1], [], []>} : vector<384x16xbf16>, vector<16x128xbf16>, vector<384x128xf32> -> vector<384x128xf32>
    %109 = arith.addf %105, %108 : vector<384x128xf32>
    %110 = vector.shape_cast %109 : vector<384x128xf32> to vector<16x24x128xf32>
    %111 = vector.extract_strided_slice %110 {offsets = [0, 0, 0], sizes = [16, 16, 128], strides = [1, 1, 1]} : vector<16x24x128xf32> to vector<16x16x128xf32>
    %cst_120 = arith.constant dense<0.000000e+00> : vector<128xf32>
    %112 = vector.multi_reduction <add>, %111, %cst_120 [0, 1] : vector<16x16x128xf32> to vector<128xf32>
    %113 = vector.shape_cast %112 : vector<128xf32> to vector<1x1x128xf32>
    %114 = vector.shape_cast %113 : vector<1x1x128xf32> to vector<1x128xf32>
    %115 = arith.addf %88, %114 : vector<1x128xf32>
    %116 = arith.mulf %111, %111 : vector<16x16x128xf32>
    %cst_121 = arith.constant dense<0.000000e+00> : vector<128xf32>
    %117 = vector.multi_reduction <add>, %116, %cst_121 [0, 1] : vector<16x16x128xf32> to vector<128xf32>
    %118 = vector.shape_cast %117 : vector<128xf32> to vector<1x1x128xf32>
    %119 = vector.shape_cast %118 : vector<1x1x128xf32> to vector<1x128xf32>
    %120 = arith.addf %93, %119 : vector<1x128xf32>
    %121 = arith.truncf %111 : vector<16x16x128xf32> to vector<16x16x128xbf16>
    %122 = tpu.concatenate %94, %121 in 2 : vector<16x16x128xbf16>, vector<16x16x128xbf16> -> vector<16x16x256xbf16>
    %123 = vector.shape_cast %67 : vector<16x16x256xbf16> to vector<16x1x16x256xbf16>
    %124 = vector.shape_cast %122 : vector<16x16x256xbf16> to vector<16x1x16x256xbf16>
    %125 = tpu.concatenate %123, %124 in 1 : vector<16x1x16x256xbf16>, vector<16x1x16x256xbf16> -> vector<16x2x16x256xbf16>
    %c0_122 = arith.constant 0 : index
    %c0_123 = arith.constant 0 : index
    %c0_124 = arith.constant 0 : index
    %c0_125 = arith.constant 0 : index
    %c0_126 = arith.constant 0 : index
    %126 = vector.load %arg3[%c0_122, %c0_123, %c0_124, %c0_125, %c0_126] : memref<1x16x2x16x256xbf16, #tpu.memory_space<vmem>>, vector<1x16x2x16x256xbf16>
    %127 = vector.shape_cast %126 : vector<1x16x2x16x256xbf16> to vector<16x2x16x256xbf16>
    %128 = vector.shape_cast %125 : vector<16x2x16x256xbf16> to vector<1x16x2x16x256xbf16>
    tpu.vector_store %arg3[%c0_122, %c0_123, %c0_124, %c0_125, %c0_126], %128 {strides = array<i32>} : memref<1x16x2x16x256xbf16, #tpu.memory_space<vmem>>, vector<1x16x2x16x256xbf16>,
    %cst_127 = arith.constant 0.000000e+00 : f32
    %129 = vector.broadcast %cst_127 : f32 to vector<6x128xf32>
    %130 = tpu.concatenate %115, %120, %129 in 0 : vector<1x128xf32>, vector<1x128xf32>, vector<6x128xf32> -> vector<8x128xf32>
    %c0_128 = arith.constant 0 : index
    %c0_129 = arith.constant 0 : index
    %c0_130 = arith.constant 0 : index
    %131 = vector.load %arg4[%c0_128, %c0_129, %c0_130] : memref<1x8x128xf32, #tpu.memory_space<vmem>>, vector<1x8x128xf32>
    %132 = vector.shape_cast %131 : vector<1x8x128xf32> to vector<8x128xf32>
    %133 = vector.shape_cast %130 : vector<8x128xf32> to vector<1x8x128xf32>
    tpu.vector_store %arg4[%c0_128, %c0_129, %c0_130], %133 {strides = array<i32>} : memref<1x8x128xf32, #tpu.memory_space<vmem>>, vector<1x8x128xf32>,
    return
  }
  func.func @transform_0(%arg0: i32) -> (i32, i32, i32) {
    %c0_i32 = arith.constant 0 : i32
    %c0_i32_0 = arith.constant 0 : i32
    %c0_i32_1 = arith.constant 0 : i32
    return %arg0, %c0_i32, %c0_i32_0 : i32, i32, i32
  }
  func.func @transform_1(%arg0: i32) -> (i32, i32, i32, i32, i32, i32) {
    %c0_i32 = arith.constant 0 : i32
    %c0_i32_0 = arith.constant 0 : i32
    %c0_i32_1 = arith.constant 0 : i32
    %c0_i32_2 = arith.constant 0 : i32
    %c0_i32_3 = arith.constant 0 : i32
    %c0_i32_4 = arith.constant 0 : i32
    %c0_i32_5 = arith.constant 0 : i32
    return %c0_i32, %c0_i32_0, %c0_i32_1, %c0_i32_2, %c0_i32_3, %c0_i32_4 : i32, i32, i32, i32, i32, i32
  }
  func.func @transform_2(%arg0: i32) -> (i32, i32, i32, i32, i32) {
    %c0_i32 = arith.constant 0 : i32
    %c0_i32_0 = arith.constant 0 : i32
    %c0_i32_1 = arith.constant 0 : i32
    %c0_i32_2 = arith.constant 0 : i32
    %c0_i32_3 = arith.constant 0 : i32
    return %arg0, %c0_i32, %c0_i32_0, %c0_i32_1, %c0_i32_2 : i32, i32, i32, i32, i32
  }
  func.func @transform_3(%arg0: i32) -> (i32, i32, i32) {
    %c0_i32 = arith.constant 0 : i32
    %c0_i32_0 = arith.constant 0 : i32
    %c0_i32_1 = arith.constant 0 : i32
    return %arg0, %c0_i32, %c0_i32_0 : i32, i32, i32
  }
}

</mosaic_0001>

<llo_original>
// kernel: tpu_custom_call.1
$region0: #{tpu_custom_call.1}
  #allocation0 [shape = 'u32[]', space=smem, size = 0x4, offset = 0x4, fixed_abs, tag = 'smem constant byte address 0x4 - core index']
  #allocation1 [shape = 'u32[144,128]{1,0:T(1,128)}', space=vmem, size = 0x12000, scoped, tag = 'internal scratch']
  %s0 = inlined_call_operand.vmem [shape: bf16[2,456,16], index: 0, kind: input, shape index: {}]
  %s1 = inlined_call_operand.vmem [shape: bf16[2,2,2,2,16,128], index: 1, kind: input, shape index: {}]
  %s2 = inlined_call_operand.hbm [shape: bf16[2,16,2,16,256], index: 2, kind: output, shape index: {0}]
  %s3 = inlined_call_operand.hbm [shape: f32[2,8,128], index: 3, kind: output, shape index: {1}]
  %4 = xla_tuple %s2, %s3
  %s5 = sld [smem:[#allocation0]]
  $region49: #{tpu_custom_call.1} parent=0
    _
  %s7 = ssub.s32 1, %s5
  %s8 = scalar_select 0, %s7, %s5
  $region1: #{tpu_custom_call.1} parent=0
    #allocation2 [shape = 'u8[524288]{0}', space=vmem, size = 0x80000, scoped, tag = 'output window, operand 0']
    #allocation3 [shape = 's32[2]{0}', space=sflag, size = 0x8, scoped, tag = 'scoped memory for tpu_custom_call.1']
    #allocation4 [shape = 'u8[8192]{0}', space=vmem, size = 0x2000, scoped, tag = 'output window, operand 1']
    #allocation5 [shape = 's32[2]{0}', space=sflag, size = 0x8, scoped, tag = 'scoped memory for tpu_custom_call.1']
    %9 = vsyncpa [#allocation3], 0
    %s10 = scalar_lea.sflag [#allocation3], 1
    %11 = vsyncpa %s10, 0
    %12 = vsyncpa [#allocation5], 0
    %s13 = scalar_lea.sflag [#allocation5], 1
    %14 = vsyncpa %s13, 0
    loop: start=0, step=1, limit=4
    $region2: #{tpu_custom_call.1} parent=1 // loop_pre_header
      _
    $region3: #{tpu_custom_call.1} parent=1 // loop_header
      %s16 = sphi 0, %s20
      %p17 = scmp.ge.s32.totalorder %s16, 4
      %s26 = sphi 0, %s28
      %s29 = sphi 0, %s26
      %s30 = sphi 0, %s29
      %s46 = sphi 0, %s30
      %s50 = sphi 0, %s50
      %s52 = sphi 0, %s50
      %s53 = sphi 0, %s52
      %s67 = sphi 0, %s53
      %s73 = sphi 0, %s75
      %s76 = sphi 0, %s73
      %s77 = sphi 0, %s76
      %s93 = sphi 0, %s77
      %s99 = sphi 0, %s101
      %s102 = sphi 0, %s99
      %s103 = sphi 0, %s102
      %s119 = sphi 0, %s103
    $region4: #{tpu_custom_call.1} parent=1 // loop_header_branch
      %19 = sbr.rel (%p17) target = $region8
    $region5: #{tpu_custom_call.1} parent=1 // loop_body
      %s21 = ssub.s32 %s16, 1
      %s22 = ssub.s32 %s16, 2
      %s23 = sadd.s32 %s16, 1
      %s24 = ssub.s32 %s16, %s23
      %p25 = scmp.eq.s32.totalorder %s24, 0
      %s27 = sadd.s32 %s26, 1
      %s28 = scalar_select %p25, %s26, %s27
      %p31 = pneg %p25
      %p32 = scmp.eq.s32.totalorder %s16, 1
      %p33 = por %p31, %p32
      %p34 = scmp.ne.s32.totalorder %s26, %s29
      %p35 = scmp.eq.s32.totalorder %s16, 0
      %p36 = por %p34, %p35
      %p37 = scmp.ne.s32.totalorder %s26, %s29
      %p38 = scmp.eq.s32.totalorder %s21, 1
      %p39 = por %p37, %p38
      %p40 = scmp.ne.s32.totalorder %s29, %s30
      %p41 = scmp.eq.s32.totalorder %s21, 0
      %p42 = por %p40, %p41
      %p43 = scmp.ne.s32.totalorder %s29, %s30
      %p44 = scmp.eq.s32.totalorder %s22, 1
      %p45 = por %p43, %p44
      %p47 = scmp.ne.s32.totalorder %s30, %s46
      %p48 = scmp.eq.s32.totalorder %s22, 0
      %p49 = por %p47, %p48
      %s51 = sadd.s32 %s50, 1
      %p54 = scmp.eq.s32.totalorder %s16, 1
      %p55 = scmp.ne.s32.totalorder %s50, %s52
      %p56 = scmp.eq.s32.totalorder %s16, 0
      %p57 = por %p55, %p56
      %p58 = scmp.ne.s32.totalorder %s50, %s52
      %p59 = scmp.eq.s32.totalorder %s21, 1
      %p60 = por %p58, %p59
      %p61 = scmp.ne.s32.totalorder %s52, %s53
      %p62 = scmp.eq.s32.totalorder %s21, 0
      %p63 = por %p61, %p62
      %p64 = scmp.ne.s32.totalorder %s52, %s53
      %p65 = scmp.eq.s32.totalorder %s22, 1
      %p66 = por %p64, %p65
      %p68 = scmp.ne.s32.totalorder %s53, %s67
      %p69 = scmp.eq.s32.totalorder %s22, 0
      %p70 = por %p68, %p69
      %s71 = ssub.s32 %s16, %s23
      %p72 = scmp.eq.s32.totalorder %s71, 0
      %s74 = sadd.s32 %s73, 1
      %s75 = scalar_select %p72, %s73, %s74
      %p78 = pneg %p72
      %p79 = scmp.eq.s32.totalorder %s16, 1
      %p80 = por %p78, %p79
      %p81 = scmp.ne.s32.totalorder %s73, %s76
      %p82 = scmp.eq.s32.totalorder %s16, 0
      %p83 = por %p81, %p82
      %p84 = scmp.ne.s32.totalorder %s73, %s76
      %p85 = scmp.eq.s32.totalorder %s21, 1
      %p86 = por %p84, %p85
      %p87 = scmp.ne.s32.totalorder %s76, %s77
      %p88 = scmp.eq.s32.totalorder %s21, 0
      %p89 = por %p87, %p88
      %p90 = scmp.ne.s32.totalorder %s76, %s77
      %p91 = scmp.eq.s32.totalorder %s22, 1
      %p92 = por %p90, %p91
      %p94 = scmp.ne.s32.totalorder %s77, %s93
      %p95 = scmp.eq.s32.totalorder %s22, 0
      %p96 = por %p94, %p95
      %s97 = ssub.s32 %s16, %s23
      %p98 = scmp.eq.s32.totalorder %s97, 0
      %s100 = sadd.s32 %s99, 1
      %s101 = scalar_select %p98, %s99, %s100
      %p104 = pneg %p98
      %p105 = scmp.eq.s32.totalorder %s16, 1
      %p106 = por %p104, %p105
      %p107 = scmp.ne.s32.totalorder %s99, %s102
      %p108 = scmp.eq.s32.totalorder %s16, 0
      %p109 = por %p107, %p108
      %p110 = scmp.ne.s32.totalorder %s99, %s102
      %p111 = scmp.eq.s32.totalorder %s21, 1
      %p112 = por %p110, %p111
      %p113 = scmp.ne.s32.totalorder %s102, %s103
      %p114 = scmp.eq.s32.totalorder %s21, 0
      %p115 = por %p113, %p114
      %p116 = scmp.ne.s32.totalorder %s102, %s103
      %p117 = scmp.eq.s32.totalorder %s22, 1
      %p118 = por %p116, %p117
      %p120 = scmp.ne.s32.totalorder %s103, %s119
      %p121 = scmp.eq.s32.totalorder %s22, 0
      %p122 = por %p120, %p121
      %p123 = scmp.le.s32.totalorder 1, %s16
      %p124 = scmp.lt.s32.totalorder %s16, 3
      %p125 = pnand %p123, %p124
      %p126 = pneg %p125
      // Predicated region
      $region9: #{tpu_custom_call.1} parent=5 // pred_check
        _
      $region10: #{tpu_custom_call.1} parent=5 // pred_check_branch
        %128 = sbr.rel (%p125) target = $region12
      $region11: #{tpu_custom_call.1} parent=5 // pred_region
        %s129 = ssub.s32 %s16, 1
        // Predicated region
        $region13: #{tpu_custom_call.1} parent=11 // pred_check
          %p130 = pneg %p63
        $region14: #{tpu_custom_call.1} parent=11 // pred_check_branch
          %132 = sbr.rel (%p130) target = $region16
        $region15: #{tpu_custom_call.1} parent=11 // pred_region
          _
        $region16: #{tpu_custom_call.1} parent=11 // pred_fallthru
          _
      $region12: #{tpu_custom_call.1} parent=5 // pred_fallthru
        _
      %p133 = scmp.lt.s32.totalorder %s16, 2
      // Predicated region
      $region17: #{tpu_custom_call.1} parent=5 // pred_check
        %p134 = pneg %p133
      $region18: #{tpu_custom_call.1} parent=5 // pred_check_branch
        %136 = sbr.rel (%p134) target = $region20
      $region19: #{tpu_custom_call.1} parent=5 // pred_region
        // Predicated region
        $region21: #{tpu_custom_call.1} parent=19 // pred_check
          %p137 = pneg %p36
        $region22: #{tpu_custom_call.1} parent=19 // pred_check_branch
          %139 = sbr.rel (%p137) target = $region24
        $region23: #{tpu_custom_call.1} parent=19 // pred_region
          %p140 = scmp.lt.s32.totalorder %s16, 1
          %s141 = scalar_select %p140, %s16, 1
          %s142 = smul.addr %s141, 57
          %s143 = smul.addr %s142, 4
          %s144 = scalar_lea.vmem %s0, %s143
        $region24: #{tpu_custom_call.1} parent=19 // pred_fallthru
          _
      $region20: #{tpu_custom_call.1} parent=5 // pred_fallthru
        _
      %p145 = scmp.le.s32.totalorder 1, %s16
      %p146 = scmp.lt.s32.totalorder %s16, 3
      %p147 = pnand %p145, %p146
      %p148 = pneg %p147
      // Predicated region
      $region25: #{tpu_custom_call.1} parent=5 // pred_check
        _
      $region26: #{tpu_custom_call.1} parent=5 // pred_check_branch
        %150 = sbr.rel (%p147) target = $region28
      $region27: #{tpu_custom_call.1} parent=5 // pred_region
        %s151 = ssub.s32 %s16, 1
        %p152 = scmp.lt.s32.totalorder %s21, 1
        %s153 = scalar_select %p152, %s21, 1
        %s154 = smul.addr %s153, 57
        %s155 = smul.addr %s154, 4
        %s156 = scalar_lea.vmem %s0, %s155
        %p157 = pneg %p42
        %p158 = pneg %p39
        %p159 = pneg %p63
        %p160 = pneg %p60
        %p161 = pneg %p89
        %p162 = pneg %p86
        %s163 = sand.u32 %s76, 1
        %s164 = scalar_lea.sflag [#allocation3], %s163
        %s165 = sand.u32 %s76, 1
        %s166 = smul.addr %s165, 512
        %s167 = scalar_lea.vmem [#allocation2], %s166
        %p168 = pneg %p115
        %p169 = pneg %p112
        %s170 = sand.u32 %s102, 1
        %s171 = scalar_lea.sflag [#allocation5], %s170
        %s172 = sand.u32 %s102, 1
        %s173 = smul.addr %s172, 8
        %s174 = scalar_lea.vmem [#allocation4], %s173
        %p175 = scmp.lt.s32.totalorder %s21, 1
        %s176 = scalar_select %p175, %s21, 1
        %s177 = smul.addr %s176, 57
        %s178 = smul.addr %s177, 4
        %s179 = scalar_lea.vmem %s0, %s178
        %v181 = vld [vmem:[%s179] sm:$0xf]
        %v182 = vld [vmem:[%s179 + $0x4] sm:$0xf]
        %v183 = vld [vmem:[%s179 + $0x8] sm:$0xf]
        %v184 = vld [vmem:[%s179 + $0xc] sm:$0xf]
        %v185 = vld [vmem:[%s179 + $0x10] sm:$0xf]
        %v186 = vld [vmem:[%s179 + $0x14] sm:$0xf]
        %v187 = vld [vmem:[%s179 + $0x18] sm:$0xf]
        %v188 = vld [vmem:[%s179 + $0x1c] sm:$0xf]
        %v189 = vld [vmem:[%s179 + $0x20] sm:$0xf]
        %v190 = vld [vmem:[%s179 + $0x24] sm:$0xf]
        %v191 = vld [vmem:[%s179 + $0x28] sm:$0xf]
        %v192 = vld [vmem:[%s179 + $0x2c] sm:$0xf]
        %v193 = vld [vmem:[%s179 + $0x30] sm:$0xf]
        %v194 = vld [vmem:[%s179 + $0x34] sm:$0xf]
        %v195 = vld [vmem:[%s179 + $0x38] sm:$0xf]
        %v196 = vld [vmem:[%s179 + $0x3c] sm:$0xf]
        %v197 = vld [vmem:[%s179 + $0x40] sm:$0xf]
        %v198 = vld [vmem:[%s179 + $0x44] sm:$0xf]
        %v199 = vld [vmem:[%s179 + $0x48] sm:$0xf]
        %v200 = vld [vmem:[%s179 + $0x4c] sm:$0xf]
        %v201 = vld [vmem:[%s179 + $0x50] sm:$0xf]
        %v202 = vld [vmem:[%s179 + $0x54] sm:$0xf]
        %v203 = vld [vmem:[%s179 + $0x58] sm:$0xf]
        %v204 = vld [vmem:[%s179 + $0x5c] sm:$0xf]
        %v205 = vld [vmem:[%s179 + $0x60] sm:$0xf]
        %v206 = vld [vmem:[%s179 + $0x64] sm:$0xf]
        %v207 = vld [vmem:[%s179 + $0x68] sm:$0xf]
        %v208 = vld [vmem:[%s179 + $0x6c] sm:$0xf]
        %v209 = vld [vmem:[%s179 + $0x70] sm:$0xf]
        %v210 = vld [vmem:[%s179 + $0x74] sm:$0xf]
        %v211 = vld [vmem:[%s179 + $0x78] sm:$0xf]
        %v212 = vld [vmem:[%s179 + $0x7c] sm:$0xf]
        %v213 = vld [vmem:[%s179 + $0x80] sm:$0xf]
        %v214 = vld [vmem:[%s179 + $0x84] sm:$0xf]
        %v215 = vld [vmem:[%s179 + $0x88] sm:$0xf]
        %v216 = vld [vmem:[%s179 + $0x8c] sm:$0xf]
        %v217 = vld [vmem:[%s179 + $0x90] sm:$0xf]
        %v218 = vld [vmem:[%s179 + $0x94] sm:$0xf]
        %v219 = vld [vmem:[%s179 + $0x98] sm:$0xf]
        %v220 = vld [vmem:[%s179 + $0x9c] sm:$0xf]
        %v221 = vld [vmem:[%s179 + $0xa0] sm:$0xf]
        %v222 = vld [vmem:[%s179 + $0xa4] sm:$0xf]
        %v223 = vld [vmem:[%s179 + $0xa8] sm:$0xf]
        %v224 = vld [vmem:[%s179 + $0xac] sm:$0xf]
        %v225 = vld [vmem:[%s179 + $0xb0] sm:$0xf]
        %v226 = vld [vmem:[%s179 + $0xb4] sm:$0xf]
        %v227 = vld [vmem:[%s179 + $0xb8] sm:$0xf]
        %v228 = vld [vmem:[%s179 + $0xbc] sm:$0xf]
        %v229 = vld [vmem:[%s179 + $0xc0] sm:$0xf]
        %v230 = vld [vmem:[%s179 + $0xc4] sm:$0xf]
        %v231 = vld [vmem:[%s179 + $0xc8] sm:$0xf]
        %v232 = vld [vmem:[%s179 + $0xcc] sm:$0xf]
        %v233 = vld [vmem:[%s179 + $0xd0] sm:$0xf]
        %v234 = vld [vmem:[%s179 + $0xd4] sm:$0xf]
        %v235 = vld [vmem:[%s179 + $0xd8] sm:$0xf]
        %v236 = vld [vmem:[%s1] sm:$0xf]
        %v237 = vld [vmem:[%s1 + $0x4] sm:$0xf]
        %s238 = scalar_lea.vmem %s1, 8
        %v239 = vld [vmem:[%s238] sm:$0xf]
        %v240 = vld [vmem:[%s238 + $0x4] sm:$0xf]
        %v290 = vunpack.c.l.b16 %v181
        %v291 = vunpack.c.l.b16 %v182
        %v292 = vunpack.c.l.b16 %v183
        %v293 = vunpack.c.l.b16 %v184
        %v294 = vunpack.c.l.b16 %v185
        %v295 = vunpack.c.l.b16 %v186
        %v296 = vunpack.c.l.b16 %v187
        %v297 = vunpack.c.l.b16 %v188
        %v298 = vunpack.c.l.b16 %v189
        %v299 = vunpack.c.l.b16 %v190
        %v300 = vunpack.c.l.b16 %v191
        %v301 = vunpack.c.l.b16 %v192
        %v302 = vunpack.c.l.b16 %v193
        %v303 = vunpack.c.l.b16 %v194
        %v304 = vunpack.c.l.b16 %v195
        %v305 = vunpack.c.l.b16 %v196
        %v306 = vunpack.c.l.b16 %v197
        %v307 = vunpack.c.l.b16 %v198
        %v308 = vunpack.c.l.b16 %v199
        %v309 = vunpack.c.l.b16 %v200
        %v310 = vunpack.c.l.b16 %v201
        %v311 = vunpack.c.l.b16 %v202
        %v312 = vunpack.c.l.b16 %v203
        %v313 = vunpack.c.l.b16 %v204
        %v314 = vunpack.c.l.b16 %v205
        %v315 = vunpack.c.l.b16 %v206
        %v316 = vunpack.c.l.b16 %v207
        %v317 = vunpack.c.l.b16 %v208
        %v318 = vunpack.c.l.b16 %v209
        %v319 = vunpack.c.l.b16 %v210
        %v320 = vunpack.c.l.b16 %v211
        %v321 = vunpack.c.l.b16 %v212
        %v322 = vunpack.c.l.b16 %v213
        %v323 = vunpack.c.l.b16 %v214
        %v324 = vunpack.c.l.b16 %v215
        %v325 = vunpack.c.l.b16 %v216
        %v326 = vunpack.c.l.b16 %v217
        %v327 = vunpack.c.l.b16 %v218
        %v328 = vunpack.c.l.b16 %v219
        %v329 = vunpack.c.l.b16 %v220
        %v330 = vunpack.c.l.b16 %v221
        %v331 = vunpack.c.l.b16 %v222
        %v332 = vunpack.c.l.b16 %v223
        %v333 = vunpack.c.l.b16 %v224
        %v334 = vunpack.c.l.b16 %v225
        %v335 = vunpack.c.l.b16 %v226
        %v336 = vunpack.c.l.b16 %v227
        %v337 = vunpack.c.l.b16 %v228
        %v338 = vunpack.c.l.b16 %v229
        %v339 = vpack.c.b16 %v291, %v290
        %v340 = vpack.c.b16 %v293, %v292
        %v341 = vpack.c.b16 %v295, %v294
        %v342 = vpack.c.b16 %v297, %v296
        %v343 = vpack.c.b16 %v299, %v298
        %v344 = vpack.c.b16 %v301, %v300
        %v345 = vpack.c.b16 %v303, %v302
        %v346 = vpack.c.b16 %v305, %v304
        %v347 = vpack.c.b16 %v307, %v306
        %v348 = vpack.c.b16 %v309, %v308
        %v349 = vpack.c.b16 %v311, %v310
        %v350 = vpack.c.b16 %v313, %v312
        %v351 = vpack.c.b16 %v315, %v314
        %v352 = vpack.c.b16 %v317, %v316
        %v353 = vpack.c.b16 %v319, %v318
        %v354 = vpack.c.b16 %v321, %v320
        %v355 = vpack.c.b16 %v323, %v322
        %v356 = vpack.c.b16 %v325, %v324
        %v357 = vpack.c.b16 %v327, %v326
        %v358 = vpack.c.b16 %v329, %v328
        %v359 = vpack.c.b16 %v331, %v330
        %v360 = vpack.c.b16 %v333, %v332
        %v361 = vpack.c.b16 %v335, %v334
        %v362 = vpack.c.b16 %v337, %v336
        %v363 = vpack.c.b16 %v338, %v338
        %vm364 = vsmask.f32 7424
        %v366 = vshrl.u32 %v339, 16
        %v368 = vshll.u32 %v339, 16
        %v370 = vrot.slane %v368, 1
        %v371 = vor.u32 %v366, %v370
        %v373 = vshll.u32 %v340, 16
        %v375 = vrot.slane %v373, 1
        %v376 = vsel %vm364, %v371, %v375
        %v377 = vshrl.u32 %v340, 16
        %v379 = vor.u32 %v377, %v375
        %v381 = vshll.u32 %v341, 16
        %v383 = vrot.slane %v381, 1
        %v384 = vsel %vm364, %v379, %v383
        %v385 = vshrl.u32 %v341, 16
        %v387 = vor.u32 %v385, %v383
        %v389 = vshll.u32 %v342, 16
        %v391 = vrot.slane %v389, 1
        %v392 = vsel %vm364, %v387, %v391
        %v393 = vshrl.u32 %v342, 16
        %v395 = vor.u32 %v393, %v391
        %v397 = vshll.u32 %v343, 16
        %v399 = vrot.slane %v397, 1
        %v400 = vsel %vm364, %v395, %v399
        %v401 = vshrl.u32 %v343, 16
        %v403 = vor.u32 %v401, %v399
        %v405 = vshll.u32 %v344, 16
        %v407 = vrot.slane %v405, 1
        %v408 = vsel %vm364, %v403, %v407
        %v409 = vshrl.u32 %v344, 16
        %v411 = vor.u32 %v409, %v407
        %v413 = vshll.u32 %v345, 16
        %v415 = vrot.slane %v413, 1
        %v416 = vsel %vm364, %v411, %v415
        %v417 = vshrl.u32 %v345, 16
        %v419 = vor.u32 %v417, %v415
        %v421 = vshll.u32 %v346, 16
        %v423 = vrot.slane %v421, 1
        %v424 = vsel %vm364, %v419, %v423
        %v425 = vshrl.u32 %v346, 16
        %v427 = vor.u32 %v425, %v423
        %v429 = vshll.u32 %v347, 16
        %v431 = vrot.slane %v429, 1
        %v432 = vsel %vm364, %v427, %v431
        %v433 = vshrl.u32 %v347, 16
        %v435 = vor.u32 %v433, %v431
        %v437 = vshll.u32 %v348, 16
        %v439 = vrot.slane %v437, 1
        %v440 = vsel %vm364, %v435, %v439
        %v441 = vshrl.u32 %v348, 16
        %v443 = vor.u32 %v441, %v439
        %v445 = vshll.u32 %v349, 16
        %v447 = vrot.slane %v445, 1
        %v448 = vsel %vm364, %v443, %v447
        %v449 = vshrl.u32 %v349, 16
        %v451 = vor.u32 %v449, %v447
        %v453 = vshll.u32 %v350, 16
        %v455 = vrot.slane %v453, 1
        %v456 = vsel %vm364, %v451, %v455
        %v457 = vshrl.u32 %v350, 16
        %v459 = vor.u32 %v457, %v455
        %v461 = vshll.u32 %v351, 16
        %v463 = vrot.slane %v461, 1
        %v464 = vsel %vm364, %v459, %v463
        %v465 = vshrl.u32 %v351, 16
        %v467 = vor.u32 %v465, %v463
        %v469 = vshll.u32 %v352, 16
        %v471 = vrot.slane %v469, 1
        %v472 = vsel %vm364, %v467, %v471
        %v473 = vshrl.u32 %v352, 16
        %v475 = vor.u32 %v473, %v471
        %v477 = vshll.u32 %v353, 16
        %v479 = vrot.slane %v477, 1
        %v480 = vsel %vm364, %v475, %v479
        %v481 = vshrl.u32 %v353, 16
        %v483 = vor.u32 %v481, %v479
        %v485 = vshll.u32 %v354, 16
        %v487 = vrot.slane %v485, 1
        %v488 = vsel %vm364, %v483, %v487
        %v489 = vshrl.u32 %v354, 16
        %v491 = vor.u32 %v489, %v487
        %v493 = vshll.u32 %v355, 16
        %v495 = vrot.slane %v493, 1
        %v496 = vsel %vm364, %v491, %v495
        %v497 = vshrl.u32 %v355, 16
        %v499 = vor.u32 %v497, %v495
        %v501 = vshll.u32 %v356, 16
        %v503 = vrot.slane %v501, 1
        %v504 = vsel %vm364, %v499, %v503
        %v505 = vshrl.u32 %v356, 16
        %v507 = vor.u32 %v505, %v503
        %v509 = vshll.u32 %v357, 16
        %v511 = vrot.slane %v509, 1
        %v512 = vsel %vm364, %v507, %v511
        %v513 = vshrl.u32 %v357, 16
        %v515 = vor.u32 %v513, %v511
        %v517 = vshll.u32 %v358, 16
        %v519 = vrot.slane %v517, 1
        %v520 = vsel %vm364, %v515, %v519
        %v521 = vshrl.u32 %v358, 16
        %v523 = vor.u32 %v521, %v519
        %v525 = vshll.u32 %v359, 16
        %v527 = vrot.slane %v525, 1
        %v528 = vsel %vm364, %v523, %v527
        %v529 = vshrl.u32 %v359, 16
        %v531 = vor.u32 %v529, %v527
        %v533 = vshll.u32 %v360, 16
        %v535 = vrot.slane %v533, 1
        %v536 = vsel %vm364, %v531, %v535
        %v537 = vshrl.u32 %v360, 16
        %v539 = vor.u32 %v537, %v535
        %v541 = vshll.u32 %v361, 16
        %v543 = vrot.slane %v541, 1
        %v544 = vsel %vm364, %v539, %v543
        %v545 = vshrl.u32 %v361, 16
        %v547 = vor.u32 %v545, %v543
        %v549 = vshll.u32 %v362, 16
        %v551 = vrot.slane %v549, 1
        %v552 = vsel %vm364, %v547, %v551
        %v553 = vshrl.u32 %v362, 16
        %v555 = vor.u32 %v553, %v551
        %v557 = vshll.u32 %v363, 16
        %v559 = vrot.slane %v557, 1
        %v560 = vsel %vm364, %v555, %v559
        %v563 = vunpack.c.l.b16 %v239
        %v564 = vunpack.c.l.b16 %v240
        %v565 = vpack.c.b16 %v564, %v563
        %vm567 = vcmask 130048
        %v569 = vsel %vm567, %v376, 0
        %v572 = vsel %vm567, %v384, 0
        %v575 = vsel %vm567, %v392, 0
        %v578 = vsel %vm567, %v400, 0
        %v581 = vsel %vm567, %v408, 0
        %v584 = vsel %vm567, %v416, 0
        %v587 = vsel %vm567, %v424, 0
        %v590 = vsel %vm567, %v432, 0
        %v593 = vsel %vm567, %v440, 0
        %v596 = vsel %vm567, %v448, 0
        %v599 = vsel %vm567, %v456, 0
        %v602 = vsel %vm567, %v464, 0
        %v605 = vsel %vm567, %v472, 0
        %v608 = vsel %vm567, %v480, 0
        %v611 = vsel %vm567, %v488, 0
        %v614 = vsel %vm567, %v496, 0
        %v617 = vsel %vm567, %v504, 0
        %v620 = vsel %vm567, %v512, 0
        %v623 = vsel %vm567, %v520, 0
        %v626 = vsel %vm567, %v528, 0
        %v629 = vsel %vm567, %v536, 0
        %v632 = vsel %vm567, %v544, 0
        %v635 = vsel %vm567, %v552, 0
        %v638 = vsel %vm567, %v560, 0
        %640 = vmatprep.subr.bf16.mxu0 0
        %641 = vmatpush1.bf16.msra.mxu0 0
        %642 = vmatprep.subr.bf16.mxu0 0
        %643 = vmatpush1.bf16.msra.mxu0 0
        %644 = vmatprep.subr.bf16.mxu0 0
        %645 = vmatpush1.bf16.msra.mxu0 0
        %646 = vmatprep.subr.bf16.mxu0 0
        %647 = vmatpush1.bf16.msra.mxu0 0
        %648 = vmatprep.subr.bf16.mxu0 0
        %649 = vmatpush1.bf16.msra.mxu0 0
        %650 = vmatprep.subr.bf16.mxu0 0
        %651 = vmatpush1.bf16.msra.mxu0 0
        %652 = vmatprep.subr.bf16.mxu0 0
        %653 = vmatpush1.bf16.msra.mxu0 0
        %654 = vmatprep.subr.bf16.mxu0 0
        %655 = vmatpush1.bf16.msra.mxu0 %v565
        %656 = vmatprep.subr.bf16.mxu0 0
        %657 = vmatpush2.bf16.msra.mxu0 0
        %658 = vmatprep.subr.bf16.mxu0 0
        %659 = vmatpush2.bf16.msra.mxu0 0
        %660 = vmatprep.subr.bf16.mxu0 0
        %661 = vmatpush2.bf16.msra.mxu0 0
        %662 = vmatprep.subr.bf16.mxu0 0
        %663 = vmatpush2.bf16.msra.mxu0 0
        %664 = vmatprep.subr.bf16.mxu0 0
        %665 = vmatpush2.bf16.msra.mxu0 0
        %666 = vmatprep.subr.bf16.mxu0 0
        %667 = vmatpush2.bf16.msra.mxu0 0
        %668 = vmatprep.subr.bf16.mxu0 0
        %669 = vmatpush2.bf16.msra.mxu0 0
        %670 = vmatprep.subr.bf16.mxu0 0
        %671 = vmatpush2.bf16.msra.mxu0 0
        %672 = vmatprep.mubr.bf16.mxu0 0
        %673 = vmatmul.mubr.bf16.gmra.mxu0 %v569
        %v674 = vpop.f32.mrf.mxu0
        %v675 = vadd.f32 0.0, %v674
        %v676 = vpop.f32.mrf.mxu0
        %v677 = vpop.f32.mrf.mxu0
        %v678 = vadd.f32 0.0, %v677
        %v679 = vpop.f32.mrf.mxu0
        %680 = vmatprep.mubr.bf16.mxu0 0
        %681 = vmatmul.mubr.bf16.gmra.mxu0 %v572
        %v682 = vpop.f32.mrf.mxu0
        %v683 = vpop.f32.mrf.mxu0
        %v684 = vpop.f32.mrf.mxu0
        %v685 = vadd.f32 0.0, %v684
        %v686 = vpop.f32.mrf.mxu0
        %687 = vmatprep.mubr.bf16.mxu0 0
        %688 = vmatmul.mubr.bf16.gmra.mxu0 %v575
        %v689 = vpop.f32.mrf.mxu0
        %v690 = vadd.f32 0.0, %v689
        %v691 = vpop.f32.mrf.mxu0
        %v692 = vpop.f32.mrf.mxu0
        %v693 = vpop.f32.mrf.mxu0
        %694 = vmatprep.mubr.bf16.mxu0 0
        %695 = vmatmul.mubr.bf16.gmra.mxu0 %v578
        %v696 = vpop.f32.mrf.mxu0
        %v697 = vadd.f32 0.0, %v696
        %v698 = vpop.f32.mrf.mxu0
        %v699 = vpop.f32.mrf.mxu0
        %v700 = vadd.f32 0.0, %v699
        %v701 = vpop.f32.mrf.mxu0
        %702 = vmatprep.mubr.bf16.mxu0 0
        %703 = vmatmul.mubr.bf16.gmra.mxu0 %v581
        %v704 = vpop.f32.mrf.mxu0
        %v705 = vpop.f32.mrf.mxu0
        %v706 = vpop.f32.mrf.mxu0
        %v707 = vadd.f32 0.0, %v706
        %v708 = vpop.f32.mrf.mxu0
        %709 = vmatprep.mubr.bf16.mxu0 0
        %710 = vmatmul.mubr.bf16.gmra.mxu0 %v584
        %v711 = vpop.f32.mrf.mxu0
        %v712 = vadd.f32 0.0, %v711
        %v713 = vpop.f32.mrf.mxu0
        %v714 = vpop.f32.mrf.mxu0
        %v715 = vpop.f32.mrf.mxu0
        %716 = vmatprep.mubr.bf16.mxu0 0
        %717 = vmatmul.mubr.bf16.gmra.mxu0 %v587
        %v718 = vpop.f32.mrf.mxu0
        %v719 = vadd.f32 0.0, %v718
        %v720 = vpop.f32.mrf.mxu0
        %v721 = vpop.f32.mrf.mxu0
        %v722 = vadd.f32 0.0, %v721
        %v723 = vpop.f32.mrf.mxu0
        %724 = vmatprep.mubr.bf16.mxu0 0
        %725 = vmatmul.mubr.bf16.gmra.mxu0 %v590
        %v726 = vpop.f32.mrf.mxu0
        %v727 = vpop.f32.mrf.mxu0
        %v728 = vpop.f32.mrf.mxu0
        %v729 = vadd.f32 0.0, %v728
        %v730 = vpop.f32.mrf.mxu0
        %731 = vmatprep.mubr.bf16.mxu0 0
        %732 = vmatmul.mubr.bf16.gmra.mxu0 %v593
        %v733 = vpop.f32.mrf.mxu0
        %v734 = vadd.f32 0.0, %v733
        %v735 = vpop.f32.mrf.mxu0
        %v736 = vpop.f32.mrf.mxu0
        %v737 = vpop.f32.mrf.mxu0
        %738 = vmatprep.mubr.bf16.mxu0 0
        %739 = vmatmul.mubr.bf16.gmra.mxu0 %v596
        %v740 = vpop.f32.mrf.mxu0
        %v741 = vadd.f32 0.0, %v740
        %v742 = vpop.f32.mrf.mxu0
        %v743 = vpop.f32.mrf.mxu0
        %v744 = vadd.f32 0.0, %v743
        %v745 = vpop.f32.mrf.mxu0
        %746 = vmatprep.mubr.bf16.mxu0 0
        %747 = vmatmul.mubr.bf16.gmra.mxu0 %v599
        %v748 = vpop.f32.mrf.mxu0
        %v749 = vpop.f32.mrf.mxu0
        %v750 = vpop.f32.mrf.mxu0
        %v751 = vadd.f32 0.0, %v750
        %v752 = vpop.f32.mrf.mxu0
        %753 = vmatprep.mubr.bf16.mxu0 0
        %754 = vmatmul.mubr.bf16.gmra.mxu0 %v602
        %v755 = vpop.f32.mrf.mxu0
        %v756 = vadd.f32 0.0, %v755
        %v757 = vpop.f32.mrf.mxu0
        %v758 = vpop.f32.mrf.mxu0
        %v759 = vpop.f32.mrf.mxu0
        %760 = vmatprep.mubr.bf16.mxu0 0
        %761 = vmatmul.mubr.bf16.gmra.mxu0 %v605
        %v762 = vpop.f32.mrf.mxu0
        %v763 = vadd.f32 0.0, %v762
        %v764 = vpop.f32.mrf.mxu0
        %v765 = vpop.f32.mrf.mxu0
        %v766 = vadd.f32 0.0, %v765
        %v767 = vpop.f32.mrf.mxu0
        %768 = vmatprep.mubr.bf16.mxu0 0
        %769 = vmatmul.mubr.bf16.gmra.mxu0 %v608
        %v770 = vpop.f32.mrf.mxu0
        %v771 = vpop.f32.mrf.mxu0
        %v772 = vpop.f32.mrf.mxu0
        %v773 = vadd.f32 0.0, %v772
        %v774 = vpop.f32.mrf.mxu0
        %775 = vmatprep.mubr.bf16.mxu0 0
        %776 = vmatmul.mubr.bf16.gmra.mxu0 %v611
        %v777 = vpop.f32.mrf.mxu0
        %v778 = vadd.f32 0.0, %v777
        %v779 = vpop.f32.mrf.mxu0
        %v780 = vpop.f32.mrf.mxu0
        %v781 = vpop.f32.mrf.mxu0
        %782 = vmatprep.mubr.bf16.mxu0 0
        %783 = vmatmul.mubr.bf16.gmra.mxu0 %v614
        %v784 = vpop.f32.mrf.mxu0
        %v785 = vadd.f32 0.0, %v784
        %v786 = vpop.f32.mrf.mxu0
        %v787 = vpop.f32.mrf.mxu0
        %v788 = vadd.f32 0.0, %v787
        %v789 = vpop.f32.mrf.mxu0
        %790 = vmatprep.mubr.bf16.mxu0 0
        %791 = vmatmul.mubr.bf16.gmra.mxu0 %v617
        %v792 = vpop.f32.mrf.mxu0
        %v793 = vpop.f32.mrf.mxu0
        %v794 = vpop.f32.mrf.mxu0
        %v795 = vadd.f32 0.0, %v794
        %v796 = vpop.f32.mrf.mxu0
        %797 = vmatprep.mubr.bf16.mxu0 0
        %798 = vmatmul.mubr.bf16.gmra.mxu0 %v620
        %v799 = vpop.f32.mrf.mxu0
        %v800 = vadd.f32 0.0, %v799
        %v801 = vpop.f32.mrf.mxu0
        %v802 = vpop.f32.mrf.mxu0
        %v803 = vpop.f32.mrf.mxu0
        %804 = vmatprep.mubr.bf16.mxu0 0
        %805 = vmatmul.mubr.bf16.gmra.mxu0 %v623
        %v806 = vpop.f32.mrf.mxu0
        %v807 = vadd.f32 0.0, %v806
        %v808 = vpop.f32.mrf.mxu0
        %v809 = vpop.f32.mrf.mxu0
        %v810 = vadd.f32 0.0, %v809
        %v811 = vpop.f32.mrf.mxu0
        %812 = vmatprep.mubr.bf16.mxu0 0
        %813 = vmatmul.mubr.bf16.gmra.mxu0 %v626
        %v814 = vpop.f32.mrf.mxu0
        %v815 = vpop.f32.mrf.mxu0
        %v816 = vpop.f32.mrf.mxu0
        %v817 = vadd.f32 0.0, %v816
        %v818 = vpop.f32.mrf.mxu0
        %819 = vmatprep.mubr.bf16.mxu0 0
        %820 = vmatmul.mubr.bf16.gmra.mxu0 %v629
        %v821 = vpop.f32.mrf.mxu0
        %v822 = vadd.f32 0.0, %v821
        %v823 = vpop.f32.mrf.mxu0
        %v824 = vpop.f32.mrf.mxu0
        %v825 = vpop.f32.mrf.mxu0
        %826 = vmatprep.mubr.bf16.mxu0 0
        %827 = vmatmul.mubr.bf16.gmra.mxu0 %v632
        %v828 = vpop.f32.mrf.mxu0
        %v829 = vadd.f32 0.0, %v828
        %v830 = vpop.f32.mrf.mxu0
        %v831 = vpop.f32.mrf.mxu0
        %v832 = vadd.f32 0.0, %v831
        %v833 = vpop.f32.mrf.mxu0
        %834 = vmatprep.mubr.bf16.mxu0 0
        %835 = vmatmul.mubr.bf16.gmra.mxu0 %v635
        %v836 = vpop.f32.mrf.mxu0
        %v837 = vpop.f32.mrf.mxu0
        %v838 = vpop.f32.mrf.mxu0
        %v839 = vadd.f32 0.0, %v838
        %v840 = vpop.f32.mrf.mxu0
        %841 = vmatprep.mubr.bf16.mxu0 0
        %842 = vmatmul.mubr.bf16.gmra.mxu0 %v638
        %v843 = vpop.f32.mrf.mxu0
        %v844 = vadd.f32 0.0, %v843
        %v845 = vpop.f32.mrf.mxu0
        %v846 = vpop.f32.mrf.mxu0
        %v847 = vpop.f32.mrf.mxu0
        %848 = vdwg.mxu0
        %v851 = vunpack.c.l.b16 %v236
        %v852 = vunpack.c.l.b16 %v237
        %v853 = vpack.c.b16 %v852, %v851
        %v855 = vsel %vm567, %v339, 0
        %v857 = vsel %vm567, %v340, 0
        %v859 = vsel %vm567, %v341, 0
        %v861 = vsel %vm567, %v342, 0
        %v863 = vsel %vm567, %v343, 0
        %v865 = vsel %vm567, %v344, 0
        %v867 = vsel %vm567, %v345, 0
        %v869 = vsel %vm567, %v346, 0
        %v871 = vsel %vm567, %v347, 0
        %v873 = vsel %vm567, %v348, 0
        %v875 = vsel %vm567, %v349, 0
        %v877 = vsel %vm567, %v350, 0
        %v879 = vsel %vm567, %v351, 0
        %v881 = vsel %vm567, %v352, 0
        %v883 = vsel %vm567, %v353, 0
        %v885 = vsel %vm567, %v354, 0
        %v887 = vsel %vm567, %v355, 0
        %v889 = vsel %vm567, %v356, 0
        %v891 = vsel %vm567, %v357, 0
        %v893 = vsel %vm567, %v358, 0
        %v895 = vsel %vm567, %v359, 0
        %v897 = vsel %vm567, %v360, 0
        %v899 = vsel %vm567, %v361, 0
        %v901 = vsel %vm567, %v362, 0
        %903 = vmatprep.subr.bf16.mxu0 0
        %904 = vmatpush1.bf16.msra.mxu0 0
        %905 = vmatprep.subr.bf16.mxu0 0
        %906 = vmatpush1.bf16.msra.mxu0 0
        %907 = vmatprep.subr.bf16.mxu0 0
        %908 = vmatpush1.bf16.msra.mxu0 0
        %909 = vmatprep.subr.bf16.mxu0 0
        %910 = vmatpush1.bf16.msra.mxu0 0
        %911 = vmatprep.subr.bf16.mxu0 0
        %912 = vmatpush1.bf16.msra.mxu0 0
        %913 = vmatprep.subr.bf16.mxu0 0
        %914 = vmatpush1.bf16.msra.mxu0 0
        %915 = vmatprep.subr.bf16.mxu0 0
        %916 = vmatpush1.bf16.msra.mxu0 0
        %917 = vmatprep.subr.bf16.mxu0 0
        %918 = vmatpush1.bf16.msra.mxu0 %v853
        %919 = vmatprep.subr.bf16.mxu0 0
        %920 = vmatpush2.bf16.msra.mxu0 0
        %921 = vmatprep.subr.bf16.mxu0 0
        %922 = vmatpush2.bf16.msra.mxu0 0
        %923 = vmatprep.subr.bf16.mxu0 0
        %924 = vmatpush2.bf16.msra.mxu0 0
        %925 = vmatprep.subr.bf16.mxu0 0
        %926 = vmatpush2.bf16.msra.mxu0 0
        %927 = vmatprep.subr.bf16.mxu0 0
        %928 = vmatpush2.bf16.msra.mxu0 0
        %929 = vmatprep.subr.bf16.mxu0 0
        %930 = vmatpush2.bf16.msra.mxu0 0
        %931 = vmatprep.subr.bf16.mxu0 0
        %932 = vmatpush2.bf16.msra.mxu0 0
        %933 = vmatprep.subr.bf16.mxu0 0
        %934 = vmatpush2.bf16.msra.mxu0 0
        %935 = vmatprep.mubr.bf16.mxu0 0
        %936 = vmatmul.mubr.bf16.gmra.mxu0 %v855
        %v937 = vpop.f32.mrf.mxu0
        %v938 = vadd.f32 %v675, %v937
        %v939 = vpop.f32.mrf.mxu0
        %v940 = vpop.f32.mrf.mxu0
        %v941 = vadd.f32 %v678, %v940
        %v942 = vpop.f32.mrf.mxu0
        %943 = vmatprep.mubr.bf16.mxu0 0
        %944 = vmatmul.mubr.bf16.gmra.mxu0 %v857
        %v945 = vpop.f32.mrf.mxu0
        %v946 = vpop.f32.mrf.mxu0
        %v947 = vpop.f32.mrf.mxu0
        %v948 = vadd.f32 %v685, %v947
        %v949 = vpop.f32.mrf.mxu0
        %950 = vmatprep.mubr.bf16.mxu0 0
        %951 = vmatmul.mubr.bf16.gmra.mxu0 %v859
        %v952 = vpop.f32.mrf.mxu0
        %v953 = vadd.f32 %v690, %v952
        %v954 = vpop.f32.mrf.mxu0
        %v955 = vpop.f32.mrf.mxu0
        %v956 = vpop.f32.mrf.mxu0
        %957 = vmatprep.mubr.bf16.mxu0 0
        %958 = vmatmul.mubr.bf16.gmra.mxu0 %v861
        %v959 = vpop.f32.mrf.mxu0
        %v960 = vadd.f32 %v697, %v959
        %v961 = vpop.f32.mrf.mxu0
        %v962 = vpop.f32.mrf.mxu0
        %v963 = vadd.f32 %v700, %v962
        %v964 = vpop.f32.mrf.mxu0
        %965 = vmatprep.mubr.bf16.mxu0 0
        %966 = vmatmul.mubr.bf16.gmra.mxu0 %v863
        %v967 = vpop.f32.mrf.mxu0
        %v968 = vpop.f32.mrf.mxu0
        %v969 = vpop.f32.mrf.mxu0
        %v970 = vadd.f32 %v707, %v969
        %v971 = vpop.f32.mrf.mxu0
        %972 = vmatprep.mubr.bf16.mxu0 0
        %973 = vmatmul.mubr.bf16.gmra.mxu0 %v865
        %v974 = vpop.f32.mrf.mxu0
        %v975 = vadd.f32 %v712, %v974
        %v976 = vpop.f32.mrf.mxu0
        %v977 = vpop.f32.mrf.mxu0
        %v978 = vpop.f32.mrf.mxu0
        %979 = vmatprep.mubr.bf16.mxu0 0
        %980 = vmatmul.mubr.bf16.gmra.mxu0 %v867
        %v981 = vpop.f32.mrf.mxu0
        %v982 = vadd.f32 %v719, %v981
        %v983 = vpop.f32.mrf.mxu0
        %v984 = vpop.f32.mrf.mxu0
        %v985 = vadd.f32 %v722, %v984
        %v986 = vpop.f32.mrf.mxu0
        %987 = vmatprep.mubr.bf16.mxu0 0
        %988 = vmatmul.mubr.bf16.gmra.mxu0 %v869
        %v989 = vpop.f32.mrf.mxu0
        %v990 = vpop.f32.mrf.mxu0
        %v991 = vpop.f32.mrf.mxu0
        %v992 = vadd.f32 %v729, %v991
        %v993 = vpop.f32.mrf.mxu0
        %994 = vmatprep.mubr.bf16.mxu0 0
        %995 = vmatmul.mubr.bf16.gmra.mxu0 %v871
        %v996 = vpop.f32.mrf.mxu0
        %v997 = vadd.f32 %v734, %v996
        %v998 = vpop.f32.mrf.mxu0
        %v999 = vpop.f32.mrf.mxu0
        %v1000 = vpop.f32.mrf.mxu0
        %1001 = vmatprep.mubr.bf16.mxu0 0
        %1002 = vmatmul.mubr.bf16.gmra.mxu0 %v873
        %v1003 = vpop.f32.mrf.mxu0
        %v1004 = vadd.f32 %v741, %v1003
        %v1005 = vpop.f32.mrf.mxu0
        %v1006 = vpop.f32.mrf.mxu0
        %v1007 = vadd.f32 %v744, %v1006
        %v1008 = vpop.f32.mrf.mxu0
        %1009 = vmatprep.mubr.bf16.mxu0 0
        %1010 = vmatmul.mubr.bf16.gmra.mxu0 %v875
        %v1011 = vpop.f32.mrf.mxu0
        %v1012 = vpop.f32.mrf.mxu0
        %v1013 = vpop.f32.mrf.mxu0
        %v1014 = vadd.f32 %v751, %v1013
        %v1015 = vpop.f32.mrf.mxu0
        %1016 = vmatprep.mubr.bf16.mxu0 0
        %1017 = vmatmul.mubr.bf16.gmra.mxu0 %v877
        %v1018 = vpop.f32.mrf.mxu0
        %v1019 = vadd.f32 %v756, %v1018
        %v1020 = vpop.f32.mrf.mxu0
        %v1021 = vpop.f32.mrf.mxu0
        %v1022 = vpop.f32.mrf.mxu0
        %1023 = vmatprep.mubr.bf16.mxu0 0
        %1024 = vmatmul.mubr.bf16.gmra.mxu0 %v879
        %v1025 = vpop.f32.mrf.mxu0
        %v1026 = vadd.f32 %v763, %v1025
        %v1027 = vpop.f32.mrf.mxu0
        %v1028 = vpop.f32.mrf.mxu0
        %v1029 = vadd.f32 %v766, %v1028
        %v1030 = vpop.f32.mrf.mxu0
        %1031 = vmatprep.mubr.bf16.mxu0 0
        %1032 = vmatmul.mubr.bf16.gmra.mxu0 %v881
        %v1033 = vpop.f32.mrf.mxu0
        %v1034 = vpop.f32.mrf.mxu0
        %v1035 = vpop.f32.mrf.mxu0
        %v1036 = vadd.f32 %v773, %v1035
        %v1037 = vpop.f32.mrf.mxu0
        %1038 = vmatprep.mubr.bf16.mxu0 0
        %1039 = vmatmul.mubr.bf16.gmra.mxu0 %v883
        %v1040 = vpop.f32.mrf.mxu0
        %v1041 = vadd.f32 %v778, %v1040
        %v1042 = vpop.f32.mrf.mxu0
        %v1043 = vpop.f32.mrf.mxu0
        %v1044 = vpop.f32.mrf.mxu0
        %1045 = vmatprep.mubr.bf16.mxu0 0
        %1046 = vmatmul.mubr.bf16.gmra.mxu0 %v885
        %v1047 = vpop.f32.mrf.mxu0
        %v1048 = vadd.f32 %v785, %v1047
        %v1049 = vpop.f32.mrf.mxu0
        %v1050 = vpop.f32.mrf.mxu0
        %v1051 = vadd.f32 %v788, %v1050
        %v1052 = vpop.f32.mrf.mxu0
        %1053 = vmatprep.mubr.bf16.mxu0 0
        %1054 = vmatmul.mubr.bf16.gmra.mxu0 %v887
        %v1055 = vpop.f32.mrf.mxu0
        %v1056 = vpop.f32.mrf.mxu0
        %v1057 = vpop.f32.mrf.mxu0
        %v1058 = vadd.f32 %v795, %v1057
        %v1059 = vpop.f32.mrf.mxu0
        %1060 = vmatprep.mubr.bf16.mxu0 0
        %1061 = vmatmul.mubr.bf16.gmra.mxu0 %v889
        %v1062 = vpop.f32.mrf.mxu0
        %v1063 = vadd.f32 %v800, %v1062
        %v1064 = vpop.f32.mrf.mxu0
        %v1065 = vpop.f32.mrf.mxu0
        %v1066 = vpop.f32.mrf.mxu0
        %1067 = vmatprep.mubr.bf16.mxu0 0
        %1068 = vmatmul.mubr.bf16.gmra.mxu0 %v891
        %v1069 = vpop.f32.mrf.mxu0
        %v1070 = vadd.f32 %v807, %v1069
        %v1071 = vpop.f32.mrf.mxu0
        %v1072 = vpop.f32.mrf.mxu0
        %v1073 = vadd.f32 %v810, %v1072
        %v1074 = vpop.f32.mrf.mxu0
        %1075 = vmatprep.mubr.bf16.mxu0 0
        %1076 = vmatmul.mubr.bf16.gmra.mxu0 %v893
        %v1077 = vpop.f32.mrf.mxu0
        %v1078 = vpop.f32.mrf.mxu0
        %v1079 = vpop.f32.mrf.mxu0
        %v1080 = vadd.f32 %v817, %v1079
        %v1081 = vpop.f32.mrf.mxu0
        %1082 = vmatprep.mubr.bf16.mxu0 0
        %1083 = vmatmul.mubr.bf16.gmra.mxu0 %v895
        %v1084 = vpop.f32.mrf.mxu0
        %v1085 = vadd.f32 %v822, %v1084
        %v1086 = vpop.f32.mrf.mxu0
        %v1087 = vpop.f32.mrf.mxu0
        %v1088 = vpop.f32.mrf.mxu0
        %1089 = vmatprep.mubr.bf16.mxu0 0
        %1090 = vmatmul.mubr.bf16.gmra.mxu0 %v897
        %v1091 = vpop.f32.mrf.mxu0
        %v1092 = vadd.f32 %v829, %v1091
        %v1093 = vpop.f32.mrf.mxu0
        %v1094 = vpop.f32.mrf.mxu0
        %v1095 = vadd.f32 %v832, %v1094
        %v1096 = vpop.f32.mrf.mxu0
        %1097 = vmatprep.mubr.bf16.mxu0 0
        %1098 = vmatmul.mubr.bf16.gmra.mxu0 %v899
        %v1099 = vpop.f32.mrf.mxu0
        %v1100 = vpop.f32.mrf.mxu0
        %v1101 = vpop.f32.mrf.mxu0
        %v1102 = vadd.f32 %v839, %v1101
        %v1103 = vpop.f32.mrf.mxu0
        %1104 = vmatprep.mubr.bf16.mxu0 0
        %1105 = vmatmul.mubr.bf16.gmra.mxu0 %v901
        %v1106 = vpop.f32.mrf.mxu0
        %v1107 = vadd.f32 %v844, %v1106
        %v1108 = vpop.f32.mrf.mxu0
        %v1109 = vpop.f32.mrf.mxu0
        %v1110 = vpop.f32.mrf.mxu0
        %1111 = vdwg.mxu0
        %s1112 = scalar_lea.vmem %s1, 16
        %v1113 = vld [vmem:[%s1112] sm:$0xf]
        %v1114 = vld [vmem:[%s1112 + $0x4] sm:$0xf]
        %v1117 = vunpack.c.l.b16 %v230
        %v1118 = vunpack.c.l.b16 %v231
        %v1119 = vpack.c.b16 %v294, %v293
        %v1120 = vpack.c.b16 %v296, %v295
        %v1121 = vpack.c.b16 %v298, %v297
        %v1122 = vpack.c.b16 %v300, %v299
        %v1123 = vpack.c.b16 %v302, %v301
        %v1124 = vpack.c.b16 %v304, %v303
        %v1125 = vpack.c.b16 %v306, %v305
        %v1126 = vpack.c.b16 %v308, %v307
        %v1127 = vpack.c.b16 %v310, %v309
        %v1128 = vpack.c.b16 %v312, %v311
        %v1129 = vpack.c.b16 %v314, %v313
        %v1130 = vpack.c.b16 %v316, %v315
        %v1131 = vpack.c.b16 %v318, %v317
        %v1132 = vpack.c.b16 %v320, %v319
        %v1133 = vpack.c.b16 %v322, %v321
        %v1134 = vpack.c.b16 %v324, %v323
        %v1135 = vpack.c.b16 %v326, %v325
        %v1136 = vpack.c.b16 %v328, %v327
        %v1137 = vpack.c.b16 %v330, %v329
        %v1138 = vpack.c.b16 %v332, %v331
        %v1139 = vpack.c.b16 %v334, %v333
        %v1140 = vpack.c.b16 %v336, %v335
        %v1141 = vpack.c.b16 %v338, %v337
        %v1142 = vpack.c.b16 %v1118, %v1117
        %v1145 = vunpack.c.l.b16 %v1113
        %v1146 = vunpack.c.l.b16 %v1114
        %v1147 = vpack.c.b16 %v1146, %v1145
        %v1150 = vsel %vm567, %v1119, 0
        %v1153 = vsel %vm567, %v1120, 0
        %v1156 = vsel %vm567, %v1121, 0
        %v1159 = vsel %vm567, %v1122, 0
        %v1162 = vsel %vm567, %v1123, 0
        %v1165 = vsel %vm567, %v1124, 0
        %v1168 = vsel %vm567, %v1125, 0
        %v1171 = vsel %vm567, %v1126, 0
        %v1174 = vsel %vm567, %v1127, 0
        %v1177 = vsel %vm567, %v1128, 0
        %v1180 = vsel %vm567, %v1129, 0
        %v1183 = vsel %vm567, %v1130, 0
        %v1186 = vsel %vm567, %v1131, 0
        %v1189 = vsel %vm567, %v1132, 0
        %v1192 = vsel %vm567, %v1133, 0
        %v1195 = vsel %vm567, %v1134, 0
        %v1198 = vsel %vm567, %v1135, 0
        %v1201 = vsel %vm567, %v1136, 0
        %v1204 = vsel %vm567, %v1137, 0
        %v1207 = vsel %vm567, %v1138, 0
        %v1210 = vsel %vm567, %v1139, 0
        %v1213 = vsel %vm567, %v1140, 0
        %v1216 = vsel %vm567, %v1141, 0
        %v1219 = vsel %vm567, %v1142, 0
        %1221 = vmatprep.subr.bf16.mxu0 0
        %1222 = vmatpush1.bf16.msra.mxu0 0
        %1223 = vmatprep.subr.bf16.mxu0 0
        %1224 = vmatpush1.bf16.msra.mxu0 0
        %1225 = vmatprep.subr.bf16.mxu0 0
        %1226 = vmatpush1.bf16.msra.mxu0 0
        %1227 = vmatprep.subr.bf16.mxu0 0
        %1228 = vmatpush1.bf16.msra.mxu0 0
        %1229 = vmatprep.subr.bf16.mxu0 0
        %1230 = vmatpush1.bf16.msra.mxu0 0
        %1231 = vmatprep.subr.bf16.mxu0 0
        %1232 = vmatpush1.bf16.msra.mxu0 0
        %1233 = vmatprep.subr.bf16.mxu0 0
        %1234 = vmatpush1.bf16.msra.mxu0 0
        %1235 = vmatprep.subr.bf16.mxu0 0
        %1236 = vmatpush1.bf16.msra.mxu0 %v1147
        %1237 = vmatprep.subr.bf16.mxu0 0
        %1238 = vmatpush2.bf16.msra.mxu0 0
        %1239 = vmatprep.subr.bf16.mxu0 0
        %1240 = vmatpush2.bf16.msra.mxu0 0
        %1241 = vmatprep.subr.bf16.mxu0 0
        %1242 = vmatpush2.bf16.msra.mxu0 0
        %1243 = vmatprep.subr.bf16.mxu0 0
        %1244 = vmatpush2.bf16.msra.mxu0 0
        %1245 = vmatprep.subr.bf16.mxu0 0
        %1246 = vmatpush2.bf16.msra.mxu0 0
        %1247 = vmatprep.subr.bf16.mxu0 0
        %1248 = vmatpush2.bf16.msra.mxu0 0
        %1249 = vmatprep.subr.bf16.mxu0 0
        %1250 = vmatpush2.bf16.msra.mxu0 0
        %1251 = vmatprep.subr.bf16.mxu0 0
        %1252 = vmatpush2.bf16.msra.mxu0 0
        %1253 = vmatprep.mubr.bf16.mxu0 0
        %1254 = vmatmul.mubr.bf16.gmra.mxu0 %v1150
        %v1255 = vpop.f32.mrf.mxu0
        %v1256 = vadd.f32 0.0, %v1255
        %v1257 = vpop.f32.mrf.mxu0
        %v1258 = vpop.f32.mrf.mxu0
        %v1259 = vadd.f32 0.0, %v1258
        %v1260 = vpop.f32.mrf.mxu0
        %1261 = vmatprep.mubr.bf16.mxu0 0
        %1262 = vmatmul.mubr.bf16.gmra.mxu0 %v1153
        %v1263 = vpop.f32.mrf.mxu0
        %v1264 = vpop.f32.mrf.mxu0
        %v1265 = vpop.f32.mrf.mxu0
        %v1266 = vadd.f32 0.0, %v1265
        %v1267 = vpop.f32.mrf.mxu0
        %1268 = vmatprep.mubr.bf16.mxu0 0
        %1269 = vmatmul.mubr.bf16.gmra.mxu0 %v1156
        %v1270 = vpop.f32.mrf.mxu0
        %v1271 = vadd.f32 0.0, %v1270
        %v1272 = vpop.f32.mrf.mxu0
        %v1273 = vpop.f32.mrf.mxu0
        %v1274 = vpop.f32.mrf.mxu0
        %1275 = vmatprep.mubr.bf16.mxu0 0
        %1276 = vmatmul.mubr.bf16.gmra.mxu0 %v1159
        %v1277 = vpop.f32.mrf.mxu0
        %v1278 = vadd.f32 0.0, %v1277
        %v1279 = vpop.f32.mrf.mxu0
        %v1280 = vpop.f32.mrf.mxu0
        %v1281 = vadd.f32 0.0, %v1280
        %v1282 = vpop.f32.mrf.mxu0
        %1283 = vmatprep.mubr.bf16.mxu0 0
        %1284 = vmatmul.mubr.bf16.gmra.mxu0 %v1162
        %v1285 = vpop.f32.mrf.mxu0
        %v1286 = vpop.f32.mrf.mxu0
        %v1287 = vpop.f32.mrf.mxu0
        %v1288 = vadd.f32 0.0, %v1287
        %v1289 = vpop.f32.mrf.mxu0
        %1290 = vmatprep.mubr.bf16.mxu0 0
        %1291 = vmatmul.mubr.bf16.gmra.mxu0 %v1165
        %v1292 = vpop.f32.mrf.mxu0
        %v1293 = vadd.f32 0.0, %v1292
        %v1294 = vpop.f32.mrf.mxu0
        %v1295 = vpop.f32.mrf.mxu0
        %v1296 = vpop.f32.mrf.mxu0
        %1297 = vmatprep.mubr.bf16.mxu0 0
        %1298 = vmatmul.mubr.bf16.gmra.mxu0 %v1168
        %v1299 = vpop.f32.mrf.mxu0
        %v1300 = vadd.f32 0.0, %v1299
        %v1301 = vpop.f32.mrf.mxu0
        %v1302 = vpop.f32.mrf.mxu0
        %v1303 = vadd.f32 0.0, %v1302
        %v1304 = vpop.f32.mrf.mxu0
        %1305 = vmatprep.mubr.bf16.mxu0 0
        %1306 = vmatmul.mubr.bf16.gmra.mxu0 %v1171
        %v1307 = vpop.f32.mrf.mxu0
        %v1308 = vpop.f32.mrf.mxu0
        %v1309 = vpop.f32.mrf.mxu0
        %v1310 = vadd.f32 0.0, %v1309
        %v1311 = vpop.f32.mrf.mxu0
        %1312 = vmatprep.mubr.bf16.mxu0 0
        %1313 = vmatmul.mubr.bf16.gmra.mxu0 %v1174
        %v1314 = vpop.f32.mrf.mxu0
        %v1315 = vadd.f32 0.0, %v1314
        %v1316 = vpop.f32.mrf.mxu0
        %v1317 = vpop.f32.mrf.mxu0
        %v1318 = vpop.f32.mrf.mxu0
        %1319 = vmatprep.mubr.bf16.mxu0 0
        %1320 = vmatmul.mubr.bf16.gmra.mxu0 %v1177
        %v1321 = vpop.f32.mrf.mxu0
        %v1322 = vadd.f32 0.0, %v1321
        %v1323 = vpop.f32.mrf.mxu0
        %v1324 = vpop.f32.mrf.mxu0
        %v1325 = vadd.f32 0.0, %v1324
        %v1326 = vpop.f32.mrf.mxu0
        %1327 = vmatprep.mubr.bf16.mxu0 0
        %1328 = vmatmul.mubr.bf16.gmra.mxu0 %v1180
        %v1329 = vpop.f32.mrf.mxu0
        %v1330 = vpop.f32.mrf.mxu0
        %v1331 = vpop.f32.mrf.mxu0
        %v1332 = vadd.f32 0.0, %v1331
        %v1333 = vpop.f32.mrf.mxu0
        %1334 = vmatprep.mubr.bf16.mxu0 0
        %1335 = vmatmul.mubr.bf16.gmra.mxu0 %v1183
        %v1336 = vpop.f32.mrf.mxu0
        %v1337 = vadd.f32 0.0, %v1336
        %v1338 = vpop.f32.mrf.mxu0
        %v1339 = vpop.f32.mrf.mxu0
        %v1340 = vpop.f32.mrf.mxu0
        %1341 = vmatprep.mubr.bf16.mxu0 0
        %1342 = vmatmul.mubr.bf16.gmra.mxu0 %v1186
        %v1343 = vpop.f32.mrf.mxu0
        %v1344 = vadd.f32 0.0, %v1343
        %v1345 = vpop.f32.mrf.mxu0
        %v1346 = vpop.f32.mrf.mxu0
        %v1347 = vadd.f32 0.0, %v1346
        %v1348 = vpop.f32.mrf.mxu0
        %1349 = vmatprep.mubr.bf16.mxu0 0
        %1350 = vmatmul.mubr.bf16.gmra.mxu0 %v1189
        %v1351 = vpop.f32.mrf.mxu0
        %v1352 = vpop.f32.mrf.mxu0
        %v1353 = vpop.f32.mrf.mxu0
        %v1354 = vadd.f32 0.0, %v1353
        %v1355 = vpop.f32.mrf.mxu0
        %1356 = vmatprep.mubr.bf16.mxu0 0
        %1357 = vmatmul.mubr.bf16.gmra.mxu0 %v1192
        %v1358 = vpop.f32.mrf.mxu0
        %v1359 = vadd.f32 0.0, %v1358
        %v1360 = vpop.f32.mrf.mxu0
        %v1361 = vpop.f32.mrf.mxu0
        %v1362 = vpop.f32.mrf.mxu0
        %1363 = vmatprep.mubr.bf16.mxu0 0
        %1364 = vmatmul.mubr.bf16.gmra.mxu0 %v1195
        %v1365 = vpop.f32.mrf.mxu0
        %v1366 = vadd.f32 0.0, %v1365
        %v1367 = vpop.f32.mrf.mxu0
        %v1368 = vpop.f32.mrf.mxu0
        %v1369 = vadd.f32 0.0, %v1368
        %v1370 = vpop.f32.mrf.mxu0
        %1371 = vmatprep.mubr.bf16.mxu0 0
        %1372 = vmatmul.mubr.bf16.gmra.mxu0 %v1198
        %v1373 = vpop.f32.mrf.mxu0
        %v1374 = vpop.f32.mrf.mxu0
        %v1375 = vpop.f32.mrf.mxu0
        %v1376 = vadd.f32 0.0, %v1375
        %v1377 = vpop.f32.mrf.mxu0
        %1378 = vmatprep.mubr.bf16.mxu0 0
        %1379 = vmatmul.mubr.bf16.gmra.mxu0 %v1201
        %v1380 = vpop.f32.mrf.mxu0
        %v1381 = vadd.f32 0.0, %v1380
        %v1382 = vpop.f32.mrf.mxu0
        %v1383 = vpop.f32.mrf.mxu0
        %v1384 = vpop.f32.mrf.mxu0
        %1385 = vmatprep.mubr.bf16.mxu0 0
        %1386 = vmatmul.mubr.bf16.gmra.mxu0 %v1204
        %v1387 = vpop.f32.mrf.mxu0
        %v1388 = vadd.f32 0.0, %v1387
        %v1389 = vpop.f32.mrf.mxu0
        %v1390 = vpop.f32.mrf.mxu0
        %v1391 = vadd.f32 0.0, %v1390
        %v1392 = vpop.f32.mrf.mxu0
        %1393 = vmatprep.mubr.bf16.mxu0 0
        %1394 = vmatmul.mubr.bf16.gmra.mxu0 %v1207
        %v1395 = vpop.f32.mrf.mxu0
        %v1396 = vpop.f32.mrf.mxu0
        %v1397 = vpop.f32.mrf.mxu0
        %v1398 = vadd.f32 0.0, %v1397
        %v1399 = vpop.f32.mrf.mxu0
        %1400 = vmatprep.mubr.bf16.mxu0 0
        %1401 = vmatmul.mubr.bf16.gmra.mxu0 %v1210
        %v1402 = vpop.f32.mrf.mxu0
        %v1403 = vadd.f32 0.0, %v1402
        %v1404 = vpop.f32.mrf.mxu0
        %v1405 = vpop.f32.mrf.mxu0
        %v1406 = vpop.f32.mrf.mxu0
        %1407 = vmatprep.mubr.bf16.mxu0 0
        %1408 = vmatmul.mubr.bf16.gmra.mxu0 %v1213
        %v1409 = vpop.f32.mrf.mxu0
        %v1410 = vadd.f32 0.0, %v1409
        %v1411 = vpop.f32.mrf.mxu0
        %v1412 = vpop.f32.mrf.mxu0
        %v1413 = vadd.f32 0.0, %v1412
        %v1414 = vpop.f32.mrf.mxu0
        %1415 = vmatprep.mubr.bf16.mxu0 0
        %1416 = vmatmul.mubr.bf16.gmra.mxu0 %v1216
        %v1417 = vpop.f32.mrf.mxu0
        %v1418 = vpop.f32.mrf.mxu0
        %v1419 = vpop.f32.mrf.mxu0
        %v1420 = vadd.f32 0.0, %v1419
        %v1421 = vpop.f32.mrf.mxu0
        %1422 = vmatprep.mubr.bf16.mxu0 0
        %1423 = vmatmul.mubr.bf16.gmra.mxu0 %v1219
        %v1424 = vpop.f32.mrf.mxu0
        %v1425 = vadd.f32 0.0, %v1424
        %v1426 = vpop.f32.mrf.mxu0
        %v1427 = vpop.f32.mrf.mxu0
        %v1428 = vpop.f32.mrf.mxu0
        %1429 = vdwg.mxu0
        %v1430 = vadd.f32 %v938, %v1256
        %v1431 = vadd.f32 %v941, %v1259
        %v1432 = vadd.f32 %v948, %v1266
        %v1433 = vadd.f32 %v953, %v1271
        %v1434 = vadd.f32 %v960, %v1278
        %v1435 = vadd.f32 %v963, %v1281
        %v1436 = vadd.f32 %v970, %v1288
        %v1437 = vadd.f32 %v975, %v1293
        %v1438 = vadd.f32 %v982, %v1300
        %v1439 = vadd.f32 %v985, %v1303
        %v1440 = vadd.f32 %v992, %v1310
        %v1441 = vadd.f32 %v997, %v1315
        %v1442 = vadd.f32 %v1004, %v1322
        %v1443 = vadd.f32 %v1007, %v1325
        %v1444 = vadd.f32 %v1014, %v1332
        %v1445 = vadd.f32 %v1019, %v1337
        %v1446 = vadd.f32 %v1026, %v1344
        %v1447 = vadd.f32 %v1029, %v1347
        %v1448 = vadd.f32 %v1036, %v1354
        %v1449 = vadd.f32 %v1041, %v1359
        %v1450 = vadd.f32 %v1048, %v1366
        %v1451 = vadd.f32 %v1051, %v1369
        %v1452 = vadd.f32 %v1058, %v1376
        %v1453 = vadd.f32 %v1063, %v1381
        %v1454 = vadd.f32 %v1070, %v1388
        %v1455 = vadd.f32 %v1073, %v1391
        %v1456 = vadd.f32 %v1080, %v1398
        %v1457 = vadd.f32 %v1085, %v1403
        %v1458 = vadd.f32 %v1092, %v1410
        %v1459 = vadd.f32 %v1095, %v1413
        %v1460 = vadd.f32 %v1102, %v1420
        %v1461 = vadd.f32 %v1107, %v1425
        %s1462 = scalar_lea.vmem %s1, 24
        %v1463 = vld [vmem:[%s1462] sm:$0xf]
        %v1464 = vld [vmem:[%s1462 + $0x4] sm:$0xf]
        %v1466 = vunpack.c.l.b16 %v232
        %v1467 = vpack.c.b16 %v1466, %v1466
        %v1468 = vshrl.u32 %v1119, 16
        %v1470 = vshll.u32 %v1119, 16
        %v1472 = vrot.slane %v1470, 1
        %v1473 = vor.u32 %v1468, %v1472
        %v1474 = vshll.u32 %v1120, 16
        %v1476 = vrot.slane %v1474, 1
        %v1477 = vsel %vm364, %v1473, %v1476
        %v1478 = vshrl.u32 %v1120, 16
        %v1480 = vor.u32 %v1478, %v1476
        %v1481 = vshll.u32 %v1121, 16
        %v1483 = vrot.slane %v1481, 1
        %v1484 = vsel %vm364, %v1480, %v1483
        %v1485 = vshrl.u32 %v1121, 16
        %v1487 = vor.u32 %v1485, %v1483
        %v1488 = vshll.u32 %v1122, 16
        %v1490 = vrot.slane %v1488, 1
        %v1491 = vsel %vm364, %v1487, %v1490
        %v1492 = vshrl.u32 %v1122, 16
        %v1494 = vor.u32 %v1492, %v1490
        %v1495 = vshll.u32 %v1123, 16
        %v1497 = vrot.slane %v1495, 1
        %v1498 = vsel %vm364, %v1494, %v1497
        %v1499 = vshrl.u32 %v1123, 16
        %v1501 = vor.u32 %v1499, %v1497
        %v1502 = vshll.u32 %v1124, 16
        %v1504 = vrot.slane %v1502, 1
        %v1505 = vsel %vm364, %v1501, %v1504
        %v1506 = vshrl.u32 %v1124, 16
        %v1508 = vor.u32 %v1506, %v1504
        %v1509 = vshll.u32 %v1125, 16
        %v1511 = vrot.slane %v1509, 1
        %v1512 = vsel %vm364, %v1508, %v1511
        %v1513 = vshrl.u32 %v1125, 16
        %v1515 = vor.u32 %v1513, %v1511
        %v1516 = vshll.u32 %v1126, 16
        %v1518 = vrot.slane %v1516, 1
        %v1519 = vsel %vm364, %v1515, %v1518
        %v1520 = vshrl.u32 %v1126, 16
        %v1522 = vor.u32 %v1520, %v1518
        %v1523 = vshll.u32 %v1127, 16
        %v1525 = vrot.slane %v1523, 1
        %v1526 = vsel %vm364, %v1522, %v1525
        %v1527 = vshrl.u32 %v1127, 16
        %v1529 = vor.u32 %v1527, %v1525
        %v1530 = vshll.u32 %v1128, 16
        %v1532 = vrot.slane %v1530, 1
        %v1533 = vsel %vm364, %v1529, %v1532
        %v1534 = vshrl.u32 %v1128, 16
        %v1536 = vor.u32 %v1534, %v1532
        %v1537 = vshll.u32 %v1129, 16
        %v1539 = vrot.slane %v1537, 1
        %v1540 = vsel %vm364, %v1536, %v1539
        %v1541 = vshrl.u32 %v1129, 16
        %v1543 = vor.u32 %v1541, %v1539
        %v1544 = vshll.u32 %v1130, 16
        %v1546 = vrot.slane %v1544, 1
        %v1547 = vsel %vm364, %v1543, %v1546
        %v1548 = vshrl.u32 %v1130, 16
        %v1550 = vor.u32 %v1548, %v1546
        %v1551 = vshll.u32 %v1131, 16
        %v1553 = vrot.slane %v1551, 1
        %v1554 = vsel %vm364, %v1550, %v1553
        %v1555 = vshrl.u32 %v1131, 16
        %v1557 = vor.u32 %v1555, %v1553
        %v1558 = vshll.u32 %v1132, 16
        %v1560 = vrot.slane %v1558, 1
        %v1561 = vsel %vm364, %v1557, %v1560
        %v1562 = vshrl.u32 %v1132, 16
        %v1564 = vor.u32 %v1562, %v1560
        %v1565 = vshll.u32 %v1133, 16
        %v1567 = vrot.slane %v1565, 1
        %v1568 = vsel %vm364, %v1564, %v1567
        %v1569 = vshrl.u32 %v1133, 16
        %v1571 = vor.u32 %v1569, %v1567
        %v1572 = vshll.u32 %v1134, 16
        %v1574 = vrot.slane %v1572, 1
        %v1575 = vsel %vm364, %v1571, %v1574
        %v1576 = vshrl.u32 %v1134, 16
        %v1578 = vor.u32 %v1576, %v1574
        %v1579 = vshll.u32 %v1135, 16
        %v1581 = vrot.slane %v1579, 1
        %v1582 = vsel %vm364, %v1578, %v1581
        %v1583 = vshrl.u32 %v1135, 16
        %v1585 = vor.u32 %v1583, %v1581
        %v1586 = vshll.u32 %v1136, 16
        %v1588 = vrot.slane %v1586, 1
        %v1589 = vsel %vm364, %v1585, %v1588
        %v1590 = vshrl.u32 %v1136, 16
        %v1592 = vor.u32 %v1590, %v1588
        %v1593 = vshll.u32 %v1137, 16
        %v1595 = vrot.slane %v1593, 1
        %v1596 = vsel %vm364, %v1592, %v1595
        %v1597 = vshrl.u32 %v1137, 16
        %v1599 = vor.u32 %v1597, %v1595
        %v1600 = vshll.u32 %v1138, 16
        %v1602 = vrot.slane %v1600, 1
        %v1603 = vsel %vm364, %v1599, %v1602
        %v1604 = vshrl.u32 %v1138, 16
        %v1606 = vor.u32 %v1604, %v1602
        %v1607 = vshll.u32 %v1139, 16
        %v1609 = vrot.slane %v1607, 1
        %v1610 = vsel %vm364, %v1606, %v1609
        %v1611 = vshrl.u32 %v1139, 16
        %v1613 = vor.u32 %v1611, %v1609
        %v1614 = vshll.u32 %v1140, 16
        %v1616 = vrot.slane %v1614, 1
        %v1617 = vsel %vm364, %v1613, %v1616
        %v1618 = vshrl.u32 %v1140, 16
        %v1620 = vor.u32 %v1618, %v1616
        %v1621 = vshll.u32 %v1141, 16
        %v1623 = vrot.slane %v1621, 1
        %v1624 = vsel %vm364, %v1620, %v1623
        %v1625 = vshrl.u32 %v1141, 16
        %v1627 = vor.u32 %v1625, %v1623
        %v1628 = vshll.u32 %v1142, 16
        %v1630 = vrot.slane %v1628, 1
        %v1631 = vsel %vm364, %v1627, %v1630
        %v1632 = vshrl.u32 %v1142, 16
        %v1634 = vor.u32 %v1632, %v1630
        %v1636 = vshll.u32 %v1467, 16
        %v1638 = vrot.slane %v1636, 1
        %v1639 = vsel %vm364, %v1634, %v1638
        %v1642 = vunpack.c.l.b16 %v1463
        %v1643 = vunpack.c.l.b16 %v1464
        %v1644 = vpack.c.b16 %v1643, %v1642
        %v1647 = vsel %vm567, %v1477, 0
        %v1650 = vsel %vm567, %v1484, 0
        %v1653 = vsel %vm567, %v1491, 0
        %v1656 = vsel %vm567, %v1498, 0
        %v1659 = vsel %vm567, %v1505, 0
        %v1662 = vsel %vm567, %v1512, 0
        %v1665 = vsel %vm567, %v1519, 0
        %v1668 = vsel %vm567, %v1526, 0
        %v1671 = vsel %vm567, %v1533, 0
        %v1674 = vsel %vm567, %v1540, 0
        %v1677 = vsel %vm567, %v1547, 0
        %v1680 = vsel %vm567, %v1554, 0
        %v1683 = vsel %vm567, %v1561, 0
        %v1686 = vsel %vm567, %v1568, 0
        %v1689 = vsel %vm567, %v1575, 0
        %v1692 = vsel %vm567, %v1582, 0
        %v1695 = vsel %vm567, %v1589, 0
        %v1698 = vsel %vm567, %v1596, 0
        %v1701 = vsel %vm567, %v1603, 0
        %v1704 = vsel %vm567, %v1610, 0
        %v1707 = vsel %vm567, %v1617, 0
        %v1710 = vsel %vm567, %v1624, 0
        %v1713 = vsel %vm567, %v1631, 0
        %v1716 = vsel %vm567, %v1639, 0
        %1718 = vmatprep.subr.bf16.mxu0 0
        %1719 = vmatpush1.bf16.msra.mxu0 0
        %1720 = vmatprep.subr.bf16.mxu0 0
        %1721 = vmatpush1.bf16.msra.mxu0 0
        %1722 = vmatprep.subr.bf16.mxu0 0
        %1723 = vmatpush1.bf16.msra.mxu0 0
        %1724 = vmatprep.subr.bf16.mxu0 0
        %1725 = vmatpush1.bf16.msra.mxu0 0
        %1726 = vmatprep.subr.bf16.mxu0 0
        %1727 = vmatpush1.bf16.msra.mxu0 0
        %1728 = vmatprep.subr.bf16.mxu0 0
        %1729 = vmatpush1.bf16.msra.mxu0 0
        %1730 = vmatprep.subr.bf16.mxu0 0
        %1731 = vmatpush1.bf16.msra.mxu0 0
        %1732 = vmatprep.subr.bf16.mxu0 0
        %1733 = vmatpush1.bf16.msra.mxu0 %v1644
        %1734 = vmatprep.subr.bf16.mxu0 0
        %1735 = vmatpush2.bf16.msra.mxu0 0
        %1736 = vmatprep.subr.bf16.mxu0 0
        %1737 = vmatpush2.bf16.msra.mxu0 0
        %1738 = vmatprep.subr.bf16.mxu0 0
        %1739 = vmatpush2.bf16.msra.mxu0 0
        %1740 = vmatprep.subr.bf16.mxu0 0
        %1741 = vmatpush2.bf16.msra.mxu0 0
        %1742 = vmatprep.subr.bf16.mxu0 0
        %1743 = vmatpush2.bf16.msra.mxu0 0
        %1744 = vmatprep.subr.bf16.mxu0 0
        %1745 = vmatpush2.bf16.msra.mxu0 0
        %1746 = vmatprep.subr.bf16.mxu0 0
        %1747 = vmatpush2.bf16.msra.mxu0 0
        %1748 = vmatprep.subr.bf16.mxu0 0
        %1749 = vmatpush2.bf16.msra.mxu0 0
        %1750 = vmatprep.mubr.bf16.mxu0 0
        %1751 = vmatmul.mubr.bf16.gmra.mxu0 %v1647
        %v1752 = vpop.f32.mrf.mxu0
        %v1753 = vadd.f32 0.0, %v1752
        %v1754 = vpop.f32.mrf.mxu0
        %v1755 = vpop.f32.mrf.mxu0
        %v1756 = vadd.f32 0.0, %v1755
        %v1757 = vpop.f32.mrf.mxu0
        %1758 = vmatprep.mubr.bf16.mxu0 0
        %1759 = vmatmul.mubr.bf16.gmra.mxu0 %v1650
        %v1760 = vpop.f32.mrf.mxu0
        %v1761 = vpop.f32.mrf.mxu0
        %v1762 = vpop.f32.mrf.mxu0
        %v1763 = vadd.f32 0.0, %v1762
        %v1764 = vpop.f32.mrf.mxu0
        %1765 = vmatprep.mubr.bf16.mxu0 0
        %1766 = vmatmul.mubr.bf16.gmra.mxu0 %v1653
        %v1767 = vpop.f32.mrf.mxu0
        %v1768 = vadd.f32 0.0, %v1767
        %v1769 = vpop.f32.mrf.mxu0
        %v1770 = vpop.f32.mrf.mxu0
        %v1771 = vpop.f32.mrf.mxu0
        %1772 = vmatprep.mubr.bf16.mxu0 0
        %1773 = vmatmul.mubr.bf16.gmra.mxu0 %v1656
        %v1774 = vpop.f32.mrf.mxu0
        %v1775 = vadd.f32 0.0, %v1774
        %v1776 = vpop.f32.mrf.mxu0
        %v1777 = vpop.f32.mrf.mxu0
        %v1778 = vadd.f32 0.0, %v1777
        %v1779 = vpop.f32.mrf.mxu0
        %1780 = vmatprep.mubr.bf16.mxu0 0
        %1781 = vmatmul.mubr.bf16.gmra.mxu0 %v1659
        %v1782 = vpop.f32.mrf.mxu0
        %v1783 = vpop.f32.mrf.mxu0
        %v1784 = vpop.f32.mrf.mxu0
        %v1785 = vadd.f32 0.0, %v1784
        %v1786 = vpop.f32.mrf.mxu0
        %1787 = vmatprep.mubr.bf16.mxu0 0
        %1788 = vmatmul.mubr.bf16.gmra.mxu0 %v1662
        %v1789 = vpop.f32.mrf.mxu0
        %v1790 = vadd.f32 0.0, %v1789
        %v1791 = vpop.f32.mrf.mxu0
        %v1792 = vpop.f32.mrf.mxu0
        %v1793 = vpop.f32.mrf.mxu0
        %1794 = vmatprep.mubr.bf16.mxu0 0
        %1795 = vmatmul.mubr.bf16.gmra.mxu0 %v1665
        %v1796 = vpop.f32.mrf.mxu0
        %v1797 = vadd.f32 0.0, %v1796
        %v1798 = vpop.f32.mrf.mxu0
        %v1799 = vpop.f32.mrf.mxu0
        %v1800 = vadd.f32 0.0, %v1799
        %v1801 = vpop.f32.mrf.mxu0
        %1802 = vmatprep.mubr.bf16.mxu0 0
        %1803 = vmatmul.mubr.bf16.gmra.mxu0 %v1668
        %v1804 = vpop.f32.mrf.mxu0
        %v1805 = vpop.f32.mrf.mxu0
        %v1806 = vpop.f32.mrf.mxu0
        %v1807 = vadd.f32 0.0, %v1806
        %v1808 = vpop.f32.mrf.mxu0
        %1809 = vmatprep.mubr.bf16.mxu0 0
        %1810 = vmatmul.mubr.bf16.gmra.mxu0 %v1671
        %v1811 = vpop.f32.mrf.mxu0
        %v1812 = vadd.f32 0.0, %v1811
        %v1813 = vpop.f32.mrf.mxu0
        %v1814 = vpop.f32.mrf.mxu0
        %v1815 = vpop.f32.mrf.mxu0
        %1816 = vmatprep.mubr.bf16.mxu0 0
        %1817 = vmatmul.mubr.bf16.gmra.mxu0 %v1674
        %v1818 = vpop.f32.mrf.mxu0
        %v1819 = vadd.f32 0.0, %v1818
        %v1820 = vpop.f32.mrf.mxu0
        %v1821 = vpop.f32.mrf.mxu0
        %v1822 = vadd.f32 0.0, %v1821
        %v1823 = vpop.f32.mrf.mxu0
        %1824 = vmatprep.mubr.bf16.mxu0 0
        %1825 = vmatmul.mubr.bf16.gmra.mxu0 %v1677
        %v1826 = vpop.f32.mrf.mxu0
        %v1827 = vpop.f32.mrf.mxu0
        %v1828 = vpop.f32.mrf.mxu0
        %v1829 = vadd.f32 0.0, %v1828
        %v1830 = vpop.f32.mrf.mxu0
        %1831 = vmatprep.mubr.bf16.mxu0 0
        %1832 = vmatmul.mubr.bf16.gmra.mxu0 %v1680
        %v1833 = vpop.f32.mrf.mxu0
        %v1834 = vadd.f32 0.0, %v1833
        %v1835 = vpop.f32.mrf.mxu0
        %v1836 = vpop.f32.mrf.mxu0
        %v1837 = vpop.f32.mrf.mxu0
        %1838 = vmatprep.mubr.bf16.mxu0 0
        %1839 = vmatmul.mubr.bf16.gmra.mxu0 %v1683
        %v1840 = vpop.f32.mrf.mxu0
        %v1841 = vadd.f32 0.0, %v1840
        %v1842 = vpop.f32.mrf.mxu0
        %v1843 = vpop.f32.mrf.mxu0
        %v1844 = vadd.f32 0.0, %v1843
        %v1845 = vpop.f32.mrf.mxu0
        %1846 = vmatprep.mubr.bf16.mxu0 0
        %1847 = vmatmul.mubr.bf16.gmra.mxu0 %v1686
        %v1848 = vpop.f32.mrf.mxu0
        %v1849 = vpop.f32.mrf.mxu0
        %v1850 = vpop.f32.mrf.mxu0
        %v1851 = vadd.f32 0.0, %v1850
        %v1852 = vpop.f32.mrf.mxu0
        %1853 = vmatprep.mubr.bf16.mxu0 0
        %1854 = vmatmul.mubr.bf16.gmra.mxu0 %v1689
        %v1855 = vpop.f32.mrf.mxu0
        %v1856 = vadd.f32 0.0, %v1855
        %v1857 = vpop.f32.mrf.mxu0
        %v1858 = vpop.f32.mrf.mxu0
        %v1859 = vpop.f32.mrf.mxu0
        %1860 = vmatprep.mubr.bf16.mxu0 0
        %1861 = vmatmul.mubr.bf16.gmra.mxu0 %v1692
        %v1862 = vpop.f32.mrf.mxu0
        %v1863 = vadd.f32 0.0, %v1862
        %v1864 = vpop.f32.mrf.mxu0
        %v1865 = vpop.f32.mrf.mxu0
        %v1866 = vadd.f32 0.0, %v1865
        %v1867 = vpop.f32.mrf.mxu0
        %1868 = vmatprep.mubr.bf16.mxu0 0
        %1869 = vmatmul.mubr.bf16.gmra.mxu0 %v1695
        %v1870 = vpop.f32.mrf.mxu0
        %v1871 = vpop.f32.mrf.mxu0
        %v1872 = vpop.f32.mrf.mxu0
        %v1873 = vadd.f32 0.0, %v1872
        %v1874 = vpop.f32.mrf.mxu0
        %1875 = vmatprep.mubr.bf16.mxu0 0
        %1876 = vmatmul.mubr.bf16.gmra.mxu0 %v1698
        %v1877 = vpop.f32.mrf.mxu0
        %v1878 = vadd.f32 0.0, %v1877
        %v1879 = vpop.f32.mrf.mxu0
        %v1880 = vpop.f32.mrf.mxu0
        %v1881 = vpop.f32.mrf.mxu0
        %1882 = vmatprep.mubr.bf16.mxu0 0
        %1883 = vmatmul.mubr.bf16.gmra.mxu0 %v1701
        %v1884 = vpop.f32.mrf.mxu0
        %v1885 = vadd.f32 0.0, %v1884
        %v1886 = vpop.f32.mrf.mxu0
        %v1887 = vpop.f32.mrf.mxu0
        %v1888 = vadd.f32 0.0, %v1887
        %v1889 = vpop.f32.mrf.mxu0
        %1890 = vmatprep.mubr.bf16.mxu0 0
        %1891 = vmatmul.mubr.bf16.gmra.mxu0 %v1704
        %v1892 = vpop.f32.mrf.mxu0
        %v1893 = vpop.f32.mrf.mxu0
        %v1894 = vpop.f32.mrf.mxu0
        %v1895 = vadd.f32 0.0, %v1894
        %v1896 = vpop.f32.mrf.mxu0
        %1897 = vmatprep.mubr.bf16.mxu0 0
        %1898 = vmatmul.mubr.bf16.gmra.mxu0 %v1707
        %v1899 = vpop.f32.mrf.mxu0
        %v1900 = vadd.f32 0.0, %v1899
        %v1901 = vpop.f32.mrf.mxu0
        %v1902 = vpop.f32.mrf.mxu0
        %v1903 = vpop.f32.mrf.mxu0
        %1904 = vmatprep.mubr.bf16.mxu0 0
        %1905 = vmatmul.mubr.bf16.gmra.mxu0 %v1710
        %v1906 = vpop.f32.mrf.mxu0
        %v1907 = vadd.f32 0.0, %v1906
        %v1908 = vpop.f32.mrf.mxu0
        %v1909 = vpop.f32.mrf.mxu0
        %v1910 = vadd.f32 0.0, %v1909
        %v1911 = vpop.f32.mrf.mxu0
        %1912 = vmatprep.mubr.bf16.mxu0 0
        %1913 = vmatmul.mubr.bf16.gmra.mxu0 %v1713
        %v1914 = vpop.f32.mrf.mxu0
        %v1915 = vpop.f32.mrf.mxu0
        %v1916 = vpop.f32.mrf.mxu0
        %v1917 = vadd.f32 0.0, %v1916
        %v1918 = vpop.f32.mrf.mxu0
        %1919 = vmatprep.mubr.bf16.mxu0 0
        %1920 = vmatmul.mubr.bf16.gmra.mxu0 %v1716
        %v1921 = vpop.f32.mrf.mxu0
        %v1922 = vadd.f32 0.0, %v1921
        %v1923 = vpop.f32.mrf.mxu0
        %v1924 = vpop.f32.mrf.mxu0
        %v1925 = vpop.f32.mrf.mxu0
        %1926 = vdwg.mxu0
        %v1927 = vadd.f32 %v1430, %v1753
        %v1928 = vadd.f32 %v1431, %v1756
        %v1929 = vadd.f32 %v1432, %v1763
        %v1930 = vadd.f32 %v1433, %v1768
        %v1931 = vadd.f32 %v1434, %v1775
        %v1932 = vadd.f32 %v1435, %v1778
        %v1933 = vadd.f32 %v1436, %v1785
        %v1934 = vadd.f32 %v1437, %v1790
        %v1935 = vadd.f32 %v1438, %v1797
        %v1936 = vadd.f32 %v1439, %v1800
        %v1937 = vadd.f32 %v1440, %v1807
        %v1938 = vadd.f32 %v1441, %v1812
        %v1939 = vadd.f32 %v1442, %v1819
        %v1940 = vadd.f32 %v1443, %v1822
        %v1941 = vadd.f32 %v1444, %v1829
        %v1942 = vadd.f32 %v1445, %v1834
        %v1943 = vadd.f32 %v1446, %v1841
        %v1944 = vadd.f32 %v1447, %v1844
        %v1945 = vadd.f32 %v1448, %v1851
        %v1946 = vadd.f32 %v1449, %v1856
        %v1947 = vadd.f32 %v1450, %v1863
        %v1948 = vadd.f32 %v1451, %v1866
        %v1949 = vadd.f32 %v1452, %v1873
        %v1950 = vadd.f32 %v1453, %v1878
        %v1951 = vadd.f32 %v1454, %v1885
        %v1952 = vadd.f32 %v1455, %v1888
        %v1953 = vadd.f32 %v1456, %v1895
        %v1954 = vadd.f32 %v1457, %v1900
        %v1955 = vadd.f32 %v1458, %v1907
        %v1956 = vadd.f32 %v1459, %v1910
        %v1957 = vadd.f32 %v1460, %v1917
        %v1958 = vadd.f32 %v1461, %v1922
        %v1959 = vadd.f32 %v1927, %v1928
        %v1960 = vadd.f32 %v1959, %v1929
        %v1961 = vadd.f32 %v1960, %v1930
        %v1962 = vadd.f32 %v1961, %v1931
        %v1963 = vadd.f32 %v1962, %v1932
        %v1964 = vadd.f32 %v1963, %v1933
        %v1965 = vadd.f32 %v1964, %v1934
        %v1966 = vadd.f32 %v1965, %v1935
        %v1967 = vadd.f32 %v1966, %v1936
        %v1968 = vadd.f32 %v1967, %v1937
        %v1969 = vadd.f32 %v1968, %v1938
        %v1970 = vadd.f32 %v1969, %v1939
        %v1971 = vadd.f32 %v1970, %v1940
        %v1972 = vadd.f32 %v1971, %v1941
        %v1973 = vadd.f32 %v1972, %v1942
        %v1974 = vadd.f32 %v1973, %v1943
        %v1975 = vadd.f32 %v1974, %v1944
        %v1976 = vadd.f32 %v1975, %v1945
        %v1977 = vadd.f32 %v1976, %v1946
        %v1978 = vadd.f32 %v1977, %v1947
        %v1979 = vadd.f32 %v1978, %v1948
        %v1980 = vadd.f32 %v1979, %v1949
        %v1981 = vadd.f32 %v1980, %v1950
        %v1982 = vadd.f32 %v1981, %v1951
        %v1983 = vadd.f32 %v1982, %v1952
        %v1984 = vadd.f32 %v1983, %v1953
        %v1985 = vadd.f32 %v1984, %v1954
        %v1986 = vadd.f32 %v1985, %v1955
        %v1987 = vadd.f32 %v1986, %v1956
        %v1988 = vadd.f32 %v1987, %v1957
        %v1989 = vadd.f32 %v1988, %v1958
        %v1990 = vrot.slane %v1989, 4
        %v1991 = vadd.f32 %v1989, %v1990
        %v1992 = vrot.slane %v1991, 2
        %v1993 = vadd.f32 %v1991, %v1992
        %v1994 = vrot.slane %v1993, 1
        %v1995 = vadd.f32 %v1993, %v1994
        %v1996 = vadd.f32 %v1995, 0.0
        %v1997 = vmul.f32 %v1927, %v1927
        %v1998 = vmul.f32 %v1928, %v1928
        %v1999 = vmul.f32 %v1929, %v1929
        %v2000 = vmul.f32 %v1930, %v1930
        %v2001 = vmul.f32 %v1931, %v1931
        %v2002 = vmul.f32 %v1932, %v1932
        %v2003 = vmul.f32 %v1933, %v1933
        %v2004 = vmul.f32 %v1934, %v1934
        %v2005 = vmul.f32 %v1935, %v1935
        %v2006 = vmul.f32 %v1936, %v1936
        %v2007 = vmul.f32 %v1937, %v1937
        %v2008 = vmul.f32 %v1938, %v1938
        %v2009 = vmul.f32 %v1939, %v1939
        %v2010 = vmul.f32 %v1940, %v1940
        %v2011 = vmul.f32 %v1941, %v1941
        %v2012 = vmul.f32 %v1942, %v1942
        %v2013 = vmul.f32 %v1943, %v1943
        %v2014 = vmul.f32 %v1944, %v1944
        %v2015 = vmul.f32 %v1945, %v1945
        %v2016 = vmul.f32 %v1946, %v1946
        %v2017 = vmul.f32 %v1947, %v1947
        %v2018 = vmul.f32 %v1948, %v1948
        %v2019 = vmul.f32 %v1949, %v1949
        %v2020 = vmul.f32 %v1950, %v1950
        %v2021 = vmul.f32 %v1951, %v1951
        %v2022 = vmul.f32 %v1952, %v1952
        %v2023 = vmul.f32 %v1953, %v1953
        %v2024 = vmul.f32 %v1954, %v1954
        %v2025 = vmul.f32 %v1955, %v1955
        %v2026 = vmul.f32 %v1956, %v1956
        %v2027 = vmul.f32 %v1957, %v1957
        %v2028 = vmul.f32 %v1958, %v1958
        %v2029 = vadd.f32 %v1997, %v1998
        %v2030 = vadd.f32 %v2029, %v1999
        %v2031 = vadd.f32 %v2030, %v2000
        %v2032 = vadd.f32 %v2031, %v2001
        %v2033 = vadd.f32 %v2032, %v2002
        %v2034 = vadd.f32 %v2033, %v2003
        %v2035 = vadd.f32 %v2034, %v2004
        %v2036 = vadd.f32 %v2035, %v2005
        %v2037 = vadd.f32 %v2036, %v2006
        %v2038 = vadd.f32 %v2037, %v2007
        %v2039 = vadd.f32 %v2038, %v2008
        %v2040 = vadd.f32 %v2039, %v2009
        %v2041 = vadd.f32 %v2040, %v2010
        %v2042 = vadd.f32 %v2041, %v2011
        %v2043 = vadd.f32 %v2042, %v2012
        %v2044 = vadd.f32 %v2043, %v2013
        %v2045 = vadd.f32 %v2044, %v2014
        %v2046 = vadd.f32 %v2045, %v2015
        %v2047 = vadd.f32 %v2046, %v2016
        %v2048 = vadd.f32 %v2047, %v2017
        %v2049 = vadd.f32 %v2048, %v2018
        %v2050 = vadd.f32 %v2049, %v2019
        %v2051 = vadd.f32 %v2050, %v2020
        %v2052 = vadd.f32 %v2051, %v2021
        %v2053 = vadd.f32 %v2052, %v2022
        %v2054 = vadd.f32 %v2053, %v2023
        %v2055 = vadd.f32 %v2054, %v2024
        %v2056 = vadd.f32 %v2055, %v2025
        %v2057 = vadd.f32 %v2056, %v2026
        %v2058 = vadd.f32 %v2057, %v2027
        %v2059 = vadd.f32 %v2058, %v2028
        %v2060 = vrot.slane %v2059, 4
        %v2061 = vadd.f32 %v2059, %v2060
        %v2062 = vrot.slane %v2061, 2
        %v2063 = vadd.f32 %v2061, %v2062
        %v2064 = vrot.slane %v2063, 1
        %v2065 = vadd.f32 %v2063, %v2064
        %v2066 = vadd.f32 %v2065, 0.0
        %v2067 = vpack.c.bf16 %v1928, %v1927
        %v2068 = vpack.c.bf16 %v1930, %v1929
        %v2069 = vpack.c.bf16 %v1932, %v1931
        %v2070 = vpack.c.bf16 %v1934, %v1933
        %v2071 = vpack.c.bf16 %v1936, %v1935
        %v2072 = vpack.c.bf16 %v1938, %v1937
        %v2073 = vpack.c.bf16 %v1940, %v1939
        %v2074 = vpack.c.bf16 %v1942, %v1941
        %v2075 = vpack.c.bf16 %v1944, %v1943
        %v2076 = vpack.c.bf16 %v1946, %v1945
        %v2077 = vpack.c.bf16 %v1948, %v1947
        %v2078 = vpack.c.bf16 %v1950, %v1949
        %v2079 = vpack.c.bf16 %v1952, %v1951
        %v2080 = vpack.c.bf16 %v1954, %v1953
        %v2081 = vpack.c.bf16 %v1956, %v1955
        %v2082 = vpack.c.bf16 %v1958, %v1957
        %s2083 = scalar_lea.vmem %s1, 32
        %v2084 = vld [vmem:[%s2083] sm:$0xf]
        %v2085 = vld [vmem:[%s2083 + $0x4] sm:$0xf]
        %s2086 = scalar_lea.vmem %s1, 40
        %v2087 = vld [vmem:[%s2086] sm:$0xf]
        %v2088 = vld [vmem:[%s2086 + $0x4] sm:$0xf]
        %vm2089 = vcmask 1046528
        %v2090 = vrot.slane %v339, 1
        %v2091 = vrot.slane %v340, 1
        %v2092 = vsel %vm2089, %v2090, %v2091
        %v2093 = vrot.slane %v341, 1
        %v2094 = vsel %vm2089, %v2091, %v2093
        %v2095 = vrot.slane %v342, 1
        %v2096 = vsel %vm2089, %v2093, %v2095
        %v2097 = vrot.slane %v343, 1
        %v2098 = vsel %vm2089, %v2095, %v2097
        %v2099 = vrot.slane %v344, 1
        %v2100 = vsel %vm2089, %v2097, %v2099
        %v2101 = vrot.slane %v345, 1
        %v2102 = vsel %vm2089, %v2099, %v2101
        %v2103 = vrot.slane %v346, 1
        %v2104 = vsel %vm2089, %v2101, %v2103
        %v2105 = vrot.slane %v347, 1
        %v2106 = vsel %vm2089, %v2103, %v2105
        %v2107 = vrot.slane %v348, 1
        %v2108 = vsel %vm2089, %v2105, %v2107
        %v2109 = vrot.slane %v349, 1
        %v2110 = vsel %vm2089, %v2107, %v2109
        %v2111 = vrot.slane %v350, 1
        %v2112 = vsel %vm2089, %v2109, %v2111
        %v2113 = vrot.slane %v351, 1
        %v2114 = vsel %vm2089, %v2111, %v2113
        %v2115 = vrot.slane %v352, 1
        %v2116 = vsel %vm2089, %v2113, %v2115
        %v2117 = vrot.slane %v353, 1
        %v2118 = vsel %vm2089, %v2115, %v2117
        %v2119 = vrot.slane %v354, 1
        %v2120 = vsel %vm2089, %v2117, %v2119
        %v2121 = vrot.slane %v355, 1
        %v2122 = vsel %vm2089, %v2119, %v2121
        %v2123 = vrot.slane %v356, 1
        %v2124 = vsel %vm2089, %v2121, %v2123
        %v2125 = vrot.slane %v357, 1
        %v2126 = vsel %vm2089, %v2123, %v2125
        %v2127 = vrot.slane %v358, 1
        %v2128 = vsel %vm2089, %v2125, %v2127
        %v2129 = vrot.slane %v359, 1
        %v2130 = vsel %vm2089, %v2127, %v2129
        %v2131 = vrot.slane %v360, 1
        %v2132 = vsel %vm2089, %v2129, %v2131
        %v2133 = vrot.slane %v361, 1
        %v2134 = vsel %vm2089, %v2131, %v2133
        %v2135 = vrot.slane %v362, 1
        %v2136 = vsel %vm2089, %v2133, %v2135
        %v2137 = vrot.slane %v363, 1
        %v2138 = vsel %vm2089, %v2135, %v2137
        %v2141 = vunpack.c.l.b16 %v2087
        %v2142 = vunpack.c.l.b16 %v2088
        %v2143 = vpack.c.b16 %v2142, %v2141
        %v2146 = vsel %vm567, %v2092, 0
        %v2149 = vsel %vm567, %v2094, 0
        %v2152 = vsel %vm567, %v2096, 0
        %v2155 = vsel %vm567, %v2098, 0
        %v2158 = vsel %vm567, %v2100, 0
        %v2161 = vsel %vm567, %v2102, 0
        %v2164 = vsel %vm567, %v2104, 0
        %v2167 = vsel %vm567, %v2106, 0
        %v2170 = vsel %vm567, %v2108, 0
        %v2173 = vsel %vm567, %v2110, 0
        %v2176 = vsel %vm567, %v2112, 0
        %v2179 = vsel %vm567, %v2114, 0
        %v2182 = vsel %vm567, %v2116, 0
        %v2185 = vsel %vm567, %v2118, 0
        %v2188 = vsel %vm567, %v2120, 0
        %v2191 = vsel %vm567, %v2122, 0
        %v2194 = vsel %vm567, %v2124, 0
        %v2197 = vsel %vm567, %v2126, 0
        %v2200 = vsel %vm567, %v2128, 0
        %v2203 = vsel %vm567, %v2130, 0
        %v2206 = vsel %vm567, %v2132, 0
        %v2209 = vsel %vm567, %v2134, 0
        %v2212 = vsel %vm567, %v2136, 0
        %v2215 = vsel %vm567, %v2138, 0
        %2217 = vmatprep.subr.bf16.mxu0 0
        %2218 = vmatpush1.bf16.msra.mxu0 0
        %2219 = vmatprep.subr.bf16.mxu0 0
        %2220 = vmatpush1.bf16.msra.mxu0 0
        %2221 = vmatprep.subr.bf16.mxu0 0
        %2222 = vmatpush1.bf16.msra.mxu0 0
        %2223 = vmatprep.subr.bf16.mxu0 0
        %2224 = vmatpush1.bf16.msra.mxu0 0
        %2225 = vmatprep.subr.bf16.mxu0 0
        %2226 = vmatpush1.bf16.msra.mxu0 0
        %2227 = vmatprep.subr.bf16.mxu0 0
        %2228 = vmatpush1.bf16.msra.mxu0 0
        %2229 = vmatprep.subr.bf16.mxu0 0
        %2230 = vmatpush1.bf16.msra.mxu0 0
        %2231 = vmatprep.subr.bf16.mxu0 0
        %2232 = vmatpush1.bf16.msra.mxu0 %v2143
        %2233 = vmatprep.subr.bf16.mxu0 0
        %2234 = vmatpush2.bf16.msra.mxu0 0
        %2235 = vmatprep.subr.bf16.mxu0 0
        %2236 = vmatpush2.bf16.msra.mxu0 0
        %2237 = vmatprep.subr.bf16.mxu0 0
        %2238 = vmatpush2.bf16.msra.mxu0 0
        %2239 = vmatprep.subr.bf16.mxu0 0
        %2240 = vmatpush2.bf16.msra.mxu0 0
        %2241 = vmatprep.subr.bf16.mxu0 0
        %2242 = vmatpush2.bf16.msra.mxu0 0
        %2243 = vmatprep.subr.bf16.mxu0 0
        %2244 = vmatpush2.bf16.msra.mxu0 0
        %2245 = vmatprep.subr.bf16.mxu0 0
        %2246 = vmatpush2.bf16.msra.mxu0 0
        %2247 = vmatprep.subr.bf16.mxu0 0
        %2248 = vmatpush2.bf16.msra.mxu0 0
        %2249 = vmatprep.mubr.bf16.mxu0 0
        %2250 = vmatmul.mubr.bf16.gmra.mxu0 %v2146
        %v2251 = vpop.f32.mrf.mxu0
        %v2252 = vadd.f32 0.0, %v2251
        %v2253 = vpop.f32.mrf.mxu0
        %v2254 = vpop.f32.mrf.mxu0
        %v2255 = vadd.f32 0.0, %v2254
        %v2256 = vpop.f32.mrf.mxu0
        %2257 = vmatprep.mubr.bf16.mxu0 0
        %2258 = vmatmul.mubr.bf16.gmra.mxu0 %v2149
        %v2259 = vpop.f32.mrf.mxu0
        %v2260 = vpop.f32.mrf.mxu0
        %v2261 = vpop.f32.mrf.mxu0
        %v2262 = vadd.f32 0.0, %v2261
        %v2263 = vpop.f32.mrf.mxu0
        %2264 = vmatprep.mubr.bf16.mxu0 0
        %2265 = vmatmul.mubr.bf16.gmra.mxu0 %v2152
        %v2266 = vpop.f32.mrf.mxu0
        %v2267 = vadd.f32 0.0, %v2266
        %v2268 = vpop.f32.mrf.mxu0
        %v2269 = vpop.f32.mrf.mxu0
        %v2270 = vpop.f32.mrf.mxu0
        %2271 = vmatprep.mubr.bf16.mxu0 0
        %2272 = vmatmul.mubr.bf16.gmra.mxu0 %v2155
        %v2273 = vpop.f32.mrf.mxu0
        %v2274 = vadd.f32 0.0, %v2273
        %v2275 = vpop.f32.mrf.mxu0
        %v2276 = vpop.f32.mrf.mxu0
        %v2277 = vadd.f32 0.0, %v2276
        %v2278 = vpop.f32.mrf.mxu0
        %2279 = vmatprep.mubr.bf16.mxu0 0
        %2280 = vmatmul.mubr.bf16.gmra.mxu0 %v2158
        %v2281 = vpop.f32.mrf.mxu0
        %v2282 = vpop.f32.mrf.mxu0
        %v2283 = vpop.f32.mrf.mxu0
        %v2284 = vadd.f32 0.0, %v2283
        %v2285 = vpop.f32.mrf.mxu0
        %2286 = vmatprep.mubr.bf16.mxu0 0
        %2287 = vmatmul.mubr.bf16.gmra.mxu0 %v2161
        %v2288 = vpop.f32.mrf.mxu0
        %v2289 = vadd.f32 0.0, %v2288
        %v2290 = vpop.f32.mrf.mxu0
        %v2291 = vpop.f32.mrf.mxu0
        %v2292 = vpop.f32.mrf.mxu0
        %2293 = vmatprep.mubr.bf16.mxu0 0
        %2294 = vmatmul.mubr.bf16.gmra.mxu0 %v2164
        %v2295 = vpop.f32.mrf.mxu0
        %v2296 = vadd.f32 0.0, %v2295
        %v2297 = vpop.f32.mrf.mxu0
        %v2298 = vpop.f32.mrf.mxu0
        %v2299 = vadd.f32 0.0, %v2298
        %v2300 = vpop.f32.mrf.mxu0
        %2301 = vmatprep.mubr.bf16.mxu0 0
        %2302 = vmatmul.mubr.bf16.gmra.mxu0 %v2167
        %v2303 = vpop.f32.mrf.mxu0
        %v2304 = vpop.f32.mrf.mxu0
        %v2305 = vpop.f32.mrf.mxu0
        %v2306 = vadd.f32 0.0, %v2305
        %v2307 = vpop.f32.mrf.mxu0
        %2308 = vmatprep.mubr.bf16.mxu0 0
        %2309 = vmatmul.mubr.bf16.gmra.mxu0 %v2170
        %v2310 = vpop.f32.mrf.mxu0
        %v2311 = vadd.f32 0.0, %v2310
        %v2312 = vpop.f32.mrf.mxu0
        %v2313 = vpop.f32.mrf.mxu0
        %v2314 = vpop.f32.mrf.mxu0
        %2315 = vmatprep.mubr.bf16.mxu0 0
        %2316 = vmatmul.mubr.bf16.gmra.mxu0 %v2173
        %v2317 = vpop.f32.mrf.mxu0
        %v2318 = vadd.f32 0.0, %v2317
        %v2319 = vpop.f32.mrf.mxu0
        %v2320 = vpop.f32.mrf.mxu0
        %v2321 = vadd.f32 0.0, %v2320
        %v2322 = vpop.f32.mrf.mxu0
        %2323 = vmatprep.mubr.bf16.mxu0 0
        %2324 = vmatmul.mubr.bf16.gmra.mxu0 %v2176
        %v2325 = vpop.f32.mrf.mxu0
        %v2326 = vpop.f32.mrf.mxu0
        %v2327 = vpop.f32.mrf.mxu0
        %v2328 = vadd.f32 0.0, %v2327
        %v2329 = vpop.f32.mrf.mxu0
        %2330 = vmatprep.mubr.bf16.mxu0 0
        %2331 = vmatmul.mubr.bf16.gmra.mxu0 %v2179
        %v2332 = vpop.f32.mrf.mxu0
        %v2333 = vadd.f32 0.0, %v2332
        %v2334 = vpop.f32.mrf.mxu0
        %v2335 = vpop.f32.mrf.mxu0
        %v2336 = vpop.f32.mrf.mxu0
        %2337 = vmatprep.mubr.bf16.mxu0 0
        %2338 = vmatmul.mubr.bf16.gmra.mxu0 %v2182
        %v2339 = vpop.f32.mrf.mxu0
        %v2340 = vadd.f32 0.0, %v2339
        %v2341 = vpop.f32.mrf.mxu0
        %v2342 = vpop.f32.mrf.mxu0
        %v2343 = vadd.f32 0.0, %v2342
        %v2344 = vpop.f32.mrf.mxu0
        %2345 = vmatprep.mubr.bf16.mxu0 0
        %2346 = vmatmul.mubr.bf16.gmra.mxu0 %v2185
        %v2347 = vpop.f32.mrf.mxu0
        %v2348 = vpop.f32.mrf.mxu0
        %v2349 = vpop.f32.mrf.mxu0
        %v2350 = vadd.f32 0.0, %v2349
        %v2351 = vpop.f32.mrf.mxu0
        %2352 = vmatprep.mubr.bf16.mxu0 0
        %2353 = vmatmul.mubr.bf16.gmra.mxu0 %v2188
        %v2354 = vpop.f32.mrf.mxu0
        %v2355 = vadd.f32 0.0, %v2354
        %v2356 = vpop.f32.mrf.mxu0
        %v2357 = vpop.f32.mrf.mxu0
        %v2358 = vpop.f32.mrf.mxu0
        %2359 = vmatprep.mubr.bf16.mxu0 0
        %2360 = vmatmul.mubr.bf16.gmra.mxu0 %v2191
        %v2361 = vpop.f32.mrf.mxu0
        %v2362 = vadd.f32 0.0, %v2361
        %v2363 = vpop.f32.mrf.mxu0
        %v2364 = vpop.f32.mrf.mxu0
        %v2365 = vadd.f32 0.0, %v2364
        %v2366 = vpop.f32.mrf.mxu0
        %2367 = vmatprep.mubr.bf16.mxu0 0
        %2368 = vmatmul.mubr.bf16.gmra.mxu0 %v2194
        %v2369 = vpop.f32.mrf.mxu0
        %v2370 = vpop.f32.mrf.mxu0
        %v2371 = vpop.f32.mrf.mxu0
        %v2372 = vadd.f32 0.0, %v2371
        %v2373 = vpop.f32.mrf.mxu0
        %2374 = vmatprep.mubr.bf16.mxu0 0
        %2375 = vmatmul.mubr.bf16.gmra.mxu0 %v2197
        %v2376 = vpop.f32.mrf.mxu0
        %v2377 = vadd.f32 0.0, %v2376
        %v2378 = vpop.f32.mrf.mxu0
        %v2379 = vpop.f32.mrf.mxu0
        %v2380 = vpop.f32.mrf.mxu0
        %2381 = vmatprep.mubr.bf16.mxu0 0
        %2382 = vmatmul.mubr.bf16.gmra.mxu0 %v2200
        %v2383 = vpop.f32.mrf.mxu0
        %v2384 = vadd.f32 0.0, %v2383
        %v2385 = vpop.f32.mrf.mxu0
        %v2386 = vpop.f32.mrf.mxu0
        %v2387 = vadd.f32 0.0, %v2386
        %v2388 = vpop.f32.mrf.mxu0
        %2389 = vmatprep.mubr.bf16.mxu0 0
        %2390 = vmatmul.mubr.bf16.gmra.mxu0 %v2203
        %v2391 = vpop.f32.mrf.mxu0
        %v2392 = vpop.f32.mrf.mxu0
        %v2393 = vpop.f32.mrf.mxu0
        %v2394 = vadd.f32 0.0, %v2393
        %v2395 = vpop.f32.mrf.mxu0
        %2396 = vmatprep.mubr.bf16.mxu0 0
        %2397 = vmatmul.mubr.bf16.gmra.mxu0 %v2206
        %v2398 = vpop.f32.mrf.mxu0
        %v2399 = vadd.f32 0.0, %v2398
        %v2400 = vpop.f32.mrf.mxu0
        %v2401 = vpop.f32.mrf.mxu0
        %v2402 = vpop.f32.mrf.mxu0
        %2403 = vmatprep.mubr.bf16.mxu0 0
        %2404 = vmatmul.mubr.bf16.gmra.mxu0 %v2209
        %v2405 = vpop.f32.mrf.mxu0
        %v2406 = vadd.f32 0.0, %v2405
        %v2407 = vpop.f32.mrf.mxu0
        %v2408 = vpop.f32.mrf.mxu0
        %v2409 = vadd.f32 0.0, %v2408
        %v2410 = vpop.f32.mrf.mxu0
        %2411 = vmatprep.mubr.bf16.mxu0 0
        %2412 = vmatmul.mubr.bf16.gmra.mxu0 %v2212
        %v2413 = vpop.f32.mrf.mxu0
        %v2414 = vpop.f32.mrf.mxu0
        %v2415 = vpop.f32.mrf.mxu0
        %v2416 = vadd.f32 0.0, %v2415
        %v2417 = vpop.f32.mrf.mxu0
        %2418 = vmatprep.mubr.bf16.mxu0 0
        %2419 = vmatmul.mubr.bf16.gmra.mxu0 %v2215
        %v2420 = vpop.f32.mrf.mxu0
        %v2421 = vadd.f32 0.0, %v2420
        %v2422 = vpop.f32.mrf.mxu0
        %v2423 = vpop.f32.mrf.mxu0
        %v2424 = vpop.f32.mrf.mxu0
        %2425 = vdwg.mxu0
        %v2428 = vunpack.c.l.b16 %v2084
        %v2429 = vunpack.c.l.b16 %v2085
        %v2430 = vpack.c.b16 %v2429, %v2428
        %2432 = vmatprep.subr.bf16.mxu0 0
        %2433 = vmatpush1.bf16.msra.mxu0 0
        %2434 = vmatprep.subr.bf16.mxu0 0
        %2435 = vmatpush1.bf16.msra.mxu0 0
        %2436 = vmatprep.subr.bf16.mxu0 0
        %2437 = vmatpush1.bf16.msra.mxu0 0
        %2438 = vmatprep.subr.bf16.mxu0 0
        %2439 = vmatpush1.bf16.msra.mxu0 0
        %2440 = vmatprep.subr.bf16.mxu0 0
        %2441 = vmatpush1.bf16.msra.mxu0 0
        %2442 = vmatprep.subr.bf16.mxu0 0
        %2443 = vmatpush1.bf16.msra.mxu0 0
        %2444 = vmatprep.subr.bf16.mxu0 0
        %2445 = vmatpush1.bf16.msra.mxu0 0
        %2446 = vmatprep.subr.bf16.mxu0 0
        %2447 = vmatpush1.bf16.msra.mxu0 %v2430
        %2448 = vmatprep.subr.bf16.mxu0 0
        %2449 = vmatpush2.bf16.msra.mxu0 0
        %2450 = vmatprep.subr.bf16.mxu0 0
        %2451 = vmatpush2.bf16.msra.mxu0 0
        %2452 = vmatprep.subr.bf16.mxu0 0
        %2453 = vmatpush2.bf16.msra.mxu0 0
        %2454 = vmatprep.subr.bf16.mxu0 0
        %2455 = vmatpush2.bf16.msra.mxu0 0
        %2456 = vmatprep.subr.bf16.mxu0 0
        %2457 = vmatpush2.bf16.msra.mxu0 0
        %2458 = vmatprep.subr.bf16.mxu0 0
        %2459 = vmatpush2.bf16.msra.mxu0 0
        %2460 = vmatprep.subr.bf16.mxu0 0
        %2461 = vmatpush2.bf16.msra.mxu0 0
        %2462 = vmatprep.subr.bf16.mxu0 0
        %2463 = vmatpush2.bf16.msra.mxu0 0
        %2464 = vmatprep.mubr.bf16.mxu0 0
        %2465 = vmatmul.mubr.bf16.gmra.mxu0 %v569
        %v2466 = vpop.f32.mrf.mxu0
        %v2467 = vadd.f32 %v2252, %v2466
        %v2468 = vpop.f32.mrf.mxu0
        %v2469 = vpop.f32.mrf.mxu0
        %v2470 = vadd.f32 %v2255, %v2469
        %v2471 = vpop.f32.mrf.mxu0
        %2472 = vmatprep.mubr.bf16.mxu0 0
        %2473 = vmatmul.mubr.bf16.gmra.mxu0 %v572
        %v2474 = vpop.f32.mrf.mxu0
        %v2475 = vpop.f32.mrf.mxu0
        %v2476 = vpop.f32.mrf.mxu0
        %v2477 = vadd.f32 %v2262, %v2476
        %v2478 = vpop.f32.mrf.mxu0
        %2479 = vmatprep.mubr.bf16.mxu0 0
        %2480 = vmatmul.mubr.bf16.gmra.mxu0 %v575
        %v2481 = vpop.f32.mrf.mxu0
        %v2482 = vadd.f32 %v2267, %v2481
        %v2483 = vpop.f32.mrf.mxu0
        %v2484 = vpop.f32.mrf.mxu0
        %v2485 = vpop.f32.mrf.mxu0
        %2486 = vmatprep.mubr.bf16.mxu0 0
        %2487 = vmatmul.mubr.bf16.gmra.mxu0 %v578
        %v2488 = vpop.f32.mrf.mxu0
        %v2489 = vadd.f32 %v2274, %v2488
        %v2490 = vpop.f32.mrf.mxu0
        %v2491 = vpop.f32.mrf.mxu0
        %v2492 = vadd.f32 %v2277, %v2491
        %v2493 = vpop.f32.mrf.mxu0
        %2494 = vmatprep.mubr.bf16.mxu0 0
        %2495 = vmatmul.mubr.bf16.gmra.mxu0 %v581
        %v2496 = vpop.f32.mrf.mxu0
        %v2497 = vpop.f32.mrf.mxu0
        %v2498 = vpop.f32.mrf.mxu0
        %v2499 = vadd.f32 %v2284, %v2498
        %v2500 = vpop.f32.mrf.mxu0
        %2501 = vmatprep.mubr.bf16.mxu0 0
        %2502 = vmatmul.mubr.bf16.gmra.mxu0 %v584
        %v2503 = vpop.f32.mrf.mxu0
        %v2504 = vadd.f32 %v2289, %v2503
        %v2505 = vpop.f32.mrf.mxu0
        %v2506 = vpop.f32.mrf.mxu0
        %v2507 = vpop.f32.mrf.mxu0
        %2508 = vmatprep.mubr.bf16.mxu0 0
        %2509 = vmatmul.mubr.bf16.gmra.mxu0 %v587
        %v2510 = vpop.f32.mrf.mxu0
        %v2511 = vadd.f32 %v2296, %v2510
        %v2512 = vpop.f32.mrf.mxu0
        %v2513 = vpop.f32.mrf.mxu0
        %v2514 = vadd.f32 %v2299, %v2513
        %v2515 = vpop.f32.mrf.mxu0
        %2516 = vmatprep.mubr.bf16.mxu0 0
        %2517 = vmatmul.mubr.bf16.gmra.mxu0 %v590
        %v2518 = vpop.f32.mrf.mxu0
        %v2519 = vpop.f32.mrf.mxu0
        %v2520 = vpop.f32.mrf.mxu0
        %v2521 = vadd.f32 %v2306, %v2520
        %v2522 = vpop.f32.mrf.mxu0
        %2523 = vmatprep.mubr.bf16.mxu0 0
        %2524 = vmatmul.mubr.bf16.gmra.mxu0 %v593
        %v2525 = vpop.f32.mrf.mxu0
        %v2526 = vadd.f32 %v2311, %v2525
        %v2527 = vpop.f32.mrf.mxu0
        %v2528 = vpop.f32.mrf.mxu0
        %v2529 = vpop.f32.mrf.mxu0
        %2530 = vmatprep.mubr.bf16.mxu0 0
        %2531 = vmatmul.mubr.bf16.gmra.mxu0 %v596
        %v2532 = vpop.f32.mrf.mxu0
        %v2533 = vadd.f32 %v2318, %v2532
        %v2534 = vpop.f32.mrf.mxu0
        %v2535 = vpop.f32.mrf.mxu0
        %v2536 = vadd.f32 %v2321, %v2535
        %v2537 = vpop.f32.mrf.mxu0
        %2538 = vmatprep.mubr.bf16.mxu0 0
        %2539 = vmatmul.mubr.bf16.gmra.mxu0 %v599
        %v2540 = vpop.f32.mrf.mxu0
        %v2541 = vpop.f32.mrf.mxu0
        %v2542 = vpop.f32.mrf.mxu0
        %v2543 = vadd.f32 %v2328, %v2542
        %v2544 = vpop.f32.mrf.mxu0
        %2545 = vmatprep.mubr.bf16.mxu0 0
        %2546 = vmatmul.mubr.bf16.gmra.mxu0 %v602
        %v2547 = vpop.f32.mrf.mxu0
        %v2548 = vadd.f32 %v2333, %v2547
        %v2549 = vpop.f32.mrf.mxu0
        %v2550 = vpop.f32.mrf.mxu0
        %v2551 = vpop.f32.mrf.mxu0
        %2552 = vmatprep.mubr.bf16.mxu0 0
        %2553 = vmatmul.mubr.bf16.gmra.mxu0 %v605
        %v2554 = vpop.f32.mrf.mxu0
        %v2555 = vadd.f32 %v2340, %v2554
        %v2556 = vpop.f32.mrf.mxu0
        %v2557 = vpop.f32.mrf.mxu0
        %v2558 = vadd.f32 %v2343, %v2557
        %v2559 = vpop.f32.mrf.mxu0
        %2560 = vmatprep.mubr.bf16.mxu0 0
        %2561 = vmatmul.mubr.bf16.gmra.mxu0 %v608
        %v2562 = vpop.f32.mrf.mxu0
        %v2563 = vpop.f32.mrf.mxu0
        %v2564 = vpop.f32.mrf.mxu0
        %v2565 = vadd.f32 %v2350, %v2564
        %v2566 = vpop.f32.mrf.mxu0
        %2567 = vmatprep.mubr.bf16.mxu0 0
        %2568 = vmatmul.mubr.bf16.gmra.mxu0 %v611
        %v2569 = vpop.f32.mrf.mxu0
        %v2570 = vadd.f32 %v2355, %v2569
        %v2571 = vpop.f32.mrf.mxu0
        %v2572 = vpop.f32.mrf.mxu0
        %v2573 = vpop.f32.mrf.mxu0
        %2574 = vmatprep.mubr.bf16.mxu0 0
        %2575 = vmatmul.mubr.bf16.gmra.mxu0 %v614
        %v2576 = vpop.f32.mrf.mxu0
        %v2577 = vadd.f32 %v2362, %v2576
        %v2578 = vpop.f32.mrf.mxu0
        %v2579 = vpop.f32.mrf.mxu0
        %v2580 = vadd.f32 %v2365, %v2579
        %v2581 = vpop.f32.mrf.mxu0
        %2582 = vmatprep.mubr.bf16.mxu0 0
        %2583 = vmatmul.mubr.bf16.gmra.mxu0 %v617
        %v2584 = vpop.f32.mrf.mxu0
        %v2585 = vpop.f32.mrf.mxu0
        %v2586 = vpop.f32.mrf.mxu0
        %v2587 = vadd.f32 %v2372, %v2586
        %v2588 = vpop.f32.mrf.mxu0
        %2589 = vmatprep.mubr.bf16.mxu0 0
        %2590 = vmatmul.mubr.bf16.gmra.mxu0 %v620
        %v2591 = vpop.f32.mrf.mxu0
        %v2592 = vadd.f32 %v2377, %v2591
        %v2593 = vpop.f32.mrf.mxu0
        %v2594 = vpop.f32.mrf.mxu0
        %v2595 = vpop.f32.mrf.mxu0
        %2596 = vmatprep.mubr.bf16.mxu0 0
        %2597 = vmatmul.mubr.bf16.gmra.mxu0 %v623
        %v2598 = vpop.f32.mrf.mxu0
        %v2599 = vadd.f32 %v2384, %v2598
        %v2600 = vpop.f32.mrf.mxu0
        %v2601 = vpop.f32.mrf.mxu0
        %v2602 = vadd.f32 %v2387, %v2601
        %v2603 = vpop.f32.mrf.mxu0
        %2604 = vmatprep.mubr.bf16.mxu0 0
        %2605 = vmatmul.mubr.bf16.gmra.mxu0 %v626
        %v2606 = vpop.f32.mrf.mxu0
        %v2607 = vpop.f32.mrf.mxu0
        %v2608 = vpop.f32.mrf.mxu0
        %v2609 = vadd.f32 %v2394, %v2608
        %v2610 = vpop.f32.mrf.mxu0
        %2611 = vmatprep.mubr.bf16.mxu0 0
        %2612 = vmatmul.mubr.bf16.gmra.mxu0 %v629
        %v2613 = vpop.f32.mrf.mxu0
        %v2614 = vadd.f32 %v2399, %v2613
        %v2615 = vpop.f32.mrf.mxu0
        %v2616 = vpop.f32.mrf.mxu0
        %v2617 = vpop.f32.mrf.mxu0
        %2618 = vmatprep.mubr.bf16.mxu0 0
        %2619 = vmatmul.mubr.bf16.gmra.mxu0 %v632
        %v2620 = vpop.f32.mrf.mxu0
        %v2621 = vadd.f32 %v2406, %v2620
        %v2622 = vpop.f32.mrf.mxu0
        %v2623 = vpop.f32.mrf.mxu0
        %v2624 = vadd.f32 %v2409, %v2623
        %v2625 = vpop.f32.mrf.mxu0
        %2626 = vmatprep.mubr.bf16.mxu0 0
        %2627 = vmatmul.mubr.bf16.gmra.mxu0 %v635
        %v2628 = vpop.f32.mrf.mxu0
        %v2629 = vpop.f32.mrf.mxu0
        %v2630 = vpop.f32.mrf.mxu0
        %v2631 = vadd.f32 %v2416, %v2630
        %v2632 = vpop.f32.mrf.mxu0
        %2633 = vmatprep.mubr.bf16.mxu0 0
        %2634 = vmatmul.mubr.bf16.gmra.mxu0 %v638
        %v2635 = vpop.f32.mrf.mxu0
        %v2636 = vadd.f32 %v2421, %v2635
        %v2637 = vpop.f32.mrf.mxu0
        %v2638 = vpop.f32.mrf.mxu0
        %v2639 = vpop.f32.mrf.mxu0
        %2640 = vdwg.mxu0
        %s2641 = scalar_lea.vmem %s1, 48
        %v2642 = vld [vmem:[%s2641] sm:$0xf]
        %v2643 = vld [vmem:[%s2641 + $0x4] sm:$0xf]
        %v2646 = vunpack.c.l.b16 %v2642
        %v2647 = vunpack.c.l.b16 %v2643
        %v2648 = vpack.c.b16 %v2647, %v2646
        %2650 = vmatprep.subr.bf16.mxu0 0
        %2651 = vmatpush1.bf16.msra.mxu0 0
        %2652 = vmatprep.subr.bf16.mxu0 0
        %2653 = vmatpush1.bf16.msra.mxu0 0
        %2654 = vmatprep.subr.bf16.mxu0 0
        %2655 = vmatpush1.bf16.msra.mxu0 0
        %2656 = vmatprep.subr.bf16.mxu0 0
        %2657 = vmatpush1.bf16.msra.mxu0 0
        %2658 = vmatprep.subr.bf16.mxu0 0
        %2659 = vmatpush1.bf16.msra.mxu0 0
        %2660 = vmatprep.subr.bf16.mxu0 0
        %2661 = vmatpush1.bf16.msra.mxu0 0
        %2662 = vmatprep.subr.bf16.mxu0 0
        %2663 = vmatpush1.bf16.msra.mxu0 0
        %2664 = vmatprep.subr.bf16.mxu0 0
        %2665 = vmatpush1.bf16.msra.mxu0 %v2648
        %2666 = vmatprep.subr.bf16.mxu0 0
        %2667 = vmatpush2.bf16.msra.mxu0 0
        %2668 = vmatprep.subr.bf16.mxu0 0
        %2669 = vmatpush2.bf16.msra.mxu0 0
        %2670 = vmatprep.subr.bf16.mxu0 0
        %2671 = vmatpush2.bf16.msra.mxu0 0
        %2672 = vmatprep.subr.bf16.mxu0 0
        %2673 = vmatpush2.bf16.msra.mxu0 0
        %2674 = vmatprep.subr.bf16.mxu0 0
        %2675 = vmatpush2.bf16.msra.mxu0 0
        %2676 = vmatprep.subr.bf16.mxu0 0
        %2677 = vmatpush2.bf16.msra.mxu0 0
        %2678 = vmatprep.subr.bf16.mxu0 0
        %2679 = vmatpush2.bf16.msra.mxu0 0
        %2680 = vmatprep.subr.bf16.mxu0 0
        %2681 = vmatpush2.bf16.msra.mxu0 0
        %2682 = vmatprep.mubr.bf16.mxu0 0
        %2683 = vmatmul.mubr.bf16.gmra.mxu0 %v1647
        %v2684 = vpop.f32.mrf.mxu0
        %v2685 = vadd.f32 0.0, %v2684
        %v2686 = vpop.f32.mrf.mxu0
        %v2687 = vpop.f32.mrf.mxu0
        %v2688 = vadd.f32 0.0, %v2687
        %v2689 = vpop.f32.mrf.mxu0
        %2690 = vmatprep.mubr.bf16.mxu0 0
        %2691 = vmatmul.mubr.bf16.gmra.mxu0 %v1650
        %v2692 = vpop.f32.mrf.mxu0
        %v2693 = vpop.f32.mrf.mxu0
        %v2694 = vpop.f32.mrf.mxu0
        %v2695 = vadd.f32 0.0, %v2694
        %v2696 = vpop.f32.mrf.mxu0
        %2697 = vmatprep.mubr.bf16.mxu0 0
        %2698 = vmatmul.mubr.bf16.gmra.mxu0 %v1653
        %v2699 = vpop.f32.mrf.mxu0
        %v2700 = vadd.f32 0.0, %v2699
        %v2701 = vpop.f32.mrf.mxu0
        %v2702 = vpop.f32.mrf.mxu0
        %v2703 = vpop.f32.mrf.mxu0
        %2704 = vmatprep.mubr.bf16.mxu0 0
        %2705 = vmatmul.mubr.bf16.gmra.mxu0 %v1656
        %v2706 = vpop.f32.mrf.mxu0
        %v2707 = vadd.f32 0.0, %v2706
        %v2708 = vpop.f32.mrf.mxu0
        %v2709 = vpop.f32.mrf.mxu0
        %v2710 = vadd.f32 0.0, %v2709
        %v2711 = vpop.f32.mrf.mxu0
        %2712 = vmatprep.mubr.bf16.mxu0 0
        %2713 = vmatmul.mubr.bf16.gmra.mxu0 %v1659
        %v2714 = vpop.f32.mrf.mxu0
        %v2715 = vpop.f32.mrf.mxu0
        %v2716 = vpop.f32.mrf.mxu0
        %v2717 = vadd.f32 0.0, %v2716
        %v2718 = vpop.f32.mrf.mxu0
        %2719 = vmatprep.mubr.bf16.mxu0 0
        %2720 = vmatmul.mubr.bf16.gmra.mxu0 %v1662
        %v2721 = vpop.f32.mrf.mxu0
        %v2722 = vadd.f32 0.0, %v2721
        %v2723 = vpop.f32.mrf.mxu0
        %v2724 = vpop.f32.mrf.mxu0
        %v2725 = vpop.f32.mrf.mxu0
        %2726 = vmatprep.mubr.bf16.mxu0 0
        %2727 = vmatmul.mubr.bf16.gmra.mxu0 %v1665
        %v2728 = vpop.f32.mrf.mxu0
        %v2729 = vadd.f32 0.0, %v2728
        %v2730 = vpop.f32.mrf.mxu0
        %v2731 = vpop.f32.mrf.mxu0
        %v2732 = vadd.f32 0.0, %v2731
        %v2733 = vpop.f32.mrf.mxu0
        %2734 = vmatprep.mubr.bf16.mxu0 0
        %2735 = vmatmul.mubr.bf16.gmra.mxu0 %v1668
        %v2736 = vpop.f32.mrf.mxu0
        %v2737 = vpop.f32.mrf.mxu0
        %v2738 = vpop.f32.mrf.mxu0
        %v2739 = vadd.f32 0.0, %v2738
        %v2740 = vpop.f32.mrf.mxu0
        %2741 = vmatprep.mubr.bf16.mxu0 0
        %2742 = vmatmul.mubr.bf16.gmra.mxu0 %v1671
        %v2743 = vpop.f32.mrf.mxu0
        %v2744 = vadd.f32 0.0, %v2743
        %v2745 = vpop.f32.mrf.mxu0
        %v2746 = vpop.f32.mrf.mxu0
        %v2747 = vpop.f32.mrf.mxu0
        %2748 = vmatprep.mubr.bf16.mxu0 0
        %2749 = vmatmul.mubr.bf16.gmra.mxu0 %v1674
        %v2750 = vpop.f32.mrf.mxu0
        %v2751 = vadd.f32 0.0, %v2750
        %v2752 = vpop.f32.mrf.mxu0
        %v2753 = vpop.f32.mrf.mxu0
        %v2754 = vadd.f32 0.0, %v2753
        %v2755 = vpop.f32.mrf.mxu0
        %2756 = vmatprep.mubr.bf16.mxu0 0
        %2757 = vmatmul.mubr.bf16.gmra.mxu0 %v1677
        %v2758 = vpop.f32.mrf.mxu0
        %v2759 = vpop.f32.mrf.mxu0
        %v2760 = vpop.f32.mrf.mxu0
        %v2761 = vadd.f32 0.0, %v2760
        %v2762 = vpop.f32.mrf.mxu0
        %2763 = vmatprep.mubr.bf16.mxu0 0
        %2764 = vmatmul.mubr.bf16.gmra.mxu0 %v1680
        %v2765 = vpop.f32.mrf.mxu0
        %v2766 = vadd.f32 0.0, %v2765
        %v2767 = vpop.f32.mrf.mxu0
        %v2768 = vpop.f32.mrf.mxu0
        %v2769 = vpop.f32.mrf.mxu0
        %2770 = vmatprep.mubr.bf16.mxu0 0
        %2771 = vmatmul.mubr.bf16.gmra.mxu0 %v1683
        %v2772 = vpop.f32.mrf.mxu0
        %v2773 = vadd.f32 0.0, %v2772
        %v2774 = vpop.f32.mrf.mxu0
        %v2775 = vpop.f32.mrf.mxu0
        %v2776 = vadd.f32 0.0, %v2775
        %v2777 = vpop.f32.mrf.mxu0
        %2778 = vmatprep.mubr.bf16.mxu0 0
        %2779 = vmatmul.mubr.bf16.gmra.mxu0 %v1686
        %v2780 = vpop.f32.mrf.mxu0
        %v2781 = vpop.f32.mrf.mxu0
        %v2782 = vpop.f32.mrf.mxu0
        %v2783 = vadd.f32 0.0, %v2782
        %v2784 = vpop.f32.mrf.mxu0
        %2785 = vmatprep.mubr.bf16.mxu0 0
        %2786 = vmatmul.mubr.bf16.gmra.mxu0 %v1689
        %v2787 = vpop.f32.mrf.mxu0
        %v2788 = vadd.f32 0.0, %v2787
        %v2789 = vpop.f32.mrf.mxu0
        %v2790 = vpop.f32.mrf.mxu0
        %v2791 = vpop.f32.mrf.mxu0
        %2792 = vmatprep.mubr.bf16.mxu0 0
        %2793 = vmatmul.mubr.bf16.gmra.mxu0 %v1692
        %v2794 = vpop.f32.mrf.mxu0
        %v2795 = vadd.f32 0.0, %v2794
        %v2796 = vpop.f32.mrf.mxu0
        %v2797 = vpop.f32.mrf.mxu0
        %v2798 = vadd.f32 0.0, %v2797
        %v2799 = vpop.f32.mrf.mxu0
        %2800 = vmatprep.mubr.bf16.mxu0 0
        %2801 = vmatmul.mubr.bf16.gmra.mxu0 %v1695
        %v2802 = vpop.f32.mrf.mxu0
        %v2803 = vpop.f32.mrf.mxu0
        %v2804 = vpop.f32.mrf.mxu0
        %v2805 = vadd.f32 0.0, %v2804
        %v2806 = vpop.f32.mrf.mxu0
        %2807 = vmatprep.mubr.bf16.mxu0 0
        %2808 = vmatmul.mubr.bf16.gmra.mxu0 %v1698
        %v2809 = vpop.f32.mrf.mxu0
        %v2810 = vadd.f32 0.0, %v2809
        %v2811 = vpop.f32.mrf.mxu0
        %v2812 = vpop.f32.mrf.mxu0
        %v2813 = vpop.f32.mrf.mxu0
        %2814 = vmatprep.mubr.bf16.mxu0 0
        %2815 = vmatmul.mubr.bf16.gmra.mxu0 %v1701
        %v2816 = vpop.f32.mrf.mxu0
        %v2817 = vadd.f32 0.0, %v2816
        %v2818 = vpop.f32.mrf.mxu0
        %v2819 = vpop.f32.mrf.mxu0
        %v2820 = vadd.f32 0.0, %v2819
        %v2821 = vpop.f32.mrf.mxu0
        %2822 = vmatprep.mubr.bf16.mxu0 0
        %2823 = vmatmul.mubr.bf16.gmra.mxu0 %v1704
        %v2824 = vpop.f32.mrf.mxu0
        %v2825 = vpop.f32.mrf.mxu0
        %v2826 = vpop.f32.mrf.mxu0
        %v2827 = vadd.f32 0.0, %v2826
        %v2828 = vpop.f32.mrf.mxu0
        %2829 = vmatprep.mubr.bf16.mxu0 0
        %2830 = vmatmul.mubr.bf16.gmra.mxu0 %v1707
        %v2831 = vpop.f32.mrf.mxu0
        %v2832 = vadd.f32 0.0, %v2831
        %v2833 = vpop.f32.mrf.mxu0
        %v2834 = vpop.f32.mrf.mxu0
        %v2835 = vpop.f32.mrf.mxu0
        %2836 = vmatprep.mubr.bf16.mxu0 0
        %2837 = vmatmul.mubr.bf16.gmra.mxu0 %v1710
        %v2838 = vpop.f32.mrf.mxu0
        %v2839 = vadd.f32 0.0, %v2838
        %v2840 = vpop.f32.mrf.mxu0
        %v2841 = vpop.f32.mrf.mxu0
        %v2842 = vadd.f32 0.0, %v2841
        %v2843 = vpop.f32.mrf.mxu0
        %2844 = vmatprep.mubr.bf16.mxu0 0
        %2845 = vmatmul.mubr.bf16.gmra.mxu0 %v1713
        %v2846 = vpop.f32.mrf.mxu0
        %v2847 = vpop.f32.mrf.mxu0
        %v2848 = vpop.f32.mrf.mxu0
        %v2849 = vadd.f32 0.0, %v2848
        %v2850 = vpop.f32.mrf.mxu0
        %2851 = vmatprep.mubr.bf16.mxu0 0
        %2852 = vmatmul.mubr.bf16.gmra.mxu0 %v1716
        %v2853 = vpop.f32.mrf.mxu0
        %v2854 = vadd.f32 0.0, %v2853
        %v2855 = vpop.f32.mrf.mxu0
        %v2856 = vpop.f32.mrf.mxu0
        %v2857 = vpop.f32.mrf.mxu0
        %2858 = vdwg.mxu0
        %v2859 = vadd.f32 %v2467, %v2685
        %v2860 = vadd.f32 %v2470, %v2688
        %v2861 = vadd.f32 %v2477, %v2695
        %v2862 = vadd.f32 %v2482, %v2700
        %v2863 = vadd.f32 %v2489, %v2707
        %v2864 = vadd.f32 %v2492, %v2710
        %v2865 = vadd.f32 %v2499, %v2717
        %v2866 = vadd.f32 %v2504, %v2722
        %v2867 = vadd.f32 %v2511, %v2729
        %v2868 = vadd.f32 %v2514, %v2732
        %v2869 = vadd.f32 %v2521, %v2739
        %v2870 = vadd.f32 %v2526, %v2744
        %v2871 = vadd.f32 %v2533, %v2751
        %v2872 = vadd.f32 %v2536, %v2754
        %v2873 = vadd.f32 %v2543, %v2761
        %v2874 = vadd.f32 %v2548, %v2766
        %v2875 = vadd.f32 %v2555, %v2773
        %v2876 = vadd.f32 %v2558, %v2776
        %v2877 = vadd.f32 %v2565, %v2783
        %v2878 = vadd.f32 %v2570, %v2788
        %v2879 = vadd.f32 %v2577, %v2795
        %v2880 = vadd.f32 %v2580, %v2798
        %v2881 = vadd.f32 %v2587, %v2805
        %v2882 = vadd.f32 %v2592, %v2810
        %v2883 = vadd.f32 %v2599, %v2817
        %v2884 = vadd.f32 %v2602, %v2820
        %v2885 = vadd.f32 %v2609, %v2827
        %v2886 = vadd.f32 %v2614, %v2832
        %v2887 = vadd.f32 %v2621, %v2839
        %v2888 = vadd.f32 %v2624, %v2842
        %v2889 = vadd.f32 %v2631, %v2849
        %v2890 = vadd.f32 %v2636, %v2854
        %s2891 = scalar_lea.vmem %s1, 56
        %v2892 = vld [vmem:[%s2891] sm:$0xf]
        %v2893 = vld [vmem:[%s2891 + $0x4] sm:$0xf]
        %v2894 = vrot.slane %v1119, 1
        %v2895 = vrot.slane %v1120, 1
        %v2896 = vsel %vm2089, %v2894, %v2895
        %v2897 = vrot.slane %v1121, 1
        %v2898 = vsel %vm2089, %v2895, %v2897
        %v2899 = vrot.slane %v1122, 1
        %v2900 = vsel %vm2089, %v2897, %v2899
        %v2901 = vrot.slane %v1123, 1
        %v2902 = vsel %vm2089, %v2899, %v2901
        %v2903 = vrot.slane %v1124, 1
        %v2904 = vsel %vm2089, %v2901, %v2903
        %v2905 = vrot.slane %v1125, 1
        %v2906 = vsel %vm2089, %v2903, %v2905
        %v2907 = vrot.slane %v1126, 1
        %v2908 = vsel %vm2089, %v2905, %v2907
        %v2909 = vrot.slane %v1127, 1
        %v2910 = vsel %vm2089, %v2907, %v2909
        %v2911 = vrot.slane %v1128, 1
        %v2912 = vsel %vm2089, %v2909, %v2911
        %v2913 = vrot.slane %v1129, 1
        %v2914 = vsel %vm2089, %v2911, %v2913
        %v2915 = vrot.slane %v1130, 1
        %v2916 = vsel %vm2089, %v2913, %v2915
        %v2917 = vrot.slane %v1131, 1
        %v2918 = vsel %vm2089, %v2915, %v2917
        %v2919 = vrot.slane %v1132, 1
        %v2920 = vsel %vm2089, %v2917, %v2919
        %v2921 = vrot.slane %v1133, 1
        %v2922 = vsel %vm2089, %v2919, %v2921
        %v2923 = vrot.slane %v1134, 1
        %v2924 = vsel %vm2089, %v2921, %v2923
        %v2925 = vrot.slane %v1135, 1
        %v2926 = vsel %vm2089, %v2923, %v2925
        %v2927 = vrot.slane %v1136, 1
        %v2928 = vsel %vm2089, %v2925, %v2927
        %v2929 = vrot.slane %v1137, 1
        %v2930 = vsel %vm2089, %v2927, %v2929
        %v2931 = vrot.slane %v1138, 1
        %v2932 = vsel %vm2089, %v2929, %v2931
        %v2933 = vrot.slane %v1139, 1
        %v2934 = vsel %vm2089, %v2931, %v2933
        %v2935 = vrot.slane %v1140, 1
        %v2936 = vsel %vm2089, %v2933, %v2935
        %v2937 = vrot.slane %v1141, 1
        %v2938 = vsel %vm2089, %v2935, %v2937
        %v2939 = vrot.slane %v1142, 1
        %v2940 = vsel %vm2089, %v2937, %v2939
        %v2941 = vrot.slane %v1467, 1
        %v2942 = vsel %vm2089, %v2939, %v2941
        %v2945 = vunpack.c.l.b16 %v2892
        %v2946 = vunpack.c.l.b16 %v2893
        %v2947 = vpack.c.b16 %v2946, %v2945
        %v2950 = vsel %vm567, %v2896, 0
        %v2953 = vsel %vm567, %v2898, 0
        %v2956 = vsel %vm567, %v2900, 0
        %v2959 = vsel %vm567, %v2902, 0
        %v2962 = vsel %vm567, %v2904, 0
        %v2965 = vsel %vm567, %v2906, 0
        %v2968 = vsel %vm567, %v2908, 0
        %v2971 = vsel %vm567, %v2910, 0
        %v2974 = vsel %vm567, %v2912, 0
        %v2977 = vsel %vm567, %v2914, 0
        %v2980 = vsel %vm567, %v2916, 0
        %v2983 = vsel %vm567, %v2918, 0
        %v2986 = vsel %vm567, %v2920, 0
        %v2989 = vsel %vm567, %v2922, 0
        %v2992 = vsel %vm567, %v2924, 0
        %v2995 = vsel %vm567, %v2926, 0
        %v2998 = vsel %vm567, %v2928, 0
        %v3001 = vsel %vm567, %v2930, 0
        %v3004 = vsel %vm567, %v2932, 0
        %v3007 = vsel %vm567, %v2934, 0
        %v3010 = vsel %vm567, %v2936, 0
        %v3013 = vsel %vm567, %v2938, 0
        %v3016 = vsel %vm567, %v2940, 0
        %v3019 = vsel %vm567, %v2942, 0
        %3021 = vmatprep.subr.bf16.mxu0 0
        %3022 = vmatpush1.bf16.msra.mxu0 0
        %3023 = vmatprep.subr.bf16.mxu0 0
        %3024 = vmatpush1.bf16.msra.mxu0 0
        %3025 = vmatprep.subr.bf16.mxu0 0
        %3026 = vmatpush1.bf16.msra.mxu0 0
        %3027 = vmatprep.subr.bf16.mxu0 0
        %3028 = vmatpush1.bf16.msra.mxu0 0
        %3029 = vmatprep.subr.bf16.mxu0 0
        %3030 = vmatpush1.bf16.msra.mxu0 0
        %3031 = vmatprep.subr.bf16.mxu0 0
        %3032 = vmatpush1.bf16.msra.mxu0 0
        %3033 = vmatprep.subr.bf16.mxu0 0
        %3034 = vmatpush1.bf16.msra.mxu0 0
        %3035 = vmatprep.subr.bf16.mxu0 0
        %3036 = vmatpush1.bf16.msra.mxu0 %v2947
        %3037 = vmatprep.subr.bf16.mxu0 0
        %3038 = vmatpush2.bf16.msra.mxu0 0
        %3039 = vmatprep.subr.bf16.mxu0 0
        %3040 = vmatpush2.bf16.msra.mxu0 0
        %3041 = vmatprep.subr.bf16.mxu0 0
        %3042 = vmatpush2.bf16.msra.mxu0 0
        %3043 = vmatprep.subr.bf16.mxu0 0
        %3044 = vmatpush2.bf16.msra.mxu0 0
        %3045 = vmatprep.subr.bf16.mxu0 0
        %3046 = vmatpush2.bf16.msra.mxu0 0
        %3047 = vmatprep.subr.bf16.mxu0 0
        %3048 = vmatpush2.bf16.msra.mxu0 0
        %3049 = vmatprep.subr.bf16.mxu0 0
        %3050 = vmatpush2.bf16.msra.mxu0 0
        %3051 = vmatprep.subr.bf16.mxu0 0
        %3052 = vmatpush2.bf16.msra.mxu0 0
        %3053 = vmatprep.mubr.bf16.mxu0 0
        %3054 = vmatmul.mubr.bf16.gmra.mxu0 %v2950
        %v3055 = vpop.f32.mrf.mxu0
        %v3056 = vadd.f32 0.0, %v3055
        %v3057 = vpop.f32.mrf.mxu0
        %v3058 = vpop.f32.mrf.mxu0
        %v3059 = vadd.f32 0.0, %v3058
        %v3060 = vpop.f32.mrf.mxu0
        %3061 = vmatprep.mubr.bf16.mxu0 0
        %3062 = vmatmul.mubr.bf16.gmra.mxu0 %v2953
        %v3063 = vpop.f32.mrf.mxu0
        %v3064 = vpop.f32.mrf.mxu0
        %v3065 = vpop.f32.mrf.mxu0
        %v3066 = vadd.f32 0.0, %v3065
        %v3067 = vpop.f32.mrf.mxu0
        %3068 = vmatprep.mubr.bf16.mxu0 0
        %3069 = vmatmul.mubr.bf16.gmra.mxu0 %v2956
        %v3070 = vpop.f32.mrf.mxu0
        %v3071 = vadd.f32 0.0, %v3070
        %v3072 = vpop.f32.mrf.mxu0
        %v3073 = vpop.f32.mrf.mxu0
        %v3074 = vpop.f32.mrf.mxu0
        %3075 = vmatprep.mubr.bf16.mxu0 0
        %3076 = vmatmul.mubr.bf16.gmra.mxu0 %v2959
        %v3077 = vpop.f32.mrf.mxu0
        %v3078 = vadd.f32 0.0, %v3077
        %v3079 = vpop.f32.mrf.mxu0
        %v3080 = vpop.f32.mrf.mxu0
        %v3081 = vadd.f32 0.0, %v3080
        %v3082 = vpop.f32.mrf.mxu0
        %3083 = vmatprep.mubr.bf16.mxu0 0
        %3084 = vmatmul.mubr.bf16.gmra.mxu0 %v2962
        %v3085 = vpop.f32.mrf.mxu0
        %v3086 = vpop.f32.mrf.mxu0
        %v3087 = vpop.f32.mrf.mxu0
        %v3088 = vadd.f32 0.0, %v3087
        %v3089 = vpop.f32.mrf.mxu0
        %3090 = vmatprep.mubr.bf16.mxu0 0
        %3091 = vmatmul.mubr.bf16.gmra.mxu0 %v2965
        %v3092 = vpop.f32.mrf.mxu0
        %v3093 = vadd.f32 0.0, %v3092
        %v3094 = vpop.f32.mrf.mxu0
        %v3095 = vpop.f32.mrf.mxu0
        %v3096 = vpop.f32.mrf.mxu0
        %3097 = vmatprep.mubr.bf16.mxu0 0
        %3098 = vmatmul.mubr.bf16.gmra.mxu0 %v2968
        %v3099 = vpop.f32.mrf.mxu0
        %v3100 = vadd.f32 0.0, %v3099
        %v3101 = vpop.f32.mrf.mxu0
        %v3102 = vpop.f32.mrf.mxu0
        %v3103 = vadd.f32 0.0, %v3102
        %v3104 = vpop.f32.mrf.mxu0
        %3105 = vmatprep.mubr.bf16.mxu0 0
        %3106 = vmatmul.mubr.bf16.gmra.mxu0 %v2971
        %v3107 = vpop.f32.mrf.mxu0
        %v3108 = vpop.f32.mrf.mxu0
        %v3109 = vpop.f32.mrf.mxu0
        %v3110 = vadd.f32 0.0, %v3109
        %v3111 = vpop.f32.mrf.mxu0
        %3112 = vmatprep.mubr.bf16.mxu0 0
        %3113 = vmatmul.mubr.bf16.gmra.mxu0 %v2974
        %v3114 = vpop.f32.mrf.mxu0
        %v3115 = vadd.f32 0.0, %v3114
        %v3116 = vpop.f32.mrf.mxu0
        %v3117 = vpop.f32.mrf.mxu0
        %v3118 = vpop.f32.mrf.mxu0
        %3119 = vmatprep.mubr.bf16.mxu0 0
        %3120 = vmatmul.mubr.bf16.gmra.mxu0 %v2977
        %v3121 = vpop.f32.mrf.mxu0
        %v3122 = vadd.f32 0.0, %v3121
        %v3123 = vpop.f32.mrf.mxu0
        %v3124 = vpop.f32.mrf.mxu0
        %v3125 = vadd.f32 0.0, %v3124
        %v3126 = vpop.f32.mrf.mxu0
        %3127 = vmatprep.mubr.bf16.mxu0 0
        %3128 = vmatmul.mubr.bf16.gmra.mxu0 %v2980
        %v3129 = vpop.f32.mrf.mxu0
        %v3130 = vpop.f32.mrf.mxu0
        %v3131 = vpop.f32.mrf.mxu0
        %v3132 = vadd.f32 0.0, %v3131
        %v3133 = vpop.f32.mrf.mxu0
        %3134 = vmatprep.mubr.bf16.mxu0 0
        %3135 = vmatmul.mubr.bf16.gmra.mxu0 %v2983
        %v3136 = vpop.f32.mrf.mxu0
        %v3137 = vadd.f32 0.0, %v3136
        %v3138 = vpop.f32.mrf.mxu0
        %v3139 = vpop.f32.mrf.mxu0
        %v3140 = vpop.f32.mrf.mxu0
        %3141 = vmatprep.mubr.bf16.mxu0 0
        %3142 = vmatmul.mubr.bf16.gmra.mxu0 %v2986
        %v3143 = vpop.f32.mrf.mxu0
        %v3144 = vadd.f32 0.0, %v3143
        %v3145 = vpop.f32.mrf.mxu0
        %v3146 = vpop.f32.mrf.mxu0
        %v3147 = vadd.f32 0.0, %v3146
        %v3148 = vpop.f32.mrf.mxu0
        %3149 = vmatprep.mubr.bf16.mxu0 0
        %3150 = vmatmul.mubr.bf16.gmra.mxu0 %v2989
        %v3151 = vpop.f32.mrf.mxu0
        %v3152 = vpop.f32.mrf.mxu0
        %v3153 = vpop.f32.mrf.mxu0
        %v3154 = vadd.f32 0.0, %v3153
        %v3155 = vpop.f32.mrf.mxu0
        %3156 = vmatprep.mubr.bf16.mxu0 0
        %3157 = vmatmul.mubr.bf16.gmra.mxu0 %v2992
        %v3158 = vpop.f32.mrf.mxu0
        %v3159 = vadd.f32 0.0, %v3158
        %v3160 = vpop.f32.mrf.mxu0
        %v3161 = vpop.f32.mrf.mxu0
        %v3162 = vpop.f32.mrf.mxu0
        %3163 = vmatprep.mubr.bf16.mxu0 0
        %3164 = vmatmul.mubr.bf16.gmra.mxu0 %v2995
        %v3165 = vpop.f32.mrf.mxu0
        %v3166 = vadd.f32 0.0, %v3165
        %v3167 = vpop.f32.mrf.mxu0
        %v3168 = vpop.f32.mrf.mxu0
        %v3169 = vadd.f32 0.0, %v3168
        %v3170 = vpop.f32.mrf.mxu0
        %3171 = vmatprep.mubr.bf16.mxu0 0
        %3172 = vmatmul.mubr.bf16.gmra.mxu0 %v2998
        %v3173 = vpop.f32.mrf.mxu0
        %v3174 = vpop.f32.mrf.mxu0
        %v3175 = vpop.f32.mrf.mxu0
        %v3176 = vadd.f32 0.0, %v3175
        %v3177 = vpop.f32.mrf.mxu0
        %3178 = vmatprep.mubr.bf16.mxu0 0
        %3179 = vmatmul.mubr.bf16.gmra.mxu0 %v3001
        %v3180 = vpop.f32.mrf.mxu0
        %v3181 = vadd.f32 0.0, %v3180
        %v3182 = vpop.f32.mrf.mxu0
        %v3183 = vpop.f32.mrf.mxu0
        %v3184 = vpop.f32.mrf.mxu0
        %3185 = vmatprep.mubr.bf16.mxu0 0
        %3186 = vmatmul.mubr.bf16.gmra.mxu0 %v3004
        %v3187 = vpop.f32.mrf.mxu0
        %v3188 = vadd.f32 0.0, %v3187
        %v3189 = vpop.f32.mrf.mxu0
        %v3190 = vpop.f32.mrf.mxu0
        %v3191 = vadd.f32 0.0, %v3190
        %v3192 = vpop.f32.mrf.mxu0
        %3193 = vmatprep.mubr.bf16.mxu0 0
        %3194 = vmatmul.mubr.bf16.gmra.mxu0 %v3007
        %v3195 = vpop.f32.mrf.mxu0
        %v3196 = vpop.f32.mrf.mxu0
        %v3197 = vpop.f32.mrf.mxu0
        %v3198 = vadd.f32 0.0, %v3197
        %v3199 = vpop.f32.mrf.mxu0
        %3200 = vmatprep.mubr.bf16.mxu0 0
        %3201 = vmatmul.mubr.bf16.gmra.mxu0 %v3010
        %v3202 = vpop.f32.mrf.mxu0
        %v3203 = vadd.f32 0.0, %v3202
        %v3204 = vpop.f32.mrf.mxu0
        %v3205 = vpop.f32.mrf.mxu0
        %v3206 = vpop.f32.mrf.mxu0
        %3207 = vmatprep.mubr.bf16.mxu0 0
        %3208 = vmatmul.mubr.bf16.gmra.mxu0 %v3013
        %v3209 = vpop.f32.mrf.mxu0
        %v3210 = vadd.f32 0.0, %v3209
        %v3211 = vpop.f32.mrf.mxu0
        %v3212 = vpop.f32.mrf.mxu0
        %v3213 = vadd.f32 0.0, %v3212
        %v3214 = vpop.f32.mrf.mxu0
        %3215 = vmatprep.mubr.bf16.mxu0 0
        %3216 = vmatmul.mubr.bf16.gmra.mxu0 %v3016
        %v3217 = vpop.f32.mrf.mxu0
        %v3218 = vpop.f32.mrf.mxu0
        %v3219 = vpop.f32.mrf.mxu0
        %v3220 = vadd.f32 0.0, %v3219
        %v3221 = vpop.f32.mrf.mxu0
        %3222 = vmatprep.mubr.bf16.mxu0 0
        %3223 = vmatmul.mubr.bf16.gmra.mxu0 %v3019
        %v3224 = vpop.f32.mrf.mxu0
        %v3225 = vadd.f32 0.0, %v3224
        %v3226 = vpop.f32.mrf.mxu0
        %v3227 = vpop.f32.mrf.mxu0
        %v3228 = vpop.f32.mrf.mxu0
        %3229 = vdwg.mxu0
        %v3230 = vadd.f32 %v2859, %v3056
        %v3231 = vadd.f32 %v2860, %v3059
        %v3232 = vadd.f32 %v2861, %v3066
        %v3233 = vadd.f32 %v2862, %v3071
        %v3234 = vadd.f32 %v2863, %v3078
        %v3235 = vadd.f32 %v2864, %v3081
        %v3236 = vadd.f32 %v2865, %v3088
        %v3237 = vadd.f32 %v2866, %v3093
        %v3238 = vadd.f32 %v2867, %v3100
        %v3239 = vadd.f32 %v2868, %v3103
        %v3240 = vadd.f32 %v2869, %v3110
        %v3241 = vadd.f32 %v2870, %v3115
        %v3242 = vadd.f32 %v2871, %v3122
        %v3243 = vadd.f32 %v2872, %v3125
        %v3244 = vadd.f32 %v2873, %v3132
        %v3245 = vadd.f32 %v2874, %v3137
        %v3246 = vadd.f32 %v2875, %v3144
        %v3247 = vadd.f32 %v2876, %v3147
        %v3248 = vadd.f32 %v2877, %v3154
        %v3249 = vadd.f32 %v2878, %v3159
        %v3250 = vadd.f32 %v2879, %v3166
        %v3251 = vadd.f32 %v2880, %v3169
        %v3252 = vadd.f32 %v2881, %v3176
        %v3253 = vadd.f32 %v2882, %v3181
        %v3254 = vadd.f32 %v2883, %v3188
        %v3255 = vadd.f32 %v2884, %v3191
        %v3256 = vadd.f32 %v2885, %v3198
        %v3257 = vadd.f32 %v2886, %v3203
        %v3258 = vadd.f32 %v2887, %v3210
        %v3259 = vadd.f32 %v2888, %v3213
        %v3260 = vadd.f32 %v2889, %v3220
        %v3261 = vadd.f32 %v2890, %v3225
        %v3262 = vadd.f32 %v3230, %v3231
        %v3263 = vadd.f32 %v3262, %v3232
        %v3264 = vadd.f32 %v3263, %v3233
        %v3265 = vadd.f32 %v3264, %v3234
        %v3266 = vadd.f32 %v3265, %v3235
        %v3267 = vadd.f32 %v3266, %v3236
        %v3268 = vadd.f32 %v3267, %v3237
        %v3269 = vadd.f32 %v3268, %v3238
        %v3270 = vadd.f32 %v3269, %v3239
        %v3271 = vadd.f32 %v3270, %v3240
        %v3272 = vadd.f32 %v3271, %v3241
        %v3273 = vadd.f32 %v3272, %v3242
        %v3274 = vadd.f32 %v3273, %v3243
        %v3275 = vadd.f32 %v3274, %v3244
        %v3276 = vadd.f32 %v3275, %v3245
        %v3277 = vadd.f32 %v3276, %v3246
        %v3278 = vadd.f32 %v3277, %v3247
        %v3279 = vadd.f32 %v3278, %v3248
        %v3280 = vadd.f32 %v3279, %v3249
        %v3281 = vadd.f32 %v3280, %v3250
        %v3282 = vadd.f32 %v3281, %v3251
        %v3283 = vadd.f32 %v3282, %v3252
        %v3284 = vadd.f32 %v3283, %v3253
        %v3285 = vadd.f32 %v3284, %v3254
        %v3286 = vadd.f32 %v3285, %v3255
        %v3287 = vadd.f32 %v3286, %v3256
        %v3288 = vadd.f32 %v3287, %v3257
        %v3289 = vadd.f32 %v3288, %v3258
        %v3290 = vadd.f32 %v3289, %v3259
        %v3291 = vadd.f32 %v3290, %v3260
        %v3292 = vadd.f32 %v3291, %v3261
        %v3293 = vrot.slane %v3292, 4
        %v3294 = vadd.f32 %v3292, %v3293
        %v3295 = vrot.slane %v3294, 2
        %v3296 = vadd.f32 %v3294, %v3295
        %v3297 = vrot.slane %v3296, 1
        %v3298 = vadd.f32 %v3296, %v3297
        %v3299 = vadd.f32 %v1996, %v3298
        %v3300 = vmul.f32 %v3230, %v3230
        %v3301 = vmul.f32 %v3231, %v3231
        %v3302 = vmul.f32 %v3232, %v3232
        %v3303 = vmul.f32 %v3233, %v3233
        %v3304 = vmul.f32 %v3234, %v3234
        %v3305 = vmul.f32 %v3235, %v3235
        %v3306 = vmul.f32 %v3236, %v3236
        %v3307 = vmul.f32 %v3237, %v3237
        %v3308 = vmul.f32 %v3238, %v3238
        %v3309 = vmul.f32 %v3239, %v3239
        %v3310 = vmul.f32 %v3240, %v3240
        %v3311 = vmul.f32 %v3241, %v3241
        %v3312 = vmul.f32 %v3242, %v3242
        %v3313 = vmul.f32 %v3243, %v3243
        %v3314 = vmul.f32 %v3244, %v3244
        %v3315 = vmul.f32 %v3245, %v3245
        %v3316 = vmul.f32 %v3246, %v3246
        %v3317 = vmul.f32 %v3247, %v3247
        %v3318 = vmul.f32 %v3248, %v3248
        %v3319 = vmul.f32 %v3249, %v3249
        %v3320 = vmul.f32 %v3250, %v3250
        %v3321 = vmul.f32 %v3251, %v3251
        %v3322 = vmul.f32 %v3252, %v3252
        %v3323 = vmul.f32 %v3253, %v3253
        %v3324 = vmul.f32 %v3254, %v3254
        %v3325 = vmul.f32 %v3255, %v3255
        %v3326 = vmul.f32 %v3256, %v3256
        %v3327 = vmul.f32 %v3257, %v3257
        %v3328 = vmul.f32 %v3258, %v3258
        %v3329 = vmul.f32 %v3259, %v3259
        %v3330 = vmul.f32 %v3260, %v3260
        %v3331 = vmul.f32 %v3261, %v3261
        %v3332 = vadd.f32 %v3300, %v3301
        %v3333 = vadd.f32 %v3332, %v3302
        %v3334 = vadd.f32 %v3333, %v3303
        %v3335 = vadd.f32 %v3334, %v3304
        %v3336 = vadd.f32 %v3335, %v3305
        %v3337 = vadd.f32 %v3336, %v3306
        %v3338 = vadd.f32 %v3337, %v3307
        %v3339 = vadd.f32 %v3338, %v3308
        %v3340 = vadd.f32 %v3339, %v3309
        %v3341 = vadd.f32 %v3340, %v3310
        %v3342 = vadd.f32 %v3341, %v3311
        %v3343 = vadd.f32 %v3342, %v3312
        %v3344 = vadd.f32 %v3343, %v3313
        %v3345 = vadd.f32 %v3344, %v3314
        %v3346 = vadd.f32 %v3345, %v3315
        %v3347 = vadd.f32 %v3346, %v3316
        %v3348 = vadd.f32 %v3347, %v3317
        %v3349 = vadd.f32 %v3348, %v3318
        %v3350 = vadd.f32 %v3349, %v3319
        %v3351 = vadd.f32 %v3350, %v3320
        %v3352 = vadd.f32 %v3351, %v3321
        %v3353 = vadd.f32 %v3352, %v3322
        %v3354 = vadd.f32 %v3353, %v3323
        %v3355 = vadd.f32 %v3354, %v3324
        %v3356 = vadd.f32 %v3355, %v3325
        %v3357 = vadd.f32 %v3356, %v3326
        %v3358 = vadd.f32 %v3357, %v3327
        %v3359 = vadd.f32 %v3358, %v3328
        %v3360 = vadd.f32 %v3359, %v3329
        %v3361 = vadd.f32 %v3360, %v3330
        %v3362 = vadd.f32 %v3361, %v3331
        %v3363 = vrot.slane %v3362, 4
        %v3364 = vadd.f32 %v3362, %v3363
        %v3365 = vrot.slane %v3364, 2
        %v3366 = vadd.f32 %v3364, %v3365
        %v3367 = vrot.slane %v3366, 1
        %v3368 = vadd.f32 %v3366, %v3367
        %v3369 = vadd.f32 %v2066, %v3368
        %v3370 = vpack.c.bf16 %v3231, %v3230
        %v3371 = vpack.c.bf16 %v3233, %v3232
        %v3372 = vpack.c.bf16 %v3235, %v3234
        %v3373 = vpack.c.bf16 %v3237, %v3236
        %v3374 = vpack.c.bf16 %v3239, %v3238
        %v3375 = vpack.c.bf16 %v3241, %v3240
        %v3376 = vpack.c.bf16 %v3243, %v3242
        %v3377 = vpack.c.bf16 %v3245, %v3244
        %v3378 = vpack.c.bf16 %v3247, %v3246
        %v3379 = vpack.c.bf16 %v3249, %v3248
        %v3380 = vpack.c.bf16 %v3251, %v3250
        %v3381 = vpack.c.bf16 %v3253, %v3252
        %v3382 = vpack.c.bf16 %v3255, %v3254
        %v3383 = vpack.c.bf16 %v3257, %v3256
        %v3384 = vpack.c.bf16 %v3259, %v3258
        %v3385 = vpack.c.bf16 %v3261, %v3260
        %s3386 = scalar_lea.vmem %s1, 64
        %v3387 = vld [vmem:[%s3386] sm:$0xf]
        %v3388 = vld [vmem:[%s3386 + $0x4] sm:$0xf]
        %s3389 = scalar_lea.vmem %s1, 72
        %v3390 = vld [vmem:[%s3389] sm:$0xf]
        %v3391 = vld [vmem:[%s3389 + $0x4] sm:$0xf]
        %v3394 = vunpack.c.l.b16 %v3390
        %v3395 = vunpack.c.l.b16 %v3391
        %v3396 = vpack.c.b16 %v3395, %v3394
        %3398 = vmatprep.subr.bf16.mxu0 0
        %3399 = vmatpush1.bf16.msra.mxu0 0
        %3400 = vmatprep.subr.bf16.mxu0 0
        %3401 = vmatpush1.bf16.msra.mxu0 0
        %3402 = vmatprep.subr.bf16.mxu0 0
        %3403 = vmatpush1.bf16.msra.mxu0 0
        %3404 = vmatprep.subr.bf16.mxu0 0
        %3405 = vmatpush1.bf16.msra.mxu0 0
        %3406 = vmatprep.subr.bf16.mxu0 0
        %3407 = vmatpush1.bf16.msra.mxu0 0
        %3408 = vmatprep.subr.bf16.mxu0 0
        %3409 = vmatpush1.bf16.msra.mxu0 0
        %3410 = vmatprep.subr.bf16.mxu0 0
        %3411 = vmatpush1.bf16.msra.mxu0 0
        %3412 = vmatprep.subr.bf16.mxu0 0
        %3413 = vmatpush1.bf16.msra.mxu0 %v3396
        %3414 = vmatprep.subr.bf16.mxu0 0
        %3415 = vmatpush2.bf16.msra.mxu0 0
        %3416 = vmatprep.subr.bf16.mxu0 0
        %3417 = vmatpush2.bf16.msra.mxu0 0
        %3418 = vmatprep.subr.bf16.mxu0 0
        %3419 = vmatpush2.bf16.msra.mxu0 0
        %3420 = vmatprep.subr.bf16.mxu0 0
        %3421 = vmatpush2.bf16.msra.mxu0 0
        %3422 = vmatprep.subr.bf16.mxu0 0
        %3423 = vmatpush2.bf16.msra.mxu0 0
        %3424 = vmatprep.subr.bf16.mxu0 0
        %3425 = vmatpush2.bf16.msra.mxu0 0
        %3426 = vmatprep.subr.bf16.mxu0 0
        %3427 = vmatpush2.bf16.msra.mxu0 0
        %3428 = vmatprep.subr.bf16.mxu0 0
        %3429 = vmatpush2.bf16.msra.mxu0 0
        %3430 = vmatprep.mubr.bf16.mxu0 0
        %3431 = vmatmul.mubr.bf16.gmra.mxu0 %v1647
        %v3432 = vpop.f32.mrf.mxu0
        %v3433 = vadd.f32 0.0, %v3432
        %v3434 = vpop.f32.mrf.mxu0
        %v3435 = vpop.f32.mrf.mxu0
        %v3436 = vadd.f32 0.0, %v3435
        %v3437 = vpop.f32.mrf.mxu0
        %3438 = vmatprep.mubr.bf16.mxu0 0
        %3439 = vmatmul.mubr.bf16.gmra.mxu0 %v1650
        %v3440 = vpop.f32.mrf.mxu0
        %v3441 = vpop.f32.mrf.mxu0
        %v3442 = vpop.f32.mrf.mxu0
        %v3443 = vadd.f32 0.0, %v3442
        %v3444 = vpop.f32.mrf.mxu0
        %3445 = vmatprep.mubr.bf16.mxu0 0
        %3446 = vmatmul.mubr.bf16.gmra.mxu0 %v1653
        %v3447 = vpop.f32.mrf.mxu0
        %v3448 = vadd.f32 0.0, %v3447
        %v3449 = vpop.f32.mrf.mxu0
        %v3450 = vpop.f32.mrf.mxu0
        %v3451 = vpop.f32.mrf.mxu0
        %3452 = vmatprep.mubr.bf16.mxu0 0
        %3453 = vmatmul.mubr.bf16.gmra.mxu0 %v1656
        %v3454 = vpop.f32.mrf.mxu0
        %v3455 = vadd.f32 0.0, %v3454
        %v3456 = vpop.f32.mrf.mxu0
        %v3457 = vpop.f32.mrf.mxu0
        %v3458 = vadd.f32 0.0, %v3457
        %v3459 = vpop.f32.mrf.mxu0
        %3460 = vmatprep.mubr.bf16.mxu0 0
        %3461 = vmatmul.mubr.bf16.gmra.mxu0 %v1659
        %v3462 = vpop.f32.mrf.mxu0
        %v3463 = vpop.f32.mrf.mxu0
        %v3464 = vpop.f32.mrf.mxu0
        %v3465 = vadd.f32 0.0, %v3464
        %v3466 = vpop.f32.mrf.mxu0
        %3467 = vmatprep.mubr.bf16.mxu0 0
        %3468 = vmatmul.mubr.bf16.gmra.mxu0 %v1662
        %v3469 = vpop.f32.mrf.mxu0
        %v3470 = vadd.f32 0.0, %v3469
        %v3471 = vpop.f32.mrf.mxu0
        %v3472 = vpop.f32.mrf.mxu0
        %v3473 = vpop.f32.mrf.mxu0
        %3474 = vmatprep.mubr.bf16.mxu0 0
        %3475 = vmatmul.mubr.bf16.gmra.mxu0 %v1665
        %v3476 = vpop.f32.mrf.mxu0
        %v3477 = vadd.f32 0.0, %v3476
        %v3478 = vpop.f32.mrf.mxu0
        %v3479 = vpop.f32.mrf.mxu0
        %v3480 = vadd.f32 0.0, %v3479
        %v3481 = vpop.f32.mrf.mxu0
        %3482 = vmatprep.mubr.bf16.mxu0 0
        %3483 = vmatmul.mubr.bf16.gmra.mxu0 %v1668
        %v3484 = vpop.f32.mrf.mxu0
        %v3485 = vpop.f32.mrf.mxu0
        %v3486 = vpop.f32.mrf.mxu0
        %v3487 = vadd.f32 0.0, %v3486
        %v3488 = vpop.f32.mrf.mxu0
        %3489 = vmatprep.mubr.bf16.mxu0 0
        %3490 = vmatmul.mubr.bf16.gmra.mxu0 %v1671
        %v3491 = vpop.f32.mrf.mxu0
        %v3492 = vadd.f32 0.0, %v3491
        %v3493 = vpop.f32.mrf.mxu0
        %v3494 = vpop.f32.mrf.mxu0
        %v3495 = vpop.f32.mrf.mxu0
        %3496 = vmatprep.mubr.bf16.mxu0 0
        %3497 = vmatmul.mubr.bf16.gmra.mxu0 %v1674
        %v3498 = vpop.f32.mrf.mxu0
        %v3499 = vadd.f32 0.0, %v3498
        %v3500 = vpop.f32.mrf.mxu0
        %v3501 = vpop.f32.mrf.mxu0
        %v3502 = vadd.f32 0.0, %v3501
        %v3503 = vpop.f32.mrf.mxu0
        %3504 = vmatprep.mubr.bf16.mxu0 0
        %3505 = vmatmul.mubr.bf16.gmra.mxu0 %v1677
        %v3506 = vpop.f32.mrf.mxu0
        %v3507 = vpop.f32.mrf.mxu0
        %v3508 = vpop.f32.mrf.mxu0
        %v3509 = vadd.f32 0.0, %v3508
        %v3510 = vpop.f32.mrf.mxu0
        %3511 = vmatprep.mubr.bf16.mxu0 0
        %3512 = vmatmul.mubr.bf16.gmra.mxu0 %v1680
        %v3513 = vpop.f32.mrf.mxu0
        %v3514 = vadd.f32 0.0, %v3513
        %v3515 = vpop.f32.mrf.mxu0
        %v3516 = vpop.f32.mrf.mxu0
        %v3517 = vpop.f32.mrf.mxu0
        %3518 = vmatprep.mubr.bf16.mxu0 0
        %3519 = vmatmul.mubr.bf16.gmra.mxu0 %v1683
        %v3520 = vpop.f32.mrf.mxu0
        %v3521 = vadd.f32 0.0, %v3520
        %v3522 = vpop.f32.mrf.mxu0
        %v3523 = vpop.f32.mrf.mxu0
        %v3524 = vadd.f32 0.0, %v3523
        %v3525 = vpop.f32.mrf.mxu0
        %3526 = vmatprep.mubr.bf16.mxu0 0
        %3527 = vmatmul.mubr.bf16.gmra.mxu0 %v1686
        %v3528 = vpop.f32.mrf.mxu0
        %v3529 = vpop.f32.mrf.mxu0
        %v3530 = vpop.f32.mrf.mxu0
        %v3531 = vadd.f32 0.0, %v3530
        %v3532 = vpop.f32.mrf.mxu0
        %3533 = vmatprep.mubr.bf16.mxu0 0
        %3534 = vmatmul.mubr.bf16.gmra.mxu0 %v1689
        %v3535 = vpop.f32.mrf.mxu0
        %v3536 = vadd.f32 0.0, %v3535
        %v3537 = vpop.f32.mrf.mxu0
        %v3538 = vpop.f32.mrf.mxu0
        %v3539 = vpop.f32.mrf.mxu0
        %3540 = vmatprep.mubr.bf16.mxu0 0
        %3541 = vmatmul.mubr.bf16.gmra.mxu0 %v1692
        %v3542 = vpop.f32.mrf.mxu0
        %v3543 = vadd.f32 0.0, %v3542
        %v3544 = vpop.f32.mrf.mxu0
        %v3545 = vpop.f32.mrf.mxu0
        %v3546 = vadd.f32 0.0, %v3545
        %v3547 = vpop.f32.mrf.mxu0
        %3548 = vmatprep.mubr.bf16.mxu0 0
        %3549 = vmatmul.mubr.bf16.gmra.mxu0 %v1695
        %v3550 = vpop.f32.mrf.mxu0
        %v3551 = vpop.f32.mrf.mxu0
        %v3552 = vpop.f32.mrf.mxu0
        %v3553 = vadd.f32 0.0, %v3552
        %v3554 = vpop.f32.mrf.mxu0
        %3555 = vmatprep.mubr.bf16.mxu0 0
        %3556 = vmatmul.mubr.bf16.gmra.mxu0 %v1698
        %v3557 = vpop.f32.mrf.mxu0
        %v3558 = vadd.f32 0.0, %v3557
        %v3559 = vpop.f32.mrf.mxu0
        %v3560 = vpop.f32.mrf.mxu0
        %v3561 = vpop.f32.mrf.mxu0
        %3562 = vmatprep.mubr.bf16.mxu0 0
        %3563 = vmatmul.mubr.bf16.gmra.mxu0 %v1701
        %v3564 = vpop.f32.mrf.mxu0
        %v3565 = vadd.f32 0.0, %v3564
        %v3566 = vpop.f32.mrf.mxu0
        %v3567 = vpop.f32.mrf.mxu0
        %v3568 = vadd.f32 0.0, %v3567
        %v3569 = vpop.f32.mrf.mxu0
        %3570 = vmatprep.mubr.bf16.mxu0 0
        %3571 = vmatmul.mubr.bf16.gmra.mxu0 %v1704
        %v3572 = vpop.f32.mrf.mxu0
        %v3573 = vpop.f32.mrf.mxu0
        %v3574 = vpop.f32.mrf.mxu0
        %v3575 = vadd.f32 0.0, %v3574
        %v3576 = vpop.f32.mrf.mxu0
        %3577 = vmatprep.mubr.bf16.mxu0 0
        %3578 = vmatmul.mubr.bf16.gmra.mxu0 %v1707
        %v3579 = vpop.f32.mrf.mxu0
        %v3580 = vadd.f32 0.0, %v3579
        %v3581 = vpop.f32.mrf.mxu0
        %v3582 = vpop.f32.mrf.mxu0
        %v3583 = vpop.f32.mrf.mxu0
        %3584 = vmatprep.mubr.bf16.mxu0 0
        %3585 = vmatmul.mubr.bf16.gmra.mxu0 %v1710
        %v3586 = vpop.f32.mrf.mxu0
        %v3587 = vadd.f32 0.0, %v3586
        %v3588 = vpop.f32.mrf.mxu0
        %v3589 = vpop.f32.mrf.mxu0
        %v3590 = vadd.f32 0.0, %v3589
        %v3591 = vpop.f32.mrf.mxu0
        %3592 = vmatprep.mubr.bf16.mxu0 0
        %3593 = vmatmul.mubr.bf16.gmra.mxu0 %v1713
        %v3594 = vpop.f32.mrf.mxu0
        %v3595 = vpop.f32.mrf.mxu0
        %v3596 = vpop.f32.mrf.mxu0
        %v3597 = vadd.f32 0.0, %v3596
        %v3598 = vpop.f32.mrf.mxu0
        %3599 = vmatprep.mubr.bf16.mxu0 0
        %3600 = vmatmul.mubr.bf16.gmra.mxu0 %v1716
        %v3601 = vpop.f32.mrf.mxu0
        %v3602 = vadd.f32 0.0, %v3601
        %v3603 = vpop.f32.mrf.mxu0
        %v3604 = vpop.f32.mrf.mxu0
        %v3605 = vpop.f32.mrf.mxu0
        %3606 = vdwg.mxu0
        %v3609 = vunpack.c.l.b16 %v3387
        %v3610 = vunpack.c.l.b16 %v3388
        %v3611 = vpack.c.b16 %v3610, %v3609
        %3613 = vmatprep.subr.bf16.mxu0 0
        %3614 = vmatpush1.bf16.msra.mxu0 0
        %3615 = vmatprep.subr.bf16.mxu0 0
        %3616 = vmatpush1.bf16.msra.mxu0 0
        %3617 = vmatprep.subr.bf16.mxu0 0
        %3618 = vmatpush1.bf16.msra.mxu0 0
        %3619 = vmatprep.subr.bf16.mxu0 0
        %3620 = vmatpush1.bf16.msra.mxu0 0
        %3621 = vmatprep.subr.bf16.mxu0 0
        %3622 = vmatpush1.bf16.msra.mxu0 0
        %3623 = vmatprep.subr.bf16.mxu0 0
        %3624 = vmatpush1.bf16.msra.mxu0 0
        %3625 = vmatprep.subr.bf16.mxu0 0
        %3626 = vmatpush1.bf16.msra.mxu0 0
        %3627 = vmatprep.subr.bf16.mxu0 0
        %3628 = vmatpush1.bf16.msra.mxu0 %v3611
        %3629 = vmatprep.subr.bf16.mxu0 0
        %3630 = vmatpush2.bf16.msra.mxu0 0
        %3631 = vmatprep.subr.bf16.mxu0 0
        %3632 = vmatpush2.bf16.msra.mxu0 0
        %3633 = vmatprep.subr.bf16.mxu0 0
        %3634 = vmatpush2.bf16.msra.mxu0 0
        %3635 = vmatprep.subr.bf16.mxu0 0
        %3636 = vmatpush2.bf16.msra.mxu0 0
        %3637 = vmatprep.subr.bf16.mxu0 0
        %3638 = vmatpush2.bf16.msra.mxu0 0
        %3639 = vmatprep.subr.bf16.mxu0 0
        %3640 = vmatpush2.bf16.msra.mxu0 0
        %3641 = vmatprep.subr.bf16.mxu0 0
        %3642 = vmatpush2.bf16.msra.mxu0 0
        %3643 = vmatprep.subr.bf16.mxu0 0
        %3644 = vmatpush2.bf16.msra.mxu0 0
        %3645 = vmatprep.mubr.bf16.mxu0 0
        %3646 = vmatmul.mubr.bf16.gmra.mxu0 %v1150
        %v3647 = vpop.f32.mrf.mxu0
        %v3648 = vadd.f32 %v3433, %v3647
        %v3649 = vpop.f32.mrf.mxu0
        %v3650 = vpop.f32.mrf.mxu0
        %v3651 = vadd.f32 %v3436, %v3650
        %v3652 = vpop.f32.mrf.mxu0
        %3653 = vmatprep.mubr.bf16.mxu0 0
        %3654 = vmatmul.mubr.bf16.gmra.mxu0 %v1153
        %v3655 = vpop.f32.mrf.mxu0
        %v3656 = vpop.f32.mrf.mxu0
        %v3657 = vpop.f32.mrf.mxu0
        %v3658 = vadd.f32 %v3443, %v3657
        %v3659 = vpop.f32.mrf.mxu0
        %3660 = vmatprep.mubr.bf16.mxu0 0
        %3661 = vmatmul.mubr.bf16.gmra.mxu0 %v1156
        %v3662 = vpop.f32.mrf.mxu0
        %v3663 = vadd.f32 %v3448, %v3662
        %v3664 = vpop.f32.mrf.mxu0
        %v3665 = vpop.f32.mrf.mxu0
        %v3666 = vpop.f32.mrf.mxu0
        %3667 = vmatprep.mubr.bf16.mxu0 0
        %3668 = vmatmul.mubr.bf16.gmra.mxu0 %v1159
        %v3669 = vpop.f32.mrf.mxu0
        %v3670 = vadd.f32 %v3455, %v3669
        %v3671 = vpop.f32.mrf.mxu0
        %v3672 = vpop.f32.mrf.mxu0
        %v3673 = vadd.f32 %v3458, %v3672
        %v3674 = vpop.f32.mrf.mxu0
        %3675 = vmatprep.mubr.bf16.mxu0 0
        %3676 = vmatmul.mubr.bf16.gmra.mxu0 %v1162
        %v3677 = vpop.f32.mrf.mxu0
        %v3678 = vpop.f32.mrf.mxu0
        %v3679 = vpop.f32.mrf.mxu0
        %v3680 = vadd.f32 %v3465, %v3679
        %v3681 = vpop.f32.mrf.mxu0
        %3682 = vmatprep.mubr.bf16.mxu0 0
        %3683 = vmatmul.mubr.bf16.gmra.mxu0 %v1165
        %v3684 = vpop.f32.mrf.mxu0
        %v3685 = vadd.f32 %v3470, %v3684
        %v3686 = vpop.f32.mrf.mxu0
        %v3687 = vpop.f32.mrf.mxu0
        %v3688 = vpop.f32.mrf.mxu0
        %3689 = vmatprep.mubr.bf16.mxu0 0
        %3690 = vmatmul.mubr.bf16.gmra.mxu0 %v1168
        %v3691 = vpop.f32.mrf.mxu0
        %v3692 = vadd.f32 %v3477, %v3691
        %v3693 = vpop.f32.mrf.mxu0
        %v3694 = vpop.f32.mrf.mxu0
        %v3695 = vadd.f32 %v3480, %v3694
        %v3696 = vpop.f32.mrf.mxu0
        %3697 = vmatprep.mubr.bf16.mxu0 0
        %3698 = vmatmul.mubr.bf16.gmra.mxu0 %v1171
        %v3699 = vpop.f32.mrf.mxu0
        %v3700 = vpop.f32.mrf.mxu0
        %v3701 = vpop.f32.mrf.mxu0
        %v3702 = vadd.f32 %v3487, %v3701
        %v3703 = vpop.f32.mrf.mxu0
        %3704 = vmatprep.mubr.bf16.mxu0 0
        %3705 = vmatmul.mubr.bf16.gmra.mxu0 %v1174
        %v3706 = vpop.f32.mrf.mxu0
        %v3707 = vadd.f32 %v3492, %v3706
        %v3708 = vpop.f32.mrf.mxu0
        %v3709 = vpop.f32.mrf.mxu0
        %v3710 = vpop.f32.mrf.mxu0
        %3711 = vmatprep.mubr.bf16.mxu0 0
        %3712 = vmatmul.mubr.bf16.gmra.mxu0 %v1177
        %v3713 = vpop.f32.mrf.mxu0
        %v3714 = vadd.f32 %v3499, %v3713
        %v3715 = vpop.f32.mrf.mxu0
        %v3716 = vpop.f32.mrf.mxu0
        %v3717 = vadd.f32 %v3502, %v3716
        %v3718 = vpop.f32.mrf.mxu0
        %3719 = vmatprep.mubr.bf16.mxu0 0
        %3720 = vmatmul.mubr.bf16.gmra.mxu0 %v1180
        %v3721 = vpop.f32.mrf.mxu0
        %v3722 = vpop.f32.mrf.mxu0
        %v3723 = vpop.f32.mrf.mxu0
        %v3724 = vadd.f32 %v3509, %v3723
        %v3725 = vpop.f32.mrf.mxu0
        %3726 = vmatprep.mubr.bf16.mxu0 0
        %3727 = vmatmul.mubr.bf16.gmra.mxu0 %v1183
        %v3728 = vpop.f32.mrf.mxu0
        %v3729 = vadd.f32 %v3514, %v3728
        %v3730 = vpop.f32.mrf.mxu0
        %v3731 = vpop.f32.mrf.mxu0
        %v3732 = vpop.f32.mrf.mxu0
        %3733 = vmatprep.mubr.bf16.mxu0 0
        %3734 = vmatmul.mubr.bf16.gmra.mxu0 %v1186
        %v3735 = vpop.f32.mrf.mxu0
        %v3736 = vadd.f32 %v3521, %v3735
        %v3737 = vpop.f32.mrf.mxu0
        %v3738 = vpop.f32.mrf.mxu0
        %v3739 = vadd.f32 %v3524, %v3738
        %v3740 = vpop.f32.mrf.mxu0
        %3741 = vmatprep.mubr.bf16.mxu0 0
        %3742 = vmatmul.mubr.bf16.gmra.mxu0 %v1189
        %v3743 = vpop.f32.mrf.mxu0
        %v3744 = vpop.f32.mrf.mxu0
        %v3745 = vpop.f32.mrf.mxu0
        %v3746 = vadd.f32 %v3531, %v3745
        %v3747 = vpop.f32.mrf.mxu0
        %3748 = vmatprep.mubr.bf16.mxu0 0
        %3749 = vmatmul.mubr.bf16.gmra.mxu0 %v1192
        %v3750 = vpop.f32.mrf.mxu0
        %v3751 = vadd.f32 %v3536, %v3750
        %v3752 = vpop.f32.mrf.mxu0
        %v3753 = vpop.f32.mrf.mxu0
        %v3754 = vpop.f32.mrf.mxu0
        %3755 = vmatprep.mubr.bf16.mxu0 0
        %3756 = vmatmul.mubr.bf16.gmra.mxu0 %v1195
        %v3757 = vpop.f32.mrf.mxu0
        %v3758 = vadd.f32 %v3543, %v3757
        %v3759 = vpop.f32.mrf.mxu0
        %v3760 = vpop.f32.mrf.mxu0
        %v3761 = vadd.f32 %v3546, %v3760
        %v3762 = vpop.f32.mrf.mxu0
        %3763 = vmatprep.mubr.bf16.mxu0 0
        %3764 = vmatmul.mubr.bf16.gmra.mxu0 %v1198
        %v3765 = vpop.f32.mrf.mxu0
        %v3766 = vpop.f32.mrf.mxu0
        %v3767 = vpop.f32.mrf.mxu0
        %v3768 = vadd.f32 %v3553, %v3767
        %v3769 = vpop.f32.mrf.mxu0
        %3770 = vmatprep.mubr.bf16.mxu0 0
        %3771 = vmatmul.mubr.bf16.gmra.mxu0 %v1201
        %v3772 = vpop.f32.mrf.mxu0
        %v3773 = vadd.f32 %v3558, %v3772
        %v3774 = vpop.f32.mrf.mxu0
        %v3775 = vpop.f32.mrf.mxu0
        %v3776 = vpop.f32.mrf.mxu0
        %3777 = vmatprep.mubr.bf16.mxu0 0
        %3778 = vmatmul.mubr.bf16.gmra.mxu0 %v1204
        %v3779 = vpop.f32.mrf.mxu0
        %v3780 = vadd.f32 %v3565, %v3779
        %v3781 = vpop.f32.mrf.mxu0
        %v3782 = vpop.f32.mrf.mxu0
        %v3783 = vadd.f32 %v3568, %v3782
        %v3784 = vpop.f32.mrf.mxu0
        %3785 = vmatprep.mubr.bf16.mxu0 0
        %3786 = vmatmul.mubr.bf16.gmra.mxu0 %v1207
        %v3787 = vpop.f32.mrf.mxu0
        %v3788 = vpop.f32.mrf.mxu0
        %v3789 = vpop.f32.mrf.mxu0
        %v3790 = vadd.f32 %v3575, %v3789
        %v3791 = vpop.f32.mrf.mxu0
        %3792 = vmatprep.mubr.bf16.mxu0 0
        %3793 = vmatmul.mubr.bf16.gmra.mxu0 %v1210
        %v3794 = vpop.f32.mrf.mxu0
        %v3795 = vadd.f32 %v3580, %v3794
        %v3796 = vpop.f32.mrf.mxu0
        %v3797 = vpop.f32.mrf.mxu0
        %v3798 = vpop.f32.mrf.mxu0
        %3799 = vmatprep.mubr.bf16.mxu0 0
        %3800 = vmatmul.mubr.bf16.gmra.mxu0 %v1213
        %v3801 = vpop.f32.mrf.mxu0
        %v3802 = vadd.f32 %v3587, %v3801
        %v3803 = vpop.f32.mrf.mxu0
        %v3804 = vpop.f32.mrf.mxu0
        %v3805 = vadd.f32 %v3590, %v3804
        %v3806 = vpop.f32.mrf.mxu0
        %3807 = vmatprep.mubr.bf16.mxu0 0
        %3808 = vmatmul.mubr.bf16.gmra.mxu0 %v1216
        %v3809 = vpop.f32.mrf.mxu0
        %v3810 = vpop.f32.mrf.mxu0
        %v3811 = vpop.f32.mrf.mxu0
        %v3812 = vadd.f32 %v3597, %v3811
        %v3813 = vpop.f32.mrf.mxu0
        %3814 = vmatprep.mubr.bf16.mxu0 0
        %3815 = vmatmul.mubr.bf16.gmra.mxu0 %v1219
        %v3816 = vpop.f32.mrf.mxu0
        %v3817 = vadd.f32 %v3602, %v3816
        %v3818 = vpop.f32.mrf.mxu0
        %v3819 = vpop.f32.mrf.mxu0
        %v3820 = vpop.f32.mrf.mxu0
        %3821 = vdwg.mxu0
        %s3822 = scalar_lea.vmem %s1, 80
        %v3823 = vld [vmem:[%s3822] sm:$0xf]
        %v3824 = vld [vmem:[%s3822 + $0x4] sm:$0xf]
        %v3827 = vunpack.c.l.b16 %v233
        %v3828 = vunpack.c.l.b16 %v234
        %v3829 = vpack.c.b16 %v1117, %v338
        %v3830 = vpack.c.b16 %v1466, %v1118
        %v3831 = vpack.c.b16 %v3828, %v3827
        %v3834 = vunpack.c.l.b16 %v3823
        %v3835 = vunpack.c.l.b16 %v3824
        %v3836 = vpack.c.b16 %v3835, %v3834
        %v3839 = vsel %vm567, %v3829, 0
        %v3842 = vsel %vm567, %v3830, 0
        %v3845 = vsel %vm567, %v3831, 0
        %3847 = vmatprep.subr.bf16.mxu0 0
        %3848 = vmatpush1.bf16.msra.mxu0 0
        %3849 = vmatprep.subr.bf16.mxu0 0
        %3850 = vmatpush1.bf16.msra.mxu0 0
        %3851 = vmatprep.subr.bf16.mxu0 0
        %3852 = vmatpush1.bf16.msra.mxu0 0
        %3853 = vmatprep.subr.bf16.mxu0 0
        %3854 = vmatpush1.bf16.msra.mxu0 0
        %3855 = vmatprep.subr.bf16.mxu0 0
        %3856 = vmatpush1.bf16.msra.mxu0 0
        %3857 = vmatprep.subr.bf16.mxu0 0
        %3858 = vmatpush1.bf16.msra.mxu0 0
        %3859 = vmatprep.subr.bf16.mxu0 0
        %3860 = vmatpush1.bf16.msra.mxu0 0
        %3861 = vmatprep.subr.bf16.mxu0 0
        %3862 = vmatpush1.bf16.msra.mxu0 %v3836
        %3863 = vmatprep.subr.bf16.mxu0 0
        %3864 = vmatpush2.bf16.msra.mxu0 0
        %3865 = vmatprep.subr.bf16.mxu0 0
        %3866 = vmatpush2.bf16.msra.mxu0 0
        %3867 = vmatprep.subr.bf16.mxu0 0
        %3868 = vmatpush2.bf16.msra.mxu0 0
        %3869 = vmatprep.subr.bf16.mxu0 0
        %3870 = vmatpush2.bf16.msra.mxu0 0
        %3871 = vmatprep.subr.bf16.mxu0 0
        %3872 = vmatpush2.bf16.msra.mxu0 0
        %3873 = vmatprep.subr.bf16.mxu0 0
        %3874 = vmatpush2.bf16.msra.mxu0 0
        %3875 = vmatprep.subr.bf16.mxu0 0
        %3876 = vmatpush2.bf16.msra.mxu0 0
        %3877 = vmatprep.subr.bf16.mxu0 0
        %3878 = vmatpush2.bf16.msra.mxu0 0
        %3879 = vmatprep.mubr.bf16.mxu0 0
        %3880 = vmatmul.mubr.bf16.gmra.mxu0 %v861
        %v3881 = vpop.f32.mrf.mxu0
        %v3882 = vadd.f32 0.0, %v3881
        %v3883 = vpop.f32.mrf.mxu0
        %v3884 = vpop.f32.mrf.mxu0
        %v3885 = vadd.f32 0.0, %v3884
        %v3886 = vpop.f32.mrf.mxu0
        %3887 = vmatprep.mubr.bf16.mxu0 0
        %3888 = vmatmul.mubr.bf16.gmra.mxu0 %v863
        %v3889 = vpop.f32.mrf.mxu0
        %v3890 = vpop.f32.mrf.mxu0
        %v3891 = vpop.f32.mrf.mxu0
        %v3892 = vadd.f32 0.0, %v3891
        %v3893 = vpop.f32.mrf.mxu0
        %3894 = vmatprep.mubr.bf16.mxu0 0
        %3895 = vmatmul.mubr.bf16.gmra.mxu0 %v865
        %v3896 = vpop.f32.mrf.mxu0
        %v3897 = vadd.f32 0.0, %v3896
        %v3898 = vpop.f32.mrf.mxu0
        %v3899 = vpop.f32.mrf.mxu0
        %v3900 = vpop.f32.mrf.mxu0
        %3901 = vmatprep.mubr.bf16.mxu0 0
        %3902 = vmatmul.mubr.bf16.gmra.mxu0 %v867
        %v3903 = vpop.f32.mrf.mxu0
        %v3904 = vadd.f32 0.0, %v3903
        %v3905 = vpop.f32.mrf.mxu0
        %v3906 = vpop.f32.mrf.mxu0
        %v3907 = vadd.f32 0.0, %v3906
        %v3908 = vpop.f32.mrf.mxu0
        %3909 = vmatprep.mubr.bf16.mxu0 0
        %3910 = vmatmul.mubr.bf16.gmra.mxu0 %v869
        %v3911 = vpop.f32.mrf.mxu0
        %v3912 = vpop.f32.mrf.mxu0
        %v3913 = vpop.f32.mrf.mxu0
        %v3914 = vadd.f32 0.0, %v3913
        %v3915 = vpop.f32.mrf.mxu0
        %3916 = vmatprep.mubr.bf16.mxu0 0
        %3917 = vmatmul.mubr.bf16.gmra.mxu0 %v871
        %v3918 = vpop.f32.mrf.mxu0
        %v3919 = vadd.f32 0.0, %v3918
        %v3920 = vpop.f32.mrf.mxu0
        %v3921 = vpop.f32.mrf.mxu0
        %v3922 = vpop.f32.mrf.mxu0
        %3923 = vmatprep.mubr.bf16.mxu0 0
        %3924 = vmatmul.mubr.bf16.gmra.mxu0 %v873
        %v3925 = vpop.f32.mrf.mxu0
        %v3926 = vadd.f32 0.0, %v3925
        %v3927 = vpop.f32.mrf.mxu0
        %v3928 = vpop.f32.mrf.mxu0
        %v3929 = vadd.f32 0.0, %v3928
        %v3930 = vpop.f32.mrf.mxu0
        %3931 = vmatprep.mubr.bf16.mxu0 0
        %3932 = vmatmul.mubr.bf16.gmra.mxu0 %v875
        %v3933 = vpop.f32.mrf.mxu0
        %v3934 = vpop.f32.mrf.mxu0
        %v3935 = vpop.f32.mrf.mxu0
        %v3936 = vadd.f32 0.0, %v3935
        %v3937 = vpop.f32.mrf.mxu0
        %3938 = vmatprep.mubr.bf16.mxu0 0
        %3939 = vmatmul.mubr.bf16.gmra.mxu0 %v877
        %v3940 = vpop.f32.mrf.mxu0
        %v3941 = vadd.f32 0.0, %v3940
        %v3942 = vpop.f32.mrf.mxu0
        %v3943 = vpop.f32.mrf.mxu0
        %v3944 = vpop.f32.mrf.mxu0
        %3945 = vmatprep.mubr.bf16.mxu0 0
        %3946 = vmatmul.mubr.bf16.gmra.mxu0 %v879
        %v3947 = vpop.f32.mrf.mxu0
        %v3948 = vadd.f32 0.0, %v3947
        %v3949 = vpop.f32.mrf.mxu0
        %v3950 = vpop.f32.mrf.mxu0
        %v3951 = vadd.f32 0.0, %v3950
        %v3952 = vpop.f32.mrf.mxu0
        %3953 = vmatprep.mubr.bf16.mxu0 0
        %3954 = vmatmul.mubr.bf16.gmra.mxu0 %v881
        %v3955 = vpop.f32.mrf.mxu0
        %v3956 = vpop.f32.mrf.mxu0
        %v3957 = vpop.f32.mrf.mxu0
        %v3958 = vadd.f32 0.0, %v3957
        %v3959 = vpop.f32.mrf.mxu0
        %3960 = vmatprep.mubr.bf16.mxu0 0
        %3961 = vmatmul.mubr.bf16.gmra.mxu0 %v883
        %v3962 = vpop.f32.mrf.mxu0
        %v3963 = vadd.f32 0.0, %v3962
        %v3964 = vpop.f32.mrf.mxu0
        %v3965 = vpop.f32.mrf.mxu0
        %v3966 = vpop.f32.mrf.mxu0
        %3967 = vmatprep.mubr.bf16.mxu0 0
        %3968 = vmatmul.mubr.bf16.gmra.mxu0 %v885
        %v3969 = vpop.f32.mrf.mxu0
        %v3970 = vadd.f32 0.0, %v3969
        %v3971 = vpop.f32.mrf.mxu0
        %v3972 = vpop.f32.mrf.mxu0
        %v3973 = vadd.f32 0.0, %v3972
        %v3974 = vpop.f32.mrf.mxu0
        %3975 = vmatprep.mubr.bf16.mxu0 0
        %3976 = vmatmul.mubr.bf16.gmra.mxu0 %v887
        %v3977 = vpop.f32.mrf.mxu0
        %v3978 = vpop.f32.mrf.mxu0
        %v3979 = vpop.f32.mrf.mxu0
        %v3980 = vadd.f32 0.0, %v3979
        %v3981 = vpop.f32.mrf.mxu0
        %3982 = vmatprep.mubr.bf16.mxu0 0
        %3983 = vmatmul.mubr.bf16.gmra.mxu0 %v889
        %v3984 = vpop.f32.mrf.mxu0
        %v3985 = vadd.f32 0.0, %v3984
        %v3986 = vpop.f32.mrf.mxu0
        %v3987 = vpop.f32.mrf.mxu0
        %v3988 = vpop.f32.mrf.mxu0
        %3989 = vmatprep.mubr.bf16.mxu0 0
        %3990 = vmatmul.mubr.bf16.gmra.mxu0 %v891
        %v3991 = vpop.f32.mrf.mxu0
        %v3992 = vadd.f32 0.0, %v3991
        %v3993 = vpop.f32.mrf.mxu0
        %v3994 = vpop.f32.mrf.mxu0
        %v3995 = vadd.f32 0.0, %v3994
        %v3996 = vpop.f32.mrf.mxu0
        %3997 = vmatprep.mubr.bf16.mxu0 0
        %3998 = vmatmul.mubr.bf16.gmra.mxu0 %v893
        %v3999 = vpop.f32.mrf.mxu0
        %v4000 = vpop.f32.mrf.mxu0
        %v4001 = vpop.f32.mrf.mxu0
        %v4002 = vadd.f32 0.0, %v4001
        %v4003 = vpop.f32.mrf.mxu0
        %4004 = vmatprep.mubr.bf16.mxu0 0
        %4005 = vmatmul.mubr.bf16.gmra.mxu0 %v895
        %v4006 = vpop.f32.mrf.mxu0
        %v4007 = vadd.f32 0.0, %v4006
        %v4008 = vpop.f32.mrf.mxu0
        %v4009 = vpop.f32.mrf.mxu0
        %v4010 = vpop.f32.mrf.mxu0
        %4011 = vmatprep.mubr.bf16.mxu0 0
        %4012 = vmatmul.mubr.bf16.gmra.mxu0 %v897
        %v4013 = vpop.f32.mrf.mxu0
        %v4014 = vadd.f32 0.0, %v4013
        %v4015 = vpop.f32.mrf.mxu0
        %v4016 = vpop.f32.mrf.mxu0
        %v4017 = vadd.f32 0.0, %v4016
        %v4018 = vpop.f32.mrf.mxu0
        %4019 = vmatprep.mubr.bf16.mxu0 0
        %4020 = vmatmul.mubr.bf16.gmra.mxu0 %v899
        %v4021 = vpop.f32.mrf.mxu0
        %v4022 = vpop.f32.mrf.mxu0
        %v4023 = vpop.f32.mrf.mxu0
        %v4024 = vadd.f32 0.0, %v4023
        %v4025 = vpop.f32.mrf.mxu0
        %4026 = vmatprep.mubr.bf16.mxu0 0
        %4027 = vmatmul.mubr.bf16.gmra.mxu0 %v901
        %v4028 = vpop.f32.mrf.mxu0
        %v4029 = vadd.f32 0.0, %v4028
        %v4030 = vpop.f32.mrf.mxu0
        %v4031 = vpop.f32.mrf.mxu0
        %v4032 = vpop.f32.mrf.mxu0
        %4033 = vmatprep.mubr.bf16.mxu0 0
        %4034 = vmatmul.mubr.bf16.gmra.mxu0 %v3839
        %v4035 = vpop.f32.mrf.mxu0
        %v4036 = vadd.f32 0.0, %v4035
        %v4037 = vpop.f32.mrf.mxu0
        %v4038 = vpop.f32.mrf.mxu0
        %v4039 = vadd.f32 0.0, %v4038
        %v4040 = vpop.f32.mrf.mxu0
        %4041 = vmatprep.mubr.bf16.mxu0 0
        %4042 = vmatmul.mubr.bf16.gmra.mxu0 %v3842
        %v4043 = vpop.f32.mrf.mxu0
        %v4044 = vpop.f32.mrf.mxu0
        %v4045 = vpop.f32.mrf.mxu0
        %v4046 = vadd.f32 0.0, %v4045
        %v4047 = vpop.f32.mrf.mxu0
        %4048 = vmatprep.mubr.bf16.mxu0 0
        %4049 = vmatmul.mubr.bf16.gmra.mxu0 %v3845
        %v4050 = vpop.f32.mrf.mxu0
        %v4051 = vadd.f32 0.0, %v4050
        %v4052 = vpop.f32.mrf.mxu0
        %v4053 = vpop.f32.mrf.mxu0
        %v4054 = vpop.f32.mrf.mxu0
        %4055 = vdwg.mxu0
        %v4056 = vadd.f32 %v3648, %v3882
        %v4057 = vadd.f32 %v3651, %v3885
        %v4058 = vadd.f32 %v3658, %v3892
        %v4059 = vadd.f32 %v3663, %v3897
        %v4060 = vadd.f32 %v3670, %v3904
        %v4061 = vadd.f32 %v3673, %v3907
        %v4062 = vadd.f32 %v3680, %v3914
        %v4063 = vadd.f32 %v3685, %v3919
        %v4064 = vadd.f32 %v3692, %v3926
        %v4065 = vadd.f32 %v3695, %v3929
        %v4066 = vadd.f32 %v3702, %v3936
        %v4067 = vadd.f32 %v3707, %v3941
        %v4068 = vadd.f32 %v3714, %v3948
        %v4069 = vadd.f32 %v3717, %v3951
        %v4070 = vadd.f32 %v3724, %v3958
        %v4071 = vadd.f32 %v3729, %v3963
        %v4072 = vadd.f32 %v3736, %v3970
        %v4073 = vadd.f32 %v3739, %v3973
        %v4074 = vadd.f32 %v3746, %v3980
        %v4075 = vadd.f32 %v3751, %v3985
        %v4076 = vadd.f32 %v3758, %v3992
        %v4077 = vadd.f32 %v3761, %v3995
        %v4078 = vadd.f32 %v3768, %v4002
        %v4079 = vadd.f32 %v3773, %v4007
        %v4080 = vadd.f32 %v3780, %v4014
        %v4081 = vadd.f32 %v3783, %v4017
        %v4082 = vadd.f32 %v3790, %v4024
        %v4083 = vadd.f32 %v3795, %v4029
        %v4084 = vadd.f32 %v3802, %v4036
        %v4085 = vadd.f32 %v3805, %v4039
        %v4086 = vadd.f32 %v3812, %v4046
        %v4087 = vadd.f32 %v3817, %v4051
        %s4088 = scalar_lea.vmem %s1, 88
        %v4089 = vld [vmem:[%s4088] sm:$0xf]
        %v4090 = vld [vmem:[%s4088 + $0x4] sm:$0xf]
        %v4092 = vunpack.c.l.b16 %v235
        %v4093 = vpack.c.b16 %v4092, %v4092
        %v4094 = vshll.u32 %v3829, 16
        %v4096 = vrot.slane %v4094, 1
        %v4097 = vsel %vm364, %v555, %v4096
        %v4098 = vshrl.u32 %v3829, 16
        %v4100 = vor.u32 %v4098, %v4096
        %v4101 = vshll.u32 %v3830, 16
        %v4103 = vrot.slane %v4101, 1
        %v4104 = vsel %vm364, %v4100, %v4103
        %v4105 = vshrl.u32 %v3830, 16
        %v4107 = vor.u32 %v4105, %v4103
        %v4108 = vshll.u32 %v3831, 16
        %v4110 = vrot.slane %v4108, 1
        %v4111 = vsel %vm364, %v4107, %v4110
        %v4112 = vshrl.u32 %v3831, 16
        %v4114 = vor.u32 %v4112, %v4110
        %v4116 = vshll.u32 %v4093, 16
        %v4118 = vrot.slane %v4116, 1
        %v4119 = vsel %vm364, %v4114, %v4118
        %v4122 = vunpack.c.l.b16 %v4089
        %v4123 = vunpack.c.l.b16 %v4090
        %v4124 = vpack.c.b16 %v4123, %v4122
        %v4127 = vsel %vm567, %v4097, 0
        %v4130 = vsel %vm567, %v4104, 0
        %v4133 = vsel %vm567, %v4111, 0
        %v4136 = vsel %vm567, %v4119, 0
        %4138 = vmatprep.subr.bf16.mxu0 0
        %4139 = vmatpush1.bf16.msra.mxu0 0
        %4140 = vmatprep.subr.bf16.mxu0 0
        %4141 = vmatpush1.bf16.msra.mxu0 0
        %4142 = vmatprep.subr.bf16.mxu0 0
        %4143 = vmatpush1.bf16.msra.mxu0 0
        %4144 = vmatprep.subr.bf16.mxu0 0
        %4145 = vmatpush1.bf16.msra.mxu0 0
        %4146 = vmatprep.subr.bf16.mxu0 0
        %4147 = vmatpush1.bf16.msra.mxu0 0
        %4148 = vmatprep.subr.bf16.mxu0 0
        %4149 = vmatpush1.bf16.msra.mxu0 0
        %4150 = vmatprep.subr.bf16.mxu0 0
        %4151 = vmatpush1.bf16.msra.mxu0 0
        %4152 = vmatprep.subr.bf16.mxu0 0
        %4153 = vmatpush1.bf16.msra.mxu0 %v4124
        %4154 = vmatprep.subr.bf16.mxu0 0
        %4155 = vmatpush2.bf16.msra.mxu0 0
        %4156 = vmatprep.subr.bf16.mxu0 0
        %4157 = vmatpush2.bf16.msra.mxu0 0
        %4158 = vmatprep.subr.bf16.mxu0 0
        %4159 = vmatpush2.bf16.msra.mxu0 0
        %4160 = vmatprep.subr.bf16.mxu0 0
        %4161 = vmatpush2.bf16.msra.mxu0 0
        %4162 = vmatprep.subr.bf16.mxu0 0
        %4163 = vmatpush2.bf16.msra.mxu0 0
        %4164 = vmatprep.subr.bf16.mxu0 0
        %4165 = vmatpush2.bf16.msra.mxu0 0
        %4166 = vmatprep.subr.bf16.mxu0 0
        %4167 = vmatpush2.bf16.msra.mxu0 0
        %4168 = vmatprep.subr.bf16.mxu0 0
        %4169 = vmatpush2.bf16.msra.mxu0 0
        %4170 = vmatprep.mubr.bf16.mxu0 0
        %4171 = vmatmul.mubr.bf16.gmra.mxu0 %v578
        %v4172 = vpop.f32.mrf.mxu0
        %v4173 = vadd.f32 0.0, %v4172
        %v4174 = vpop.f32.mrf.mxu0
        %v4175 = vpop.f32.mrf.mxu0
        %v4176 = vadd.f32 0.0, %v4175
        %v4177 = vpop.f32.mrf.mxu0
        %4178 = vmatprep.mubr.bf16.mxu0 0
        %4179 = vmatmul.mubr.bf16.gmra.mxu0 %v581
        %v4180 = vpop.f32.mrf.mxu0
        %v4181 = vpop.f32.mrf.mxu0
        %v4182 = vpop.f32.mrf.mxu0
        %v4183 = vadd.f32 0.0, %v4182
        %v4184 = vpop.f32.mrf.mxu0
        %4185 = vmatprep.mubr.bf16.mxu0 0
        %4186 = vmatmul.mubr.bf16.gmra.mxu0 %v584
        %v4187 = vpop.f32.mrf.mxu0
        %v4188 = vadd.f32 0.0, %v4187
        %v4189 = vpop.f32.mrf.mxu0
        %v4190 = vpop.f32.mrf.mxu0
        %v4191 = vpop.f32.mrf.mxu0
        %4192 = vmatprep.mubr.bf16.mxu0 0
        %4193 = vmatmul.mubr.bf16.gmra.mxu0 %v587
        %v4194 = vpop.f32.mrf.mxu0
        %v4195 = vadd.f32 0.0, %v4194
        %v4196 = vpop.f32.mrf.mxu0
        %v4197 = vpop.f32.mrf.mxu0
        %v4198 = vadd.f32 0.0, %v4197
        %v4199 = vpop.f32.mrf.mxu0
        %4200 = vmatprep.mubr.bf16.mxu0 0
        %4201 = vmatmul.mubr.bf16.gmra.mxu0 %v590
        %v4202 = vpop.f32.mrf.mxu0
        %v4203 = vpop.f32.mrf.mxu0
        %v4204 = vpop.f32.mrf.mxu0
        %v4205 = vadd.f32 0.0, %v4204
        %v4206 = vpop.f32.mrf.mxu0
        %4207 = vmatprep.mubr.bf16.mxu0 0
        %4208 = vmatmul.mubr.bf16.gmra.mxu0 %v593
        %v4209 = vpop.f32.mrf.mxu0
        %v4210 = vadd.f32 0.0, %v4209
        %v4211 = vpop.f32.mrf.mxu0
        %v4212 = vpop.f32.mrf.mxu0
        %v4213 = vpop.f32.mrf.mxu0
        %4214 = vmatprep.mubr.bf16.mxu0 0
        %4215 = vmatmul.mubr.bf16.gmra.mxu0 %v596
        %v4216 = vpop.f32.mrf.mxu0
        %v4217 = vadd.f32 0.0, %v4216
        %v4218 = vpop.f32.mrf.mxu0
        %v4219 = vpop.f32.mrf.mxu0
        %v4220 = vadd.f32 0.0, %v4219
        %v4221 = vpop.f32.mrf.mxu0
        %4222 = vmatprep.mubr.bf16.mxu0 0
        %4223 = vmatmul.mubr.bf16.gmra.mxu0 %v599
        %v4224 = vpop.f32.mrf.mxu0
        %v4225 = vpop.f32.mrf.mxu0
        %v4226 = vpop.f32.mrf.mxu0
        %v4227 = vadd.f32 0.0, %v4226
        %v4228 = vpop.f32.mrf.mxu0
        %4229 = vmatprep.mubr.bf16.mxu0 0
        %4230 = vmatmul.mubr.bf16.gmra.mxu0 %v602
        %v4231 = vpop.f32.mrf.mxu0
        %v4232 = vadd.f32 0.0, %v4231
        %v4233 = vpop.f32.mrf.mxu0
        %v4234 = vpop.f32.mrf.mxu0
        %v4235 = vpop.f32.mrf.mxu0
        %4236 = vmatprep.mubr.bf16.mxu0 0
        %4237 = vmatmul.mubr.bf16.gmra.mxu0 %v605
        %v4238 = vpop.f32.mrf.mxu0
        %v4239 = vadd.f32 0.0, %v4238
        %v4240 = vpop.f32.mrf.mxu0
        %v4241 = vpop.f32.mrf.mxu0
        %v4242 = vadd.f32 0.0, %v4241
        %v4243 = vpop.f32.mrf.mxu0
        %4244 = vmatprep.mubr.bf16.mxu0 0
        %4245 = vmatmul.mubr.bf16.gmra.mxu0 %v608
        %v4246 = vpop.f32.mrf.mxu0
        %v4247 = vpop.f32.mrf.mxu0
        %v4248 = vpop.f32.mrf.mxu0
        %v4249 = vadd.f32 0.0, %v4248
        %v4250 = vpop.f32.mrf.mxu0
        %4251 = vmatprep.mubr.bf16.mxu0 0
        %4252 = vmatmul.mubr.bf16.gmra.mxu0 %v611
        %v4253 = vpop.f32.mrf.mxu0
        %v4254 = vadd.f32 0.0, %v4253
        %v4255 = vpop.f32.mrf.mxu0
        %v4256 = vpop.f32.mrf.mxu0
        %v4257 = vpop.f32.mrf.mxu0
        %4258 = vmatprep.mubr.bf16.mxu0 0
        %4259 = vmatmul.mubr.bf16.gmra.mxu0 %v614
        %v4260 = vpop.f32.mrf.mxu0
        %v4261 = vadd.f32 0.0, %v4260
        %v4262 = vpop.f32.mrf.mxu0
        %v4263 = vpop.f32.mrf.mxu0
        %v4264 = vadd.f32 0.0, %v4263
        %v4265 = vpop.f32.mrf.mxu0
        %4266 = vmatprep.mubr.bf16.mxu0 0
        %4267 = vmatmul.mubr.bf16.gmra.mxu0 %v617
        %v4268 = vpop.f32.mrf.mxu0
        %v4269 = vpop.f32.mrf.mxu0
        %v4270 = vpop.f32.mrf.mxu0
        %v4271 = vadd.f32 0.0, %v4270
        %v4272 = vpop.f32.mrf.mxu0
        %4273 = vmatprep.mubr.bf16.mxu0 0
        %4274 = vmatmul.mubr.bf16.gmra.mxu0 %v620
        %v4275 = vpop.f32.mrf.mxu0
        %v4276 = vadd.f32 0.0, %v4275
        %v4277 = vpop.f32.mrf.mxu0
        %v4278 = vpop.f32.mrf.mxu0
        %v4279 = vpop.f32.mrf.mxu0
        %4280 = vmatprep.mubr.bf16.mxu0 0
        %4281 = vmatmul.mubr.bf16.gmra.mxu0 %v623
        %v4282 = vpop.f32.mrf.mxu0
        %v4283 = vadd.f32 0.0, %v4282
        %v4284 = vpop.f32.mrf.mxu0
        %v4285 = vpop.f32.mrf.mxu0
        %v4286 = vadd.f32 0.0, %v4285
        %v4287 = vpop.f32.mrf.mxu0
        %4288 = vmatprep.mubr.bf16.mxu0 0
        %4289 = vmatmul.mubr.bf16.gmra.mxu0 %v626
        %v4290 = vpop.f32.mrf.mxu0
        %v4291 = vpop.f32.mrf.mxu0
        %v4292 = vpop.f32.mrf.mxu0
        %v4293 = vadd.f32 0.0, %v4292
        %v4294 = vpop.f32.mrf.mxu0
        %4295 = vmatprep.mubr.bf16.mxu0 0
        %4296 = vmatmul.mubr.bf16.gmra.mxu0 %v629
        %v4297 = vpop.f32.mrf.mxu0
        %v4298 = vadd.f32 0.0, %v4297
        %v4299 = vpop.f32.mrf.mxu0
        %v4300 = vpop.f32.mrf.mxu0
        %v4301 = vpop.f32.mrf.mxu0
        %4302 = vmatprep.mubr.bf16.mxu0 0
        %4303 = vmatmul.mubr.bf16.gmra.mxu0 %v632
        %v4304 = vpop.f32.mrf.mxu0
        %v4305 = vadd.f32 0.0, %v4304
        %v4306 = vpop.f32.mrf.mxu0
        %v4307 = vpop.f32.mrf.mxu0
        %v4308 = vadd.f32 0.0, %v4307
        %v4309 = vpop.f32.mrf.mxu0
        %4310 = vmatprep.mubr.bf16.mxu0 0
        %4311 = vmatmul.mubr.bf16.gmra.mxu0 %v635
        %v4312 = vpop.f32.mrf.mxu0
        %v4313 = vpop.f32.mrf.mxu0
        %v4314 = vpop.f32.mrf.mxu0
        %v4315 = vadd.f32 0.0, %v4314
        %v4316 = vpop.f32.mrf.mxu0
        %4317 = vmatprep.mubr.bf16.mxu0 0
        %4318 = vmatmul.mubr.bf16.gmra.mxu0 %v4127
        %v4319 = vpop.f32.mrf.mxu0
        %v4320 = vadd.f32 0.0, %v4319
        %v4321 = vpop.f32.mrf.mxu0
        %v4322 = vpop.f32.mrf.mxu0
        %v4323 = vpop.f32.mrf.mxu0
        %4324 = vmatprep.mubr.bf16.mxu0 0
        %4325 = vmatmul.mubr.bf16.gmra.mxu0 %v4130
        %v4326 = vpop.f32.mrf.mxu0
        %v4327 = vadd.f32 0.0, %v4326
        %v4328 = vpop.f32.mrf.mxu0
        %v4329 = vpop.f32.mrf.mxu0
        %v4330 = vadd.f32 0.0, %v4329
        %v4331 = vpop.f32.mrf.mxu0
        %4332 = vmatprep.mubr.bf16.mxu0 0
        %4333 = vmatmul.mubr.bf16.gmra.mxu0 %v4133
        %v4334 = vpop.f32.mrf.mxu0
        %v4335 = vpop.f32.mrf.mxu0
        %v4336 = vpop.f32.mrf.mxu0
        %v4337 = vadd.f32 0.0, %v4336
        %v4338 = vpop.f32.mrf.mxu0
        %4339 = vmatprep.mubr.bf16.mxu0 0
        %4340 = vmatmul.mubr.bf16.gmra.mxu0 %v4136
        %v4341 = vpop.f32.mrf.mxu0
        %v4342 = vadd.f32 0.0, %v4341
        %v4343 = vpop.f32.mrf.mxu0
        %v4344 = vpop.f32.mrf.mxu0
        %v4345 = vpop.f32.mrf.mxu0
        %4346 = vdwg.mxu0
        %v4347 = vadd.f32 %v4056, %v4173
        %v4348 = vadd.f32 %v4057, %v4176
        %v4349 = vadd.f32 %v4058, %v4183
        %v4350 = vadd.f32 %v4059, %v4188
        %v4351 = vadd.f32 %v4060, %v4195
        %v4352 = vadd.f32 %v4061, %v4198
        %v4353 = vadd.f32 %v4062, %v4205
        %v4354 = vadd.f32 %v4063, %v4210
        %v4355 = vadd.f32 %v4064, %v4217
        %v4356 = vadd.f32 %v4065, %v4220
        %v4357 = vadd.f32 %v4066, %v4227
        %v4358 = vadd.f32 %v4067, %v4232
        %v4359 = vadd.f32 %v4068, %v4239
        %v4360 = vadd.f32 %v4069, %v4242
        %v4361 = vadd.f32 %v4070, %v4249
        %v4362 = vadd.f32 %v4071, %v4254
        %v4363 = vadd.f32 %v4072, %v4261
        %v4364 = vadd.f32 %v4073, %v4264
        %v4365 = vadd.f32 %v4074, %v4271
        %v4366 = vadd.f32 %v4075, %v4276
        %v4367 = vadd.f32 %v4076, %v4283
        %v4368 = vadd.f32 %v4077, %v4286
        %v4369 = vadd.f32 %v4078, %v4293
        %v4370 = vadd.f32 %v4079, %v4298
        %v4371 = vadd.f32 %v4080, %v4305
        %v4372 = vadd.f32 %v4081, %v4308
        %v4373 = vadd.f32 %v4082, %v4315
        %v4374 = vadd.f32 %v4083, %v4320
        %v4375 = vadd.f32 %v4084, %v4327
        %v4376 = vadd.f32 %v4085, %v4330
        %v4377 = vadd.f32 %v4086, %v4337
        %v4378 = vadd.f32 %v4087, %v4342
        %v4379 = vadd.f32 %v4347, %v4348
        %v4380 = vadd.f32 %v4379, %v4349
        %v4381 = vadd.f32 %v4380, %v4350
        %v4382 = vadd.f32 %v4381, %v4351
        %v4383 = vadd.f32 %v4382, %v4352
        %v4384 = vadd.f32 %v4383, %v4353
        %v4385 = vadd.f32 %v4384, %v4354
        %v4386 = vadd.f32 %v4385, %v4355
        %v4387 = vadd.f32 %v4386, %v4356
        %v4388 = vadd.f32 %v4387, %v4357
        %v4389 = vadd.f32 %v4388, %v4358
        %v4390 = vadd.f32 %v4389, %v4359
        %v4391 = vadd.f32 %v4390, %v4360
        %v4392 = vadd.f32 %v4391, %v4361
        %v4393 = vadd.f32 %v4392, %v4362
        %v4394 = vadd.f32 %v4393, %v4363
        %v4395 = vadd.f32 %v4394, %v4364
        %v4396 = vadd.f32 %v4395, %v4365
        %v4397 = vadd.f32 %v4396, %v4366
        %v4398 = vadd.f32 %v4397, %v4367
        %v4399 = vadd.f32 %v4398, %v4368
        %v4400 = vadd.f32 %v4399, %v4369
        %v4401 = vadd.f32 %v4400, %v4370
        %v4402 = vadd.f32 %v4401, %v4371
        %v4403 = vadd.f32 %v4402, %v4372
        %v4404 = vadd.f32 %v4403, %v4373
        %v4405 = vadd.f32 %v4404, %v4374
        %v4406 = vadd.f32 %v4405, %v4375
        %v4407 = vadd.f32 %v4406, %v4376
        %v4408 = vadd.f32 %v4407, %v4377
        %v4409 = vadd.f32 %v4408, %v4378
        %v4410 = vrot.slane %v4409, 4
        %v4411 = vadd.f32 %v4409, %v4410
        %v4412 = vrot.slane %v4411, 2
        %v4413 = vadd.f32 %v4411, %v4412
        %v4414 = vrot.slane %v4413, 1
        %v4415 = vadd.f32 %v4413, %v4414
        %v4416 = vadd.f32 %v3299, %v4415
        %v4417 = vmul.f32 %v4347, %v4347
        %v4418 = vmul.f32 %v4348, %v4348
        %v4419 = vmul.f32 %v4349, %v4349
        %v4420 = vmul.f32 %v4350, %v4350
        %v4421 = vmul.f32 %v4351, %v4351
        %v4422 = vmul.f32 %v4352, %v4352
        %v4423 = vmul.f32 %v4353, %v4353
        %v4424 = vmul.f32 %v4354, %v4354
        %v4425 = vmul.f32 %v4355, %v4355
        %v4426 = vmul.f32 %v4356, %v4356
        %v4427 = vmul.f32 %v4357, %v4357
        %v4428 = vmul.f32 %v4358, %v4358
        %v4429 = vmul.f32 %v4359, %v4359
        %v4430 = vmul.f32 %v4360, %v4360
        %v4431 = vmul.f32 %v4361, %v4361
        %v4432 = vmul.f32 %v4362, %v4362
        %v4433 = vmul.f32 %v4363, %v4363
        %v4434 = vmul.f32 %v4364, %v4364
        %v4435 = vmul.f32 %v4365, %v4365
        %v4436 = vmul.f32 %v4366, %v4366
        %v4437 = vmul.f32 %v4367, %v4367
        %v4438 = vmul.f32 %v4368, %v4368
        %v4439 = vmul.f32 %v4369, %v4369
        %v4440 = vmul.f32 %v4370, %v4370
        %v4441 = vmul.f32 %v4371, %v4371
        %v4442 = vmul.f32 %v4372, %v4372
        %v4443 = vmul.f32 %v4373, %v4373
        %v4444 = vmul.f32 %v4374, %v4374
        %v4445 = vmul.f32 %v4375, %v4375
        %v4446 = vmul.f32 %v4376, %v4376
        %v4447 = vmul.f32 %v4377, %v4377
        %v4448 = vmul.f32 %v4378, %v4378
        %v4449 = vadd.f32 %v4417, %v4418
        %v4450 = vadd.f32 %v4449, %v4419
        %v4451 = vadd.f32 %v4450, %v4420
        %v4452 = vadd.f32 %v4451, %v4421
        %v4453 = vadd.f32 %v4452, %v4422
        %v4454 = vadd.f32 %v4453, %v4423
        %v4455 = vadd.f32 %v4454, %v4424
        %v4456 = vadd.f32 %v4455, %v4425
        %v4457 = vadd.f32 %v4456, %v4426
        %v4458 = vadd.f32 %v4457, %v4427
        %v4459 = vadd.f32 %v4458, %v4428
        %v4460 = vadd.f32 %v4459, %v4429
        %v4461 = vadd.f32 %v4460, %v4430
        %v4462 = vadd.f32 %v4461, %v4431
        %v4463 = vadd.f32 %v4462, %v4432
        %v4464 = vadd.f32 %v4463, %v4433
        %v4465 = vadd.f32 %v4464, %v4434
        %v4466 = vadd.f32 %v4465, %v4435
        %v4467 = vadd.f32 %v4466, %v4436
        %v4468 = vadd.f32 %v4467, %v4437
        %v4469 = vadd.f32 %v4468, %v4438
        %v4470 = vadd.f32 %v4469, %v4439
        %v4471 = vadd.f32 %v4470, %v4440
        %v4472 = vadd.f32 %v4471, %v4441
        %v4473 = vadd.f32 %v4472, %v4442
        %v4474 = vadd.f32 %v4473, %v4443
        %v4475 = vadd.f32 %v4474, %v4444
        %v4476 = vadd.f32 %v4475, %v4445
        %v4477 = vadd.f32 %v4476, %v4446
        %v4478 = vadd.f32 %v4477, %v4447
        %v4479 = vadd.f32 %v4478, %v4448
        %v4480 = vrot.slane %v4479, 4
        %v4481 = vadd.f32 %v4479, %v4480
        %v4482 = vrot.slane %v4481, 2
        %v4483 = vadd.f32 %v4481, %v4482
        %v4484 = vrot.slane %v4483, 1
        %v4485 = vadd.f32 %v4483, %v4484
        %v4486 = vadd.f32 %v3369, %v4485
        %v4487 = vpack.c.bf16 %v4348, %v4347
        %v4488 = vpack.c.bf16 %v4350, %v4349
        %v4489 = vpack.c.bf16 %v4352, %v4351
        %v4490 = vpack.c.bf16 %v4354, %v4353
        %v4491 = vpack.c.bf16 %v4356, %v4355
        %v4492 = vpack.c.bf16 %v4358, %v4357
        %v4493 = vpack.c.bf16 %v4360, %v4359
        %v4494 = vpack.c.bf16 %v4362, %v4361
        %v4495 = vpack.c.bf16 %v4364, %v4363
        %v4496 = vpack.c.bf16 %v4366, %v4365
        %v4497 = vpack.c.bf16 %v4368, %v4367
        %v4498 = vpack.c.bf16 %v4370, %v4369
        %v4499 = vpack.c.bf16 %v4372, %v4371
        %v4500 = vpack.c.bf16 %v4374, %v4373
        %v4501 = vpack.c.bf16 %v4376, %v4375
        %v4502 = vpack.c.bf16 %v4378, %v4377
        %s4503 = scalar_lea.vmem %s1, 96
        %v4504 = vld [vmem:[%s4503] sm:$0xf]
        %v4505 = vld [vmem:[%s4503 + $0x4] sm:$0xf]
        %s4506 = scalar_lea.vmem %s1, 104
        %v4507 = vld [vmem:[%s4506] sm:$0xf]
        %v4508 = vld [vmem:[%s4506 + $0x4] sm:$0xf]
        %v4511 = vunpack.c.l.b16 %v4507
        %v4512 = vunpack.c.l.b16 %v4508
        %v4513 = vpack.c.b16 %v4512, %v4511
        %4515 = vmatprep.subr.bf16.mxu0 0
        %4516 = vmatpush1.bf16.msra.mxu0 0
        %4517 = vmatprep.subr.bf16.mxu0 0
        %4518 = vmatpush1.bf16.msra.mxu0 0
        %4519 = vmatprep.subr.bf16.mxu0 0
        %4520 = vmatpush1.bf16.msra.mxu0 0
        %4521 = vmatprep.subr.bf16.mxu0 0
        %4522 = vmatpush1.bf16.msra.mxu0 0
        %4523 = vmatprep.subr.bf16.mxu0 0
        %4524 = vmatpush1.bf16.msra.mxu0 0
        %4525 = vmatprep.subr.bf16.mxu0 0
        %4526 = vmatpush1.bf16.msra.mxu0 0
        %4527 = vmatprep.subr.bf16.mxu0 0
        %4528 = vmatpush1.bf16.msra.mxu0 0
        %4529 = vmatprep.subr.bf16.mxu0 0
        %4530 = vmatpush1.bf16.msra.mxu0 %v4513
        %4531 = vmatprep.subr.bf16.mxu0 0
        %4532 = vmatpush2.bf16.msra.mxu0 0
        %4533 = vmatprep.subr.bf16.mxu0 0
        %4534 = vmatpush2.bf16.msra.mxu0 0
        %4535 = vmatprep.subr.bf16.mxu0 0
        %4536 = vmatpush2.bf16.msra.mxu0 0
        %4537 = vmatprep.subr.bf16.mxu0 0
        %4538 = vmatpush2.bf16.msra.mxu0 0
        %4539 = vmatprep.subr.bf16.mxu0 0
        %4540 = vmatpush2.bf16.msra.mxu0 0
        %4541 = vmatprep.subr.bf16.mxu0 0
        %4542 = vmatpush2.bf16.msra.mxu0 0
        %4543 = vmatprep.subr.bf16.mxu0 0
        %4544 = vmatpush2.bf16.msra.mxu0 0
        %4545 = vmatprep.subr.bf16.mxu0 0
        %4546 = vmatpush2.bf16.msra.mxu0 0
        %4547 = vmatprep.mubr.bf16.mxu0 0
        %4548 = vmatmul.mubr.bf16.gmra.mxu0 %v2950
        %v4549 = vpop.f32.mrf.mxu0
        %v4550 = vadd.f32 0.0, %v4549
        %v4551 = vpop.f32.mrf.mxu0
        %v4552 = vpop.f32.mrf.mxu0
        %v4553 = vadd.f32 0.0, %v4552
        %v4554 = vpop.f32.mrf.mxu0
        %4555 = vmatprep.mubr.bf16.mxu0 0
        %4556 = vmatmul.mubr.bf16.gmra.mxu0 %v2953
        %v4557 = vpop.f32.mrf.mxu0
        %v4558 = vpop.f32.mrf.mxu0
        %v4559 = vpop.f32.mrf.mxu0
        %v4560 = vadd.f32 0.0, %v4559
        %v4561 = vpop.f32.mrf.mxu0
        %4562 = vmatprep.mubr.bf16.mxu0 0
        %4563 = vmatmul.mubr.bf16.gmra.mxu0 %v2956
        %v4564 = vpop.f32.mrf.mxu0
        %v4565 = vadd.f32 0.0, %v4564
        %v4566 = vpop.f32.mrf.mxu0
        %v4567 = vpop.f32.mrf.mxu0
        %v4568 = vpop.f32.mrf.mxu0
        %4569 = vmatprep.mubr.bf16.mxu0 0
        %4570 = vmatmul.mubr.bf16.gmra.mxu0 %v2959
        %v4571 = vpop.f32.mrf.mxu0
        %v4572 = vadd.f32 0.0, %v4571
        %v4573 = vpop.f32.mrf.mxu0
        %v4574 = vpop.f32.mrf.mxu0
        %v4575 = vadd.f32 0.0, %v4574
        %v4576 = vpop.f32.mrf.mxu0
        %4577 = vmatprep.mubr.bf16.mxu0 0
        %4578 = vmatmul.mubr.bf16.gmra.mxu0 %v2962
        %v4579 = vpop.f32.mrf.mxu0
        %v4580 = vpop.f32.mrf.mxu0
        %v4581 = vpop.f32.mrf.mxu0
        %v4582 = vadd.f32 0.0, %v4581
        %v4583 = vpop.f32.mrf.mxu0
        %4584 = vmatprep.mubr.bf16.mxu0 0
        %4585 = vmatmul.mubr.bf16.gmra.mxu0 %v2965
        %v4586 = vpop.f32.mrf.mxu0
        %v4587 = vadd.f32 0.0, %v4586
        %v4588 = vpop.f32.mrf.mxu0
        %v4589 = vpop.f32.mrf.mxu0
        %v4590 = vpop.f32.mrf.mxu0
        %4591 = vmatprep.mubr.bf16.mxu0 0
        %4592 = vmatmul.mubr.bf16.gmra.mxu0 %v2968
        %v4593 = vpop.f32.mrf.mxu0
        %v4594 = vadd.f32 0.0, %v4593
        %v4595 = vpop.f32.mrf.mxu0
        %v4596 = vpop.f32.mrf.mxu0
        %v4597 = vadd.f32 0.0, %v4596
        %v4598 = vpop.f32.mrf.mxu0
        %4599 = vmatprep.mubr.bf16.mxu0 0
        %4600 = vmatmul.mubr.bf16.gmra.mxu0 %v2971
        %v4601 = vpop.f32.mrf.mxu0
        %v4602 = vpop.f32.mrf.mxu0
        %v4603 = vpop.f32.mrf.mxu0
        %v4604 = vadd.f32 0.0, %v4603
        %v4605 = vpop.f32.mrf.mxu0
        %4606 = vmatprep.mubr.bf16.mxu0 0
        %4607 = vmatmul.mubr.bf16.gmra.mxu0 %v2974
        %v4608 = vpop.f32.mrf.mxu0
        %v4609 = vadd.f32 0.0, %v4608
        %v4610 = vpop.f32.mrf.mxu0
        %v4611 = vpop.f32.mrf.mxu0
        %v4612 = vpop.f32.mrf.mxu0
        %4613 = vmatprep.mubr.bf16.mxu0 0
        %4614 = vmatmul.mubr.bf16.gmra.mxu0 %v2977
        %v4615 = vpop.f32.mrf.mxu0
        %v4616 = vadd.f32 0.0, %v4615
        %v4617 = vpop.f32.mrf.mxu0
        %v4618 = vpop.f32.mrf.mxu0
        %v4619 = vadd.f32 0.0, %v4618
        %v4620 = vpop.f32.mrf.mxu0
        %4621 = vmatprep.mubr.bf16.mxu0 0
        %4622 = vmatmul.mubr.bf16.gmra.mxu0 %v2980
        %v4623 = vpop.f32.mrf.mxu0
        %v4624 = vpop.f32.mrf.mxu0
        %v4625 = vpop.f32.mrf.mxu0
        %v4626 = vadd.f32 0.0, %v4625
        %v4627 = vpop.f32.mrf.mxu0
        %4628 = vmatprep.mubr.bf16.mxu0 0
        %4629 = vmatmul.mubr.bf16.gmra.mxu0 %v2983
        %v4630 = vpop.f32.mrf.mxu0
        %v4631 = vadd.f32 0.0, %v4630
        %v4632 = vpop.f32.mrf.mxu0
        %v4633 = vpop.f32.mrf.mxu0
        %v4634 = vpop.f32.mrf.mxu0
        %4635 = vmatprep.mubr.bf16.mxu0 0
        %4636 = vmatmul.mubr.bf16.gmra.mxu0 %v2986
        %v4637 = vpop.f32.mrf.mxu0
        %v4638 = vadd.f32 0.0, %v4637
        %v4639 = vpop.f32.mrf.mxu0
        %v4640 = vpop.f32.mrf.mxu0
        %v4641 = vadd.f32 0.0, %v4640
        %v4642 = vpop.f32.mrf.mxu0
        %4643 = vmatprep.mubr.bf16.mxu0 0
        %4644 = vmatmul.mubr.bf16.gmra.mxu0 %v2989
        %v4645 = vpop.f32.mrf.mxu0
        %v4646 = vpop.f32.mrf.mxu0
        %v4647 = vpop.f32.mrf.mxu0
        %v4648 = vadd.f32 0.0, %v4647
        %v4649 = vpop.f32.mrf.mxu0
        %4650 = vmatprep.mubr.bf16.mxu0 0
        %4651 = vmatmul.mubr.bf16.gmra.mxu0 %v2992
        %v4652 = vpop.f32.mrf.mxu0
        %v4653 = vadd.f32 0.0, %v4652
        %v4654 = vpop.f32.mrf.mxu0
        %v4655 = vpop.f32.mrf.mxu0
        %v4656 = vpop.f32.mrf.mxu0
        %4657 = vmatprep.mubr.bf16.mxu0 0
        %4658 = vmatmul.mubr.bf16.gmra.mxu0 %v2995
        %v4659 = vpop.f32.mrf.mxu0
        %v4660 = vadd.f32 0.0, %v4659
        %v4661 = vpop.f32.mrf.mxu0
        %v4662 = vpop.f32.mrf.mxu0
        %v4663 = vadd.f32 0.0, %v4662
        %v4664 = vpop.f32.mrf.mxu0
        %4665 = vmatprep.mubr.bf16.mxu0 0
        %4666 = vmatmul.mubr.bf16.gmra.mxu0 %v2998
        %v4667 = vpop.f32.mrf.mxu0
        %v4668 = vpop.f32.mrf.mxu0
        %v4669 = vpop.f32.mrf.mxu0
        %v4670 = vadd.f32 0.0, %v4669
        %v4671 = vpop.f32.mrf.mxu0
        %4672 = vmatprep.mubr.bf16.mxu0 0
        %4673 = vmatmul.mubr.bf16.gmra.mxu0 %v3001
        %v4674 = vpop.f32.mrf.mxu0
        %v4675 = vadd.f32 0.0, %v4674
        %v4676 = vpop.f32.mrf.mxu0
        %v4677 = vpop.f32.mrf.mxu0
        %v4678 = vpop.f32.mrf.mxu0
        %4679 = vmatprep.mubr.bf16.mxu0 0
        %4680 = vmatmul.mubr.bf16.gmra.mxu0 %v3004
        %v4681 = vpop.f32.mrf.mxu0
        %v4682 = vadd.f32 0.0, %v4681
        %v4683 = vpop.f32.mrf.mxu0
        %v4684 = vpop.f32.mrf.mxu0
        %v4685 = vadd.f32 0.0, %v4684
        %v4686 = vpop.f32.mrf.mxu0
        %4687 = vmatprep.mubr.bf16.mxu0 0
        %4688 = vmatmul.mubr.bf16.gmra.mxu0 %v3007
        %v4689 = vpop.f32.mrf.mxu0
        %v4690 = vpop.f32.mrf.mxu0
        %v4691 = vpop.f32.mrf.mxu0
        %v4692 = vadd.f32 0.0, %v4691
        %v4693 = vpop.f32.mrf.mxu0
        %4694 = vmatprep.mubr.bf16.mxu0 0
        %4695 = vmatmul.mubr.bf16.gmra.mxu0 %v3010
        %v4696 = vpop.f32.mrf.mxu0
        %v4697 = vadd.f32 0.0, %v4696
        %v4698 = vpop.f32.mrf.mxu0
        %v4699 = vpop.f32.mrf.mxu0
        %v4700 = vpop.f32.mrf.mxu0
        %4701 = vmatprep.mubr.bf16.mxu0 0
        %4702 = vmatmul.mubr.bf16.gmra.mxu0 %v3013
        %v4703 = vpop.f32.mrf.mxu0
        %v4704 = vadd.f32 0.0, %v4703
        %v4705 = vpop.f32.mrf.mxu0
        %v4706 = vpop.f32.mrf.mxu0
        %v4707 = vadd.f32 0.0, %v4706
        %v4708 = vpop.f32.mrf.mxu0
        %4709 = vmatprep.mubr.bf16.mxu0 0
        %4710 = vmatmul.mubr.bf16.gmra.mxu0 %v3016
        %v4711 = vpop.f32.mrf.mxu0
        %v4712 = vpop.f32.mrf.mxu0
        %v4713 = vpop.f32.mrf.mxu0
        %v4714 = vadd.f32 0.0, %v4713
        %v4715 = vpop.f32.mrf.mxu0
        %4716 = vmatprep.mubr.bf16.mxu0 0
        %4717 = vmatmul.mubr.bf16.gmra.mxu0 %v3019
        %v4718 = vpop.f32.mrf.mxu0
        %v4719 = vadd.f32 0.0, %v4718
        %v4720 = vpop.f32.mrf.mxu0
        %v4721 = vpop.f32.mrf.mxu0
        %v4722 = vpop.f32.mrf.mxu0
        %4723 = vdwg.mxu0
        %v4726 = vunpack.c.l.b16 %v4504
        %v4727 = vunpack.c.l.b16 %v4505
        %v4728 = vpack.c.b16 %v4727, %v4726
        %4730 = vmatprep.subr.bf16.mxu0 0
        %4731 = vmatpush1.bf16.msra.mxu0 0
        %4732 = vmatprep.subr.bf16.mxu0 0
        %4733 = vmatpush1.bf16.msra.mxu0 0
        %4734 = vmatprep.subr.bf16.mxu0 0
        %4735 = vmatpush1.bf16.msra.mxu0 0
        %4736 = vmatprep.subr.bf16.mxu0 0
        %4737 = vmatpush1.bf16.msra.mxu0 0
        %4738 = vmatprep.subr.bf16.mxu0 0
        %4739 = vmatpush1.bf16.msra.mxu0 0
        %4740 = vmatprep.subr.bf16.mxu0 0
        %4741 = vmatpush1.bf16.msra.mxu0 0
        %4742 = vmatprep.subr.bf16.mxu0 0
        %4743 = vmatpush1.bf16.msra.mxu0 0
        %4744 = vmatprep.subr.bf16.mxu0 0
        %4745 = vmatpush1.bf16.msra.mxu0 %v4728
        %4746 = vmatprep.subr.bf16.mxu0 0
        %4747 = vmatpush2.bf16.msra.mxu0 0
        %4748 = vmatprep.subr.bf16.mxu0 0
        %4749 = vmatpush2.bf16.msra.mxu0 0
        %4750 = vmatprep.subr.bf16.mxu0 0
        %4751 = vmatpush2.bf16.msra.mxu0 0
        %4752 = vmatprep.subr.bf16.mxu0 0
        %4753 = vmatpush2.bf16.msra.mxu0 0
        %4754 = vmatprep.subr.bf16.mxu0 0
        %4755 = vmatpush2.bf16.msra.mxu0 0
        %4756 = vmatprep.subr.bf16.mxu0 0
        %4757 = vmatpush2.bf16.msra.mxu0 0
        %4758 = vmatprep.subr.bf16.mxu0 0
        %4759 = vmatpush2.bf16.msra.mxu0 0
        %4760 = vmatprep.subr.bf16.mxu0 0
        %4761 = vmatpush2.bf16.msra.mxu0 0
        %4762 = vmatprep.mubr.bf16.mxu0 0
        %4763 = vmatmul.mubr.bf16.gmra.mxu0 %v1647
        %v4764 = vpop.f32.mrf.mxu0
        %v4765 = vadd.f32 %v4550, %v4764
        %v4766 = vpop.f32.mrf.mxu0
        %v4767 = vpop.f32.mrf.mxu0
        %v4768 = vadd.f32 %v4553, %v4767
        %v4769 = vpop.f32.mrf.mxu0
        %4770 = vmatprep.mubr.bf16.mxu0 0
        %4771 = vmatmul.mubr.bf16.gmra.mxu0 %v1650
        %v4772 = vpop.f32.mrf.mxu0
        %v4773 = vpop.f32.mrf.mxu0
        %v4774 = vpop.f32.mrf.mxu0
        %v4775 = vadd.f32 %v4560, %v4774
        %v4776 = vpop.f32.mrf.mxu0
        %4777 = vmatprep.mubr.bf16.mxu0 0
        %4778 = vmatmul.mubr.bf16.gmra.mxu0 %v1653
        %v4779 = vpop.f32.mrf.mxu0
        %v4780 = vadd.f32 %v4565, %v4779
        %v4781 = vpop.f32.mrf.mxu0
        %v4782 = vpop.f32.mrf.mxu0
        %v4783 = vpop.f32.mrf.mxu0
        %4784 = vmatprep.mubr.bf16.mxu0 0
        %4785 = vmatmul.mubr.bf16.gmra.mxu0 %v1656
        %v4786 = vpop.f32.mrf.mxu0
        %v4787 = vadd.f32 %v4572, %v4786
        %v4788 = vpop.f32.mrf.mxu0
        %v4789 = vpop.f32.mrf.mxu0
        %v4790 = vadd.f32 %v4575, %v4789
        %v4791 = vpop.f32.mrf.mxu0
        %4792 = vmatprep.mubr.bf16.mxu0 0
        %4793 = vmatmul.mubr.bf16.gmra.mxu0 %v1659
        %v4794 = vpop.f32.mrf.mxu0
        %v4795 = vpop.f32.mrf.mxu0
        %v4796 = vpop.f32.mrf.mxu0
        %v4797 = vadd.f32 %v4582, %v4796
        %v4798 = vpop.f32.mrf.mxu0
        %4799 = vmatprep.mubr.bf16.mxu0 0
        %4800 = vmatmul.mubr.bf16.gmra.mxu0 %v1662
        %v4801 = vpop.f32.mrf.mxu0
        %v4802 = vadd.f32 %v4587, %v4801
        %v4803 = vpop.f32.mrf.mxu0
        %v4804 = vpop.f32.mrf.mxu0
        %v4805 = vpop.f32.mrf.mxu0
        %4806 = vmatprep.mubr.bf16.mxu0 0
        %4807 = vmatmul.mubr.bf16.gmra.mxu0 %v1665
        %v4808 = vpop.f32.mrf.mxu0
        %v4809 = vadd.f32 %v4594, %v4808
        %v4810 = vpop.f32.mrf.mxu0
        %v4811 = vpop.f32.mrf.mxu0
        %v4812 = vadd.f32 %v4597, %v4811
        %v4813 = vpop.f32.mrf.mxu0
        %4814 = vmatprep.mubr.bf16.mxu0 0
        %4815 = vmatmul.mubr.bf16.gmra.mxu0 %v1668
        %v4816 = vpop.f32.mrf.mxu0
        %v4817 = vpop.f32.mrf.mxu0
        %v4818 = vpop.f32.mrf.mxu0
        %v4819 = vadd.f32 %v4604, %v4818
        %v4820 = vpop.f32.mrf.mxu0
        %4821 = vmatprep.mubr.bf16.mxu0 0
        %4822 = vmatmul.mubr.bf16.gmra.mxu0 %v1671
        %v4823 = vpop.f32.mrf.mxu0
        %v4824 = vadd.f32 %v4609, %v4823
        %v4825 = vpop.f32.mrf.mxu0
        %v4826 = vpop.f32.mrf.mxu0
        %v4827 = vpop.f32.mrf.mxu0
        %4828 = vmatprep.mubr.bf16.mxu0 0
        %4829 = vmatmul.mubr.bf16.gmra.mxu0 %v1674
        %v4830 = vpop.f32.mrf.mxu0
        %v4831 = vadd.f32 %v4616, %v4830
        %v4832 = vpop.f32.mrf.mxu0
        %v4833 = vpop.f32.mrf.mxu0
        %v4834 = vadd.f32 %v4619, %v4833
        %v4835 = vpop.f32.mrf.mxu0
        %4836 = vmatprep.mubr.bf16.mxu0 0
        %4837 = vmatmul.mubr.bf16.gmra.mxu0 %v1677
        %v4838 = vpop.f32.mrf.mxu0
        %v4839 = vpop.f32.mrf.mxu0
        %v4840 = vpop.f32.mrf.mxu0
        %v4841 = vadd.f32 %v4626, %v4840
        %v4842 = vpop.f32.mrf.mxu0
        %4843 = vmatprep.mubr.bf16.mxu0 0
        %4844 = vmatmul.mubr.bf16.gmra.mxu0 %v1680
        %v4845 = vpop.f32.mrf.mxu0
        %v4846 = vadd.f32 %v4631, %v4845
        %v4847 = vpop.f32.mrf.mxu0
        %v4848 = vpop.f32.mrf.mxu0
        %v4849 = vpop.f32.mrf.mxu0
        %4850 = vmatprep.mubr.bf16.mxu0 0
        %4851 = vmatmul.mubr.bf16.gmra.mxu0 %v1683
        %v4852 = vpop.f32.mrf.mxu0
        %v4853 = vadd.f32 %v4638, %v4852
        %v4854 = vpop.f32.mrf.mxu0
        %v4855 = vpop.f32.mrf.mxu0
        %v4856 = vadd.f32 %v4641, %v4855
        %v4857 = vpop.f32.mrf.mxu0
        %4858 = vmatprep.mubr.bf16.mxu0 0
        %4859 = vmatmul.mubr.bf16.gmra.mxu0 %v1686
        %v4860 = vpop.f32.mrf.mxu0
        %v4861 = vpop.f32.mrf.mxu0
        %v4862 = vpop.f32.mrf.mxu0
        %v4863 = vadd.f32 %v4648, %v4862
        %v4864 = vpop.f32.mrf.mxu0
        %4865 = vmatprep.mubr.bf16.mxu0 0
        %4866 = vmatmul.mubr.bf16.gmra.mxu0 %v1689
        %v4867 = vpop.f32.mrf.mxu0
        %v4868 = vadd.f32 %v4653, %v4867
        %v4869 = vpop.f32.mrf.mxu0
        %v4870 = vpop.f32.mrf.mxu0
        %v4871 = vpop.f32.mrf.mxu0
        %4872 = vmatprep.mubr.bf16.mxu0 0
        %4873 = vmatmul.mubr.bf16.gmra.mxu0 %v1692
        %v4874 = vpop.f32.mrf.mxu0
        %v4875 = vadd.f32 %v4660, %v4874
        %v4876 = vpop.f32.mrf.mxu0
        %v4877 = vpop.f32.mrf.mxu0
        %v4878 = vadd.f32 %v4663, %v4877
        %v4879 = vpop.f32.mrf.mxu0
        %4880 = vmatprep.mubr.bf16.mxu0 0
        %4881 = vmatmul.mubr.bf16.gmra.mxu0 %v1695
        %v4882 = vpop.f32.mrf.mxu0
        %v4883 = vpop.f32.mrf.mxu0
        %v4884 = vpop.f32.mrf.mxu0
        %v4885 = vadd.f32 %v4670, %v4884
        %v4886 = vpop.f32.mrf.mxu0
        %4887 = vmatprep.mubr.bf16.mxu0 0
        %4888 = vmatmul.mubr.bf16.gmra.mxu0 %v1698
        %v4889 = vpop.f32.mrf.mxu0
        %v4890 = vadd.f32 %v4675, %v4889
        %v4891 = vpop.f32.mrf.mxu0
        %v4892 = vpop.f32.mrf.mxu0
        %v4893 = vpop.f32.mrf.mxu0
        %4894 = vmatprep.mubr.bf16.mxu0 0
        %4895 = vmatmul.mubr.bf16.gmra.mxu0 %v1701
        %v4896 = vpop.f32.mrf.mxu0
        %v4897 = vadd.f32 %v4682, %v4896
        %v4898 = vpop.f32.mrf.mxu0
        %v4899 = vpop.f32.mrf.mxu0
        %v4900 = vadd.f32 %v4685, %v4899
        %v4901 = vpop.f32.mrf.mxu0
        %4902 = vmatprep.mubr.bf16.mxu0 0
        %4903 = vmatmul.mubr.bf16.gmra.mxu0 %v1704
        %v4904 = vpop.f32.mrf.mxu0
        %v4905 = vpop.f32.mrf.mxu0
        %v4906 = vpop.f32.mrf.mxu0
        %v4907 = vadd.f32 %v4692, %v4906
        %v4908 = vpop.f32.mrf.mxu0
        %4909 = vmatprep.mubr.bf16.mxu0 0
        %4910 = vmatmul.mubr.bf16.gmra.mxu0 %v1707
        %v4911 = vpop.f32.mrf.mxu0
        %v4912 = vadd.f32 %v4697, %v4911
        %v4913 = vpop.f32.mrf.mxu0
        %v4914 = vpop.f32.mrf.mxu0
        %v4915 = vpop.f32.mrf.mxu0
        %4916 = vmatprep.mubr.bf16.mxu0 0
        %4917 = vmatmul.mubr.bf16.gmra.mxu0 %v1710
        %v4918 = vpop.f32.mrf.mxu0
        %v4919 = vadd.f32 %v4704, %v4918
        %v4920 = vpop.f32.mrf.mxu0
        %v4921 = vpop.f32.mrf.mxu0
        %v4922 = vadd.f32 %v4707, %v4921
        %v4923 = vpop.f32.mrf.mxu0
        %4924 = vmatprep.mubr.bf16.mxu0 0
        %4925 = vmatmul.mubr.bf16.gmra.mxu0 %v1713
        %v4926 = vpop.f32.mrf.mxu0
        %v4927 = vpop.f32.mrf.mxu0
        %v4928 = vpop.f32.mrf.mxu0
        %v4929 = vadd.f32 %v4714, %v4928
        %v4930 = vpop.f32.mrf.mxu0
        %4931 = vmatprep.mubr.bf16.mxu0 0
        %4932 = vmatmul.mubr.bf16.gmra.mxu0 %v1716
        %v4933 = vpop.f32.mrf.mxu0
        %v4934 = vadd.f32 %v4719, %v4933
        %v4935 = vpop.f32.mrf.mxu0
        %v4936 = vpop.f32.mrf.mxu0
        %v4937 = vpop.f32.mrf.mxu0
        %4938 = vdwg.mxu0
        %s4939 = scalar_lea.vmem %s1, 112
        %v4940 = vld [vmem:[%s4939] sm:$0xf]
        %v4941 = vld [vmem:[%s4939 + $0x4] sm:$0xf]
        %v4944 = vunpack.c.l.b16 %v4940
        %v4945 = vunpack.c.l.b16 %v4941
        %v4946 = vpack.c.b16 %v4945, %v4944
        %4948 = vmatprep.subr.bf16.mxu0 0
        %4949 = vmatpush1.bf16.msra.mxu0 0
        %4950 = vmatprep.subr.bf16.mxu0 0
        %4951 = vmatpush1.bf16.msra.mxu0 0
        %4952 = vmatprep.subr.bf16.mxu0 0
        %4953 = vmatpush1.bf16.msra.mxu0 0
        %4954 = vmatprep.subr.bf16.mxu0 0
        %4955 = vmatpush1.bf16.msra.mxu0 0
        %4956 = vmatprep.subr.bf16.mxu0 0
        %4957 = vmatpush1.bf16.msra.mxu0 0
        %4958 = vmatprep.subr.bf16.mxu0 0
        %4959 = vmatpush1.bf16.msra.mxu0 0
        %4960 = vmatprep.subr.bf16.mxu0 0
        %4961 = vmatpush1.bf16.msra.mxu0 0
        %4962 = vmatprep.subr.bf16.mxu0 0
        %4963 = vmatpush1.bf16.msra.mxu0 %v4946
        %4964 = vmatprep.subr.bf16.mxu0 0
        %4965 = vmatpush2.bf16.msra.mxu0 0
        %4966 = vmatprep.subr.bf16.mxu0 0
        %4967 = vmatpush2.bf16.msra.mxu0 0
        %4968 = vmatprep.subr.bf16.mxu0 0
        %4969 = vmatpush2.bf16.msra.mxu0 0
        %4970 = vmatprep.subr.bf16.mxu0 0
        %4971 = vmatpush2.bf16.msra.mxu0 0
        %4972 = vmatprep.subr.bf16.mxu0 0
        %4973 = vmatpush2.bf16.msra.mxu0 0
        %4974 = vmatprep.subr.bf16.mxu0 0
        %4975 = vmatpush2.bf16.msra.mxu0 0
        %4976 = vmatprep.subr.bf16.mxu0 0
        %4977 = vmatpush2.bf16.msra.mxu0 0
        %4978 = vmatprep.subr.bf16.mxu0 0
        %4979 = vmatpush2.bf16.msra.mxu0 0
        %4980 = vmatprep.mubr.bf16.mxu0 0
        %4981 = vmatmul.mubr.bf16.gmra.mxu0 %v578
        %v4982 = vpop.f32.mrf.mxu0
        %v4983 = vadd.f32 0.0, %v4982
        %v4984 = vpop.f32.mrf.mxu0
        %v4985 = vpop.f32.mrf.mxu0
        %v4986 = vadd.f32 0.0, %v4985
        %v4987 = vpop.f32.mrf.mxu0
        %4988 = vmatprep.mubr.bf16.mxu0 0
        %4989 = vmatmul.mubr.bf16.gmra.mxu0 %v581
        %v4990 = vpop.f32.mrf.mxu0
        %v4991 = vpop.f32.mrf.mxu0
        %v4992 = vpop.f32.mrf.mxu0
        %v4993 = vadd.f32 0.0, %v4992
        %v4994 = vpop.f32.mrf.mxu0
        %4995 = vmatprep.mubr.bf16.mxu0 0
        %4996 = vmatmul.mubr.bf16.gmra.mxu0 %v584
        %v4997 = vpop.f32.mrf.mxu0
        %v4998 = vadd.f32 0.0, %v4997
        %v4999 = vpop.f32.mrf.mxu0
        %v5000 = vpop.f32.mrf.mxu0
        %v5001 = vpop.f32.mrf.mxu0
        %5002 = vmatprep.mubr.bf16.mxu0 0
        %5003 = vmatmul.mubr.bf16.gmra.mxu0 %v587
        %v5004 = vpop.f32.mrf.mxu0
        %v5005 = vadd.f32 0.0, %v5004
        %v5006 = vpop.f32.mrf.mxu0
        %v5007 = vpop.f32.mrf.mxu0
        %v5008 = vadd.f32 0.0, %v5007
        %v5009 = vpop.f32.mrf.mxu0
        %5010 = vmatprep.mubr.bf16.mxu0 0
        %5011 = vmatmul.mubr.bf16.gmra.mxu0 %v590
        %v5012 = vpop.f32.mrf.mxu0
        %v5013 = vpop.f32.mrf.mxu0
        %v5014 = vpop.f32.mrf.mxu0
        %v5015 = vadd.f32 0.0, %v5014
        %v5016 = vpop.f32.mrf.mxu0
        %5017 = vmatprep.mubr.bf16.mxu0 0
        %5018 = vmatmul.mubr.bf16.gmra.mxu0 %v593
        %v5019 = vpop.f32.mrf.mxu0
        %v5020 = vadd.f32 0.0, %v5019
        %v5021 = vpop.f32.mrf.mxu0
        %v5022 = vpop.f32.mrf.mxu0
        %v5023 = vpop.f32.mrf.mxu0
        %5024 = vmatprep.mubr.bf16.mxu0 0
        %5025 = vmatmul.mubr.bf16.gmra.mxu0 %v596
        %v5026 = vpop.f32.mrf.mxu0
        %v5027 = vadd.f32 0.0, %v5026
        %v5028 = vpop.f32.mrf.mxu0
        %v5029 = vpop.f32.mrf.mxu0
        %v5030 = vadd.f32 0.0, %v5029
        %v5031 = vpop.f32.mrf.mxu0
        %5032 = vmatprep.mubr.bf16.mxu0 0
        %5033 = vmatmul.mubr.bf16.gmra.mxu0 %v599
        %v5034 = vpop.f32.mrf.mxu0
        %v5035 = vpop.f32.mrf.mxu0
        %v5036 = vpop.f32.mrf.mxu0
        %v5037 = vadd.f32 0.0, %v5036
        %v5038 = vpop.f32.mrf.mxu0
        %5039 = vmatprep.mubr.bf16.mxu0 0
        %5040 = vmatmul.mubr.bf16.gmra.mxu0 %v602
        %v5041 = vpop.f32.mrf.mxu0
        %v5042 = vadd.f32 0.0, %v5041
        %v5043 = vpop.f32.mrf.mxu0
        %v5044 = vpop.f32.mrf.mxu0
        %v5045 = vpop.f32.mrf.mxu0
        %5046 = vmatprep.mubr.bf16.mxu0 0
        %5047 = vmatmul.mubr.bf16.gmra.mxu0 %v605
        %v5048 = vpop.f32.mrf.mxu0
        %v5049 = vadd.f32 0.0, %v5048
        %v5050 = vpop.f32.mrf.mxu0
        %v5051 = vpop.f32.mrf.mxu0
        %v5052 = vadd.f32 0.0, %v5051
        %v5053 = vpop.f32.mrf.mxu0
        %5054 = vmatprep.mubr.bf16.mxu0 0
        %5055 = vmatmul.mubr.bf16.gmra.mxu0 %v608
        %v5056 = vpop.f32.mrf.mxu0
        %v5057 = vpop.f32.mrf.mxu0
        %v5058 = vpop.f32.mrf.mxu0
        %v5059 = vadd.f32 0.0, %v5058
        %v5060 = vpop.f32.mrf.mxu0
        %5061 = vmatprep.mubr.bf16.mxu0 0
        %5062 = vmatmul.mubr.bf16.gmra.mxu0 %v611
        %v5063 = vpop.f32.mrf.mxu0
        %v5064 = vadd.f32 0.0, %v5063
        %v5065 = vpop.f32.mrf.mxu0
        %v5066 = vpop.f32.mrf.mxu0
        %v5067 = vpop.f32.mrf.mxu0
        %5068 = vmatprep.mubr.bf16.mxu0 0
        %5069 = vmatmul.mubr.bf16.gmra.mxu0 %v614
        %v5070 = vpop.f32.mrf.mxu0
        %v5071 = vadd.f32 0.0, %v5070
        %v5072 = vpop.f32.mrf.mxu0
        %v5073 = vpop.f32.mrf.mxu0
        %v5074 = vadd.f32 0.0, %v5073
        %v5075 = vpop.f32.mrf.mxu0
        %5076 = vmatprep.mubr.bf16.mxu0 0
        %5077 = vmatmul.mubr.bf16.gmra.mxu0 %v617
        %v5078 = vpop.f32.mrf.mxu0
        %v5079 = vpop.f32.mrf.mxu0
        %v5080 = vpop.f32.mrf.mxu0
        %v5081 = vadd.f32 0.0, %v5080
        %v5082 = vpop.f32.mrf.mxu0
        %5083 = vmatprep.mubr.bf16.mxu0 0
        %5084 = vmatmul.mubr.bf16.gmra.mxu0 %v620
        %v5085 = vpop.f32.mrf.mxu0
        %v5086 = vadd.f32 0.0, %v5085
        %v5087 = vpop.f32.mrf.mxu0
        %v5088 = vpop.f32.mrf.mxu0
        %v5089 = vpop.f32.mrf.mxu0
        %5090 = vmatprep.mubr.bf16.mxu0 0
        %5091 = vmatmul.mubr.bf16.gmra.mxu0 %v623
        %v5092 = vpop.f32.mrf.mxu0
        %v5093 = vadd.f32 0.0, %v5092
        %v5094 = vpop.f32.mrf.mxu0
        %v5095 = vpop.f32.mrf.mxu0
        %v5096 = vadd.f32 0.0, %v5095
        %v5097 = vpop.f32.mrf.mxu0
        %5098 = vmatprep.mubr.bf16.mxu0 0
        %5099 = vmatmul.mubr.bf16.gmra.mxu0 %v626
        %v5100 = vpop.f32.mrf.mxu0
        %v5101 = vpop.f32.mrf.mxu0
        %v5102 = vpop.f32.mrf.mxu0
        %v5103 = vadd.f32 0.0, %v5102
        %v5104 = vpop.f32.mrf.mxu0
        %5105 = vmatprep.mubr.bf16.mxu0 0
        %5106 = vmatmul.mubr.bf16.gmra.mxu0 %v629
        %v5107 = vpop.f32.mrf.mxu0
        %v5108 = vadd.f32 0.0, %v5107
        %v5109 = vpop.f32.mrf.mxu0
        %v5110 = vpop.f32.mrf.mxu0
        %v5111 = vpop.f32.mrf.mxu0
        %5112 = vmatprep.mubr.bf16.mxu0 0
        %5113 = vmatmul.mubr.bf16.gmra.mxu0 %v632
        %v5114 = vpop.f32.mrf.mxu0
        %v5115 = vadd.f32 0.0, %v5114
        %v5116 = vpop.f32.mrf.mxu0
        %v5117 = vpop.f32.mrf.mxu0
        %v5118 = vadd.f32 0.0, %v5117
        %v5119 = vpop.f32.mrf.mxu0
        %5120 = vmatprep.mubr.bf16.mxu0 0
        %5121 = vmatmul.mubr.bf16.gmra.mxu0 %v635
        %v5122 = vpop.f32.mrf.mxu0
        %v5123 = vpop.f32.mrf.mxu0
        %v5124 = vpop.f32.mrf.mxu0
        %v5125 = vadd.f32 0.0, %v5124
        %v5126 = vpop.f32.mrf.mxu0
        %5127 = vmatprep.mubr.bf16.mxu0 0
        %5128 = vmatmul.mubr.bf16.gmra.mxu0 %v4127
        %v5129 = vpop.f32.mrf.mxu0
        %v5130 = vadd.f32 0.0, %v5129
        %v5131 = vpop.f32.mrf.mxu0
        %v5132 = vpop.f32.mrf.mxu0
        %v5133 = vpop.f32.mrf.mxu0
        %5134 = vmatprep.mubr.bf16.mxu0 0
        %5135 = vmatmul.mubr.bf16.gmra.mxu0 %v4130
        %v5136 = vpop.f32.mrf.mxu0
        %v5137 = vadd.f32 0.0, %v5136
        %v5138 = vpop.f32.mrf.mxu0
        %v5139 = vpop.f32.mrf.mxu0
        %v5140 = vadd.f32 0.0, %v5139
        %v5141 = vpop.f32.mrf.mxu0
        %5142 = vmatprep.mubr.bf16.mxu0 0
        %5143 = vmatmul.mubr.bf16.gmra.mxu0 %v4133
        %v5144 = vpop.f32.mrf.mxu0
        %v5145 = vpop.f32.mrf.mxu0
        %v5146 = vpop.f32.mrf.mxu0
        %v5147 = vadd.f32 0.0, %v5146
        %v5148 = vpop.f32.mrf.mxu0
        %5149 = vmatprep.mubr.bf16.mxu0 0
        %5150 = vmatmul.mubr.bf16.gmra.mxu0 %v4136
        %v5151 = vpop.f32.mrf.mxu0
        %v5152 = vadd.f32 0.0, %v5151
        %v5153 = vpop.f32.mrf.mxu0
        %v5154 = vpop.f32.mrf.mxu0
        %v5155 = vpop.f32.mrf.mxu0
        %5156 = vdwg.mxu0
        %v5157 = vadd.f32 %v4765, %v4983
        %v5158 = vadd.f32 %v4768, %v4986
        %v5159 = vadd.f32 %v4775, %v4993
        %v5160 = vadd.f32 %v4780, %v4998
        %v5161 = vadd.f32 %v4787, %v5005
        %v5162 = vadd.f32 %v4790, %v5008
        %v5163 = vadd.f32 %v4797, %v5015
        %v5164 = vadd.f32 %v4802, %v5020
        %v5165 = vadd.f32 %v4809, %v5027
        %v5166 = vadd.f32 %v4812, %v5030
        %v5167 = vadd.f32 %v4819, %v5037
        %v5168 = vadd.f32 %v4824, %v5042
        %v5169 = vadd.f32 %v4831, %v5049
        %v5170 = vadd.f32 %v4834, %v5052
        %v5171 = vadd.f32 %v4841, %v5059
        %v5172 = vadd.f32 %v4846, %v5064
        %v5173 = vadd.f32 %v4853, %v5071
        %v5174 = vadd.f32 %v4856, %v5074
        %v5175 = vadd.f32 %v4863, %v5081
        %v5176 = vadd.f32 %v4868, %v5086
        %v5177 = vadd.f32 %v4875, %v5093
        %v5178 = vadd.f32 %v4878, %v5096
        %v5179 = vadd.f32 %v4885, %v5103
        %v5180 = vadd.f32 %v4890, %v5108
        %v5181 = vadd.f32 %v4897, %v5115
        %v5182 = vadd.f32 %v4900, %v5118
        %v5183 = vadd.f32 %v4907, %v5125
        %v5184 = vadd.f32 %v4912, %v5130
        %v5185 = vadd.f32 %v4919, %v5137
        %v5186 = vadd.f32 %v4922, %v5140
        %v5187 = vadd.f32 %v4929, %v5147
        %v5188 = vadd.f32 %v4934, %v5152
        %s5189 = scalar_lea.vmem %s1, 120
        %v5190 = vld [vmem:[%s5189] sm:$0xf]
        %v5191 = vld [vmem:[%s5189 + $0x4] sm:$0xf]
        %v5192 = vrot.slane %v3829, 1
        %v5193 = vsel %vm2089, %v2135, %v5192
        %v5194 = vrot.slane %v3830, 1
        %v5195 = vsel %vm2089, %v5192, %v5194
        %v5196 = vrot.slane %v3831, 1
        %v5197 = vsel %vm2089, %v5194, %v5196
        %v5198 = vrot.slane %v4093, 1
        %v5199 = vsel %vm2089, %v5196, %v5198
        %v5202 = vunpack.c.l.b16 %v5190
        %v5203 = vunpack.c.l.b16 %v5191
        %v5204 = vpack.c.b16 %v5203, %v5202
        %v5207 = vsel %vm567, %v5193, 0
        %v5210 = vsel %vm567, %v5195, 0
        %v5213 = vsel %vm567, %v5197, 0
        %v5216 = vsel %vm567, %v5199, 0
        %5218 = vmatprep.subr.bf16.mxu0 0
        %5219 = vmatpush1.bf16.msra.mxu0 0
        %5220 = vmatprep.subr.bf16.mxu0 0
        %5221 = vmatpush1.bf16.msra.mxu0 0
        %5222 = vmatprep.subr.bf16.mxu0 0
        %5223 = vmatpush1.bf16.msra.mxu0 0
        %5224 = vmatprep.subr.bf16.mxu0 0
        %5225 = vmatpush1.bf16.msra.mxu0 0
        %5226 = vmatprep.subr.bf16.mxu0 0
        %5227 = vmatpush1.bf16.msra.mxu0 0
        %5228 = vmatprep.subr.bf16.mxu0 0
        %5229 = vmatpush1.bf16.msra.mxu0 0
        %5230 = vmatprep.subr.bf16.mxu0 0
        %5231 = vmatpush1.bf16.msra.mxu0 0
        %5232 = vmatprep.subr.bf16.mxu0 0
        %5233 = vmatpush1.bf16.msra.mxu0 %v5204
        %5234 = vmatprep.subr.bf16.mxu0 0
        %5235 = vmatpush2.bf16.msra.mxu0 0
        %5236 = vmatprep.subr.bf16.mxu0 0
        %5237 = vmatpush2.bf16.msra.mxu0 0
        %5238 = vmatprep.subr.bf16.mxu0 0
        %5239 = vmatpush2.bf16.msra.mxu0 0
        %5240 = vmatprep.subr.bf16.mxu0 0
        %5241 = vmatpush2.bf16.msra.mxu0 0
        %5242 = vmatprep.subr.bf16.mxu0 0
        %5243 = vmatpush2.bf16.msra.mxu0 0
        %5244 = vmatprep.subr.bf16.mxu0 0
        %5245 = vmatpush2.bf16.msra.mxu0 0
        %5246 = vmatprep.subr.bf16.mxu0 0
        %5247 = vmatpush2.bf16.msra.mxu0 0
        %5248 = vmatprep.subr.bf16.mxu0 0
        %5249 = vmatpush2.bf16.msra.mxu0 0
        %5250 = vmatprep.mubr.bf16.mxu0 0
        %5251 = vmatmul.mubr.bf16.gmra.mxu0 %v2155
        %v5252 = vpop.f32.mrf.mxu0
        %v5253 = vadd.f32 0.0, %v5252
        %v5254 = vpop.f32.mrf.mxu0
        %v5255 = vpop.f32.mrf.mxu0
        %v5256 = vadd.f32 0.0, %v5255
        %v5257 = vpop.f32.mrf.mxu0
        %5258 = vmatprep.mubr.bf16.mxu0 0
        %5259 = vmatmul.mubr.bf16.gmra.mxu0 %v2158
        %v5260 = vpop.f32.mrf.mxu0
        %v5261 = vpop.f32.mrf.mxu0
        %v5262 = vpop.f32.mrf.mxu0
        %v5263 = vadd.f32 0.0, %v5262
        %v5264 = vpop.f32.mrf.mxu0
        %5265 = vmatprep.mubr.bf16.mxu0 0
        %5266 = vmatmul.mubr.bf16.gmra.mxu0 %v2161
        %v5267 = vpop.f32.mrf.mxu0
        %v5268 = vadd.f32 0.0, %v5267
        %v5269 = vpop.f32.mrf.mxu0
        %v5270 = vpop.f32.mrf.mxu0
        %v5271 = vpop.f32.mrf.mxu0
        %5272 = vmatprep.mubr.bf16.mxu0 0
        %5273 = vmatmul.mubr.bf16.gmra.mxu0 %v2164
        %v5274 = vpop.f32.mrf.mxu0
        %v5275 = vadd.f32 0.0, %v5274
        %v5276 = vpop.f32.mrf.mxu0
        %v5277 = vpop.f32.mrf.mxu0
        %v5278 = vadd.f32 0.0, %v5277
        %v5279 = vpop.f32.mrf.mxu0
        %5280 = vmatprep.mubr.bf16.mxu0 0
        %5281 = vmatmul.mubr.bf16.gmra.mxu0 %v2167
        %v5282 = vpop.f32.mrf.mxu0
        %v5283 = vpop.f32.mrf.mxu0
        %v5284 = vpop.f32.mrf.mxu0
        %v5285 = vadd.f32 0.0, %v5284
        %v5286 = vpop.f32.mrf.mxu0
        %5287 = vmatprep.mubr.bf16.mxu0 0
        %5288 = vmatmul.mubr.bf16.gmra.mxu0 %v2170
        %v5289 = vpop.f32.mrf.mxu0
        %v5290 = vadd.f32 0.0, %v5289
        %v5291 = vpop.f32.mrf.mxu0
        %v5292 = vpop.f32.mrf.mxu0
        %v5293 = vpop.f32.mrf.mxu0
        %5294 = vmatprep.mubr.bf16.mxu0 0
        %5295 = vmatmul.mubr.bf16.gmra.mxu0 %v2173
        %v5296 = vpop.f32.mrf.mxu0
        %v5297 = vadd.f32 0.0, %v5296
        %v5298 = vpop.f32.mrf.mxu0
        %v5299 = vpop.f32.mrf.mxu0
        %v5300 = vadd.f32 0.0, %v5299
        %v5301 = vpop.f32.mrf.mxu0
        %5302 = vmatprep.mubr.bf16.mxu0 0
        %5303 = vmatmul.mubr.bf16.gmra.mxu0 %v2176
        %v5304 = vpop.f32.mrf.mxu0
        %v5305 = vpop.f32.mrf.mxu0
        %v5306 = vpop.f32.mrf.mxu0
        %v5307 = vadd.f32 0.0, %v5306
        %v5308 = vpop.f32.mrf.mxu0
        %5309 = vmatprep.mubr.bf16.mxu0 0
        %5310 = vmatmul.mubr.bf16.gmra.mxu0 %v2179
        %v5311 = vpop.f32.mrf.mxu0
        %v5312 = vadd.f32 0.0, %v5311
        %v5313 = vpop.f32.mrf.mxu0
        %v5314 = vpop.f32.mrf.mxu0
        %v5315 = vpop.f32.mrf.mxu0
        %5316 = vmatprep.mubr.bf16.mxu0 0
        %5317 = vmatmul.mubr.bf16.gmra.mxu0 %v2182
        %v5318 = vpop.f32.mrf.mxu0
        %v5319 = vadd.f32 0.0, %v5318
        %v5320 = vpop.f32.mrf.mxu0
        %v5321 = vpop.f32.mrf.mxu0
        %v5322 = vadd.f32 0.0, %v5321
        %v5323 = vpop.f32.mrf.mxu0
        %5324 = vmatprep.mubr.bf16.mxu0 0
        %5325 = vmatmul.mubr.bf16.gmra.mxu0 %v2185
        %v5326 = vpop.f32.mrf.mxu0
        %v5327 = vpop.f32.mrf.mxu0
        %v5328 = vpop.f32.mrf.mxu0
        %v5329 = vadd.f32 0.0, %v5328
        %v5330 = vpop.f32.mrf.mxu0
        %5331 = vmatprep.mubr.bf16.mxu0 0
        %5332 = vmatmul.mubr.bf16.gmra.mxu0 %v2188
        %v5333 = vpop.f32.mrf.mxu0
        %v5334 = vadd.f32 0.0, %v5333
        %v5335 = vpop.f32.mrf.mxu0
        %v5336 = vpop.f32.mrf.mxu0
        %v5337 = vpop.f32.mrf.mxu0
        %5338 = vmatprep.mubr.bf16.mxu0 0
        %5339 = vmatmul.mubr.bf16.gmra.mxu0 %v2191
        %v5340 = vpop.f32.mrf.mxu0
        %v5341 = vadd.f32 0.0, %v5340
        %v5342 = vpop.f32.mrf.mxu0
        %v5343 = vpop.f32.mrf.mxu0
        %v5344 = vadd.f32 0.0, %v5343
        %v5345 = vpop.f32.mrf.mxu0
        %5346 = vmatprep.mubr.bf16.mxu0 0
        %5347 = vmatmul.mubr.bf16.gmra.mxu0 %v2194
        %v5348 = vpop.f32.mrf.mxu0
        %v5349 = vpop.f32.mrf.mxu0
        %v5350 = vpop.f32.mrf.mxu0
        %v5351 = vadd.f32 0.0, %v5350
        %v5352 = vpop.f32.mrf.mxu0
        %5353 = vmatprep.mubr.bf16.mxu0 0
        %5354 = vmatmul.mubr.bf16.gmra.mxu0 %v2197
        %v5355 = vpop.f32.mrf.mxu0
        %v5356 = vadd.f32 0.0, %v5355
        %v5357 = vpop.f32.mrf.mxu0
        %v5358 = vpop.f32.mrf.mxu0
        %v5359 = vpop.f32.mrf.mxu0
        %5360 = vmatprep.mubr.bf16.mxu0 0
        %5361 = vmatmul.mubr.bf16.gmra.mxu0 %v2200
        %v5362 = vpop.f32.mrf.mxu0
        %v5363 = vadd.f32 0.0, %v5362
        %v5364 = vpop.f32.mrf.mxu0
        %v5365 = vpop.f32.mrf.mxu0
        %v5366 = vadd.f32 0.0, %v5365
        %v5367 = vpop.f32.mrf.mxu0
        %5368 = vmatprep.mubr.bf16.mxu0 0
        %5369 = vmatmul.mubr.bf16.gmra.mxu0 %v2203
        %v5370 = vpop.f32.mrf.mxu0
        %v5371 = vpop.f32.mrf.mxu0
        %v5372 = vpop.f32.mrf.mxu0
        %v5373 = vadd.f32 0.0, %v5372
        %v5374 = vpop.f32.mrf.mxu0
        %5375 = vmatprep.mubr.bf16.mxu0 0
        %5376 = vmatmul.mubr.bf16.gmra.mxu0 %v2206
        %v5377 = vpop.f32.mrf.mxu0
        %v5378 = vadd.f32 0.0, %v5377
        %v5379 = vpop.f32.mrf.mxu0
        %v5380 = vpop.f32.mrf.mxu0
        %v5381 = vpop.f32.mrf.mxu0
        %5382 = vmatprep.mubr.bf16.mxu0 0
        %5383 = vmatmul.mubr.bf16.gmra.mxu0 %v2209
        %v5384 = vpop.f32.mrf.mxu0
        %v5385 = vadd.f32 0.0, %v5384
        %v5386 = vpop.f32.mrf.mxu0
        %v5387 = vpop.f32.mrf.mxu0
        %v5388 = vadd.f32 0.0, %v5387
        %v5389 = vpop.f32.mrf.mxu0
        %5390 = vmatprep.mubr.bf16.mxu0 0
        %5391 = vmatmul.mubr.bf16.gmra.mxu0 %v2212
        %v5392 = vpop.f32.mrf.mxu0
        %v5393 = vpop.f32.mrf.mxu0
        %v5394 = vpop.f32.mrf.mxu0
        %v5395 = vadd.f32 0.0, %v5394
        %v5396 = vpop.f32.mrf.mxu0
        %5397 = vmatprep.mubr.bf16.mxu0 0
        %5398 = vmatmul.mubr.bf16.gmra.mxu0 %v5207
        %v5399 = vpop.f32.mrf.mxu0
        %v5400 = vadd.f32 0.0, %v5399
        %v5401 = vpop.f32.mrf.mxu0
        %v5402 = vpop.f32.mrf.mxu0
        %v5403 = vpop.f32.mrf.mxu0
        %5404 = vmatprep.mubr.bf16.mxu0 0
        %5405 = vmatmul.mubr.bf16.gmra.mxu0 %v5210
        %v5406 = vpop.f32.mrf.mxu0
        %v5407 = vadd.f32 0.0, %v5406
        %v5408 = vpop.f32.mrf.mxu0
        %v5409 = vpop.f32.mrf.mxu0
        %v5410 = vadd.f32 0.0, %v5409
        %v5411 = vpop.f32.mrf.mxu0
        %5412 = vmatprep.mubr.bf16.mxu0 0
        %5413 = vmatmul.mubr.bf16.gmra.mxu0 %v5213
        %v5414 = vpop.f32.mrf.mxu0
        %v5415 = vpop.f32.mrf.mxu0
        %v5416 = vpop.f32.mrf.mxu0
        %v5417 = vadd.f32 0.0, %v5416
        %v5418 = vpop.f32.mrf.mxu0
        %5419 = vmatprep.mubr.bf16.mxu0 0
        %5420 = vmatmul.mubr.bf16.gmra.mxu0 %v5216
        %v5421 = vpop.f32.mrf.mxu0
        %v5422 = vadd.f32 0.0, %v5421
        %v5423 = vpop.f32.mrf.mxu0
        %v5424 = vpop.f32.mrf.mxu0
        %v5425 = vpop.f32.mrf.mxu0
        %5426 = vdwg.mxu0
        %v5427 = vadd.f32 %v5157, %v5253
        %v5428 = vadd.f32 %v5158, %v5256
        %v5429 = vadd.f32 %v5159, %v5263
        %v5430 = vadd.f32 %v5160, %v5268
        %v5431 = vadd.f32 %v5161, %v5275
        %v5432 = vadd.f32 %v5162, %v5278
        %v5433 = vadd.f32 %v5163, %v5285
        %v5434 = vadd.f32 %v5164, %v5290
        %v5435 = vadd.f32 %v5165, %v5297
        %v5436 = vadd.f32 %v5166, %v5300
        %v5437 = vadd.f32 %v5167, %v5307
        %v5438 = vadd.f32 %v5168, %v5312
        %v5439 = vadd.f32 %v5169, %v5319
        %v5440 = vadd.f32 %v5170, %v5322
        %v5441 = vadd.f32 %v5171, %v5329
        %v5442 = vadd.f32 %v5172, %v5334
        %v5443 = vadd.f32 %v5173, %v5341
        %v5444 = vadd.f32 %v5174, %v5344
        %v5445 = vadd.f32 %v5175, %v5351
        %v5446 = vadd.f32 %v5176, %v5356
        %v5447 = vadd.f32 %v5177, %v5363
        %v5448 = vadd.f32 %v5178, %v5366
        %v5449 = vadd.f32 %v5179, %v5373
        %v5450 = vadd.f32 %v5180, %v5378
        %v5451 = vadd.f32 %v5181, %v5385
        %v5452 = vadd.f32 %v5182, %v5388
        %v5453 = vadd.f32 %v5183, %v5395
        %v5454 = vadd.f32 %v5184, %v5400
        %v5455 = vadd.f32 %v5185, %v5407
        %v5456 = vadd.f32 %v5186, %v5410
        %v5457 = vadd.f32 %v5187, %v5417
        %v5458 = vadd.f32 %v5188, %v5422
        %v5459 = vadd.f32 %v5427, %v5428
        %v5460 = vadd.f32 %v5459, %v5429
        %v5461 = vadd.f32 %v5460, %v5430
        %v5462 = vadd.f32 %v5461, %v5431
        %v5463 = vadd.f32 %v5462, %v5432
        %v5464 = vadd.f32 %v5463, %v5433
        %v5465 = vadd.f32 %v5464, %v5434
        %v5466 = vadd.f32 %v5465, %v5435
        %v5467 = vadd.f32 %v5466, %v5436
        %v5468 = vadd.f32 %v5467, %v5437
        %v5469 = vadd.f32 %v5468, %v5438
        %v5470 = vadd.f32 %v5469, %v5439
        %v5471 = vadd.f32 %v5470, %v5440
        %v5472 = vadd.f32 %v5471, %v5441
        %v5473 = vadd.f32 %v5472, %v5442
        %v5474 = vadd.f32 %v5473, %v5443
        %v5475 = vadd.f32 %v5474, %v5444
        %v5476 = vadd.f32 %v5475, %v5445
        %v5477 = vadd.f32 %v5476, %v5446
        %v5478 = vadd.f32 %v5477, %v5447
        %v5479 = vadd.f32 %v5478, %v5448
        %v5480 = vadd.f32 %v5479, %v5449
        %v5481 = vadd.f32 %v5480, %v5450
        %v5482 = vadd.f32 %v5481, %v5451
        %v5483 = vadd.f32 %v5482, %v5452
        %v5484 = vadd.f32 %v5483, %v5453
        %v5485 = vadd.f32 %v5484, %v5454
        %v5486 = vadd.f32 %v5485, %v5455
        %v5487 = vadd.f32 %v5486, %v5456
        %v5488 = vadd.f32 %v5487, %v5457
        %v5489 = vadd.f32 %v5488, %v5458
        %v5490 = vrot.slane %v5489, 4
        %v5491 = vadd.f32 %v5489, %v5490
        %v5492 = vrot.slane %v5491, 2
        %v5493 = vadd.f32 %v5491, %v5492
        %v5494 = vrot.slane %v5493, 1
        %v5495 = vadd.f32 %v5493, %v5494
        %v5496 = vadd.f32 %v4416, %v5495
        %v5497 = vmul.f32 %v5427, %v5427
        %v5498 = vmul.f32 %v5428, %v5428
        %v5499 = vmul.f32 %v5429, %v5429
        %v5500 = vmul.f32 %v5430, %v5430
        %v5501 = vmul.f32 %v5431, %v5431
        %v5502 = vmul.f32 %v5432, %v5432
        %v5503 = vmul.f32 %v5433, %v5433
        %v5504 = vmul.f32 %v5434, %v5434
        %v5505 = vmul.f32 %v5435, %v5435
        %v5506 = vmul.f32 %v5436, %v5436
        %v5507 = vmul.f32 %v5437, %v5437
        %v5508 = vmul.f32 %v5438, %v5438
        %v5509 = vmul.f32 %v5439, %v5439
        %v5510 = vmul.f32 %v5440, %v5440
        %v5511 = vmul.f32 %v5441, %v5441
        %v5512 = vmul.f32 %v5442, %v5442
        %v5513 = vmul.f32 %v5443, %v5443
        %v5514 = vmul.f32 %v5444, %v5444
        %v5515 = vmul.f32 %v5445, %v5445
        %v5516 = vmul.f32 %v5446, %v5446
        %v5517 = vmul.f32 %v5447, %v5447
        %v5518 = vmul.f32 %v5448, %v5448
        %v5519 = vmul.f32 %v5449, %v5449
        %v5520 = vmul.f32 %v5450, %v5450
        %v5521 = vmul.f32 %v5451, %v5451
        %v5522 = vmul.f32 %v5452, %v5452
        %v5523 = vmul.f32 %v5453, %v5453
        %v5524 = vmul.f32 %v5454, %v5454
        %v5525 = vmul.f32 %v5455, %v5455
        %v5526 = vmul.f32 %v5456, %v5456
        %v5527 = vmul.f32 %v5457, %v5457
        %v5528 = vmul.f32 %v5458, %v5458
        %v5529 = vadd.f32 %v5497, %v5498
        %v5530 = vadd.f32 %v5529, %v5499
        %v5531 = vadd.f32 %v5530, %v5500
        %v5532 = vadd.f32 %v5531, %v5501
        %v5533 = vadd.f32 %v5532, %v5502
        %v5534 = vadd.f32 %v5533, %v5503
        %v5535 = vadd.f32 %v5534, %v5504
        %v5536 = vadd.f32 %v5535, %v5505
        %v5537 = vadd.f32 %v5536, %v5506
        %v5538 = vadd.f32 %v5537, %v5507
        %v5539 = vadd.f32 %v5538, %v5508
        %v5540 = vadd.f32 %v5539, %v5509
        %v5541 = vadd.f32 %v5540, %v5510
        %v5542 = vadd.f32 %v5541, %v5511
        %v5543 = vadd.f32 %v5542, %v5512
        %v5544 = vadd.f32 %v5543, %v5513
        %v5545 = vadd.f32 %v5544, %v5514
        %v5546 = vadd.f32 %v5545, %v5515
        %v5547 = vadd.f32 %v5546, %v5516
        %v5548 = vadd.f32 %v5547, %v5517
        %v5549 = vadd.f32 %v5548, %v5518
        %v5550 = vadd.f32 %v5549, %v5519
        %v5551 = vadd.f32 %v5550, %v5520
        %v5552 = vadd.f32 %v5551, %v5521
        %v5553 = vadd.f32 %v5552, %v5522
        %v5554 = vadd.f32 %v5553, %v5523
        %v5555 = vadd.f32 %v5554, %v5524
        %v5556 = vadd.f32 %v5555, %v5525
        %v5557 = vadd.f32 %v5556, %v5526
        %v5558 = vadd.f32 %v5557, %v5527
        %v5559 = vadd.f32 %v5558, %v5528
        %v5560 = vrot.slane %v5559, 4
        %v5561 = vadd.f32 %v5559, %v5560
        %v5562 = vrot.slane %v5561, 2
        %v5563 = vadd.f32 %v5561, %v5562
        %v5564 = vrot.slane %v5563, 1
        %v5565 = vadd.f32 %v5563, %v5564
        %v5566 = vadd.f32 %v4486, %v5565
        %v5567 = vpack.c.bf16 %v5428, %v5427
        %v5568 = vpack.c.bf16 %v5430, %v5429
        %v5569 = vpack.c.bf16 %v5432, %v5431
        %v5570 = vpack.c.bf16 %v5434, %v5433
        %v5571 = vpack.c.bf16 %v5436, %v5435
        %v5572 = vpack.c.bf16 %v5438, %v5437
        %v5573 = vpack.c.bf16 %v5440, %v5439
        %v5574 = vpack.c.bf16 %v5442, %v5441
        %v5575 = vpack.c.bf16 %v5444, %v5443
        %v5576 = vpack.c.bf16 %v5446, %v5445
        %v5577 = vpack.c.bf16 %v5448, %v5447
        %v5578 = vpack.c.bf16 %v5450, %v5449
        %v5579 = vpack.c.bf16 %v5452, %v5451
        %v5580 = vpack.c.bf16 %v5454, %v5453
        %v5581 = vpack.c.bf16 %v5456, %v5455
        %v5582 = vpack.c.bf16 %v5458, %v5457
        %v5647 = vunpack.c.l.b16 %v2067
        %v5648 = vunpack.c.l.b16 %v3370
        %v5649 = vunpack.c.h.b16 %v2067
        %v5650 = vunpack.c.h.b16 %v3370
        %v5651 = vunpack.c.l.b16 %v4487
        %v5652 = vunpack.c.l.b16 %v5567
        %v5653 = vunpack.c.h.b16 %v4487
        %v5654 = vunpack.c.h.b16 %v5567
        %v5655 = vunpack.c.l.b16 %v2068
        %v5656 = vunpack.c.l.b16 %v3371
        %v5657 = vunpack.c.h.b16 %v2068
        %v5658 = vunpack.c.h.b16 %v3371
        %v5659 = vunpack.c.l.b16 %v4488
        %v5660 = vunpack.c.l.b16 %v5568
        %v5661 = vunpack.c.h.b16 %v4488
        %v5662 = vunpack.c.h.b16 %v5568
        %v5663 = vunpack.c.l.b16 %v2069
        %v5664 = vunpack.c.l.b16 %v3372
        %v5665 = vunpack.c.h.b16 %v2069
        %v5666 = vunpack.c.h.b16 %v3372
        %v5667 = vunpack.c.l.b16 %v4489
        %v5668 = vunpack.c.l.b16 %v5569
        %v5669 = vunpack.c.h.b16 %v4489
        %v5670 = vunpack.c.h.b16 %v5569
        %v5671 = vunpack.c.l.b16 %v2070
        %v5672 = vunpack.c.l.b16 %v3373
        %v5673 = vunpack.c.h.b16 %v2070
        %v5674 = vunpack.c.h.b16 %v3373
        %v5675 = vunpack.c.l.b16 %v4490
        %v5676 = vunpack.c.l.b16 %v5570
        %v5677 = vunpack.c.h.b16 %v4490
        %v5678 = vunpack.c.h.b16 %v5570
        %v5679 = vunpack.c.l.b16 %v2071
        %v5680 = vunpack.c.l.b16 %v3374
        %v5681 = vunpack.c.h.b16 %v2071
        %v5682 = vunpack.c.h.b16 %v3374
        %v5683 = vunpack.c.l.b16 %v4491
        %v5684 = vunpack.c.l.b16 %v5571
        %v5685 = vunpack.c.h.b16 %v4491
        %v5686 = vunpack.c.h.b16 %v5571
        %v5687 = vunpack.c.l.b16 %v2072
        %v5688 = vunpack.c.l.b16 %v3375
        %v5689 = vunpack.c.h.b16 %v2072
        %v5690 = vunpack.c.h.b16 %v3375
        %v5691 = vunpack.c.l.b16 %v4492
        %v5692 = vunpack.c.l.b16 %v5572
        %v5693 = vunpack.c.h.b16 %v4492
        %v5694 = vunpack.c.h.b16 %v5572
        %v5695 = vunpack.c.l.b16 %v2073
        %v5696 = vunpack.c.l.b16 %v3376
        %v5697 = vunpack.c.h.b16 %v2073
        %v5698 = vunpack.c.h.b16 %v3376
        %v5699 = vunpack.c.l.b16 %v4493
        %v5700 = vunpack.c.l.b16 %v5573
        %v5701 = vunpack.c.h.b16 %v4493
        %v5702 = vunpack.c.h.b16 %v5573
        %v5703 = vunpack.c.l.b16 %v2074
        %v5704 = vunpack.c.l.b16 %v3377
        %v5705 = vunpack.c.h.b16 %v2074
        %v5706 = vunpack.c.h.b16 %v3377
        %v5707 = vunpack.c.l.b16 %v4494
        %v5708 = vunpack.c.l.b16 %v5574
        %v5709 = vunpack.c.h.b16 %v4494
        %v5710 = vunpack.c.h.b16 %v5574
        %v5711 = vunpack.c.l.b16 %v2075
        %v5712 = vunpack.c.l.b16 %v3378
        %v5713 = vunpack.c.h.b16 %v2075
        %v5714 = vunpack.c.h.b16 %v3378
        %v5715 = vunpack.c.l.b16 %v4495
        %v5716 = vunpack.c.l.b16 %v5575
        %v5717 = vunpack.c.h.b16 %v4495
        %v5718 = vunpack.c.h.b16 %v5575
        %v5719 = vunpack.c.l.b16 %v2076
        %v5720 = vunpack.c.l.b16 %v3379
        %v5721 = vunpack.c.h.b16 %v2076
        %v5722 = vunpack.c.h.b16 %v3379
        %v5723 = vunpack.c.l.b16 %v4496
        %v5724 = vunpack.c.l.b16 %v5576
        %v5725 = vunpack.c.h.b16 %v4496
        %v5726 = vunpack.c.h.b16 %v5576
        %v5727 = vunpack.c.l.b16 %v2077
        %v5728 = vunpack.c.l.b16 %v3380
        %v5729 = vunpack.c.h.b16 %v2077
        %v5730 = vunpack.c.h.b16 %v3380
        %v5731 = vunpack.c.l.b16 %v4497
        %v5732 = vunpack.c.l.b16 %v5577
        %v5733 = vunpack.c.h.b16 %v4497
        %v5734 = vunpack.c.h.b16 %v5577
        %v5735 = vunpack.c.l.b16 %v2078
        %v5736 = vunpack.c.l.b16 %v3381
        %v5737 = vunpack.c.h.b16 %v2078
        %v5738 = vunpack.c.h.b16 %v3381
        %v5739 = vunpack.c.l.b16 %v4498
        %v5740 = vunpack.c.l.b16 %v5578
        %v5741 = vunpack.c.h.b16 %v4498
        %v5742 = vunpack.c.h.b16 %v5578
        %v5743 = vunpack.c.l.b16 %v2079
        %v5744 = vunpack.c.l.b16 %v3382
        %v5745 = vunpack.c.h.b16 %v2079
        %v5746 = vunpack.c.h.b16 %v3382
        %v5747 = vunpack.c.l.b16 %v4499
        %v5748 = vunpack.c.l.b16 %v5579
        %v5749 = vunpack.c.h.b16 %v4499
        %v5750 = vunpack.c.h.b16 %v5579
        %v5751 = vunpack.c.l.b16 %v2080
        %v5752 = vunpack.c.l.b16 %v3383
        %v5753 = vunpack.c.h.b16 %v2080
        %v5754 = vunpack.c.h.b16 %v3383
        %v5755 = vunpack.c.l.b16 %v4500
        %v5756 = vunpack.c.l.b16 %v5580
        %v5757 = vunpack.c.h.b16 %v4500
        %v5758 = vunpack.c.h.b16 %v5580
        %v5759 = vunpack.c.l.b16 %v2081
        %v5760 = vunpack.c.l.b16 %v3384
        %v5761 = vunpack.c.h.b16 %v2081
        %v5762 = vunpack.c.h.b16 %v3384
        %v5763 = vunpack.c.l.b16 %v4501
        %v5764 = vunpack.c.l.b16 %v5581
        %v5765 = vunpack.c.h.b16 %v4501
        %v5766 = vunpack.c.h.b16 %v5581
        %v5767 = vunpack.c.l.b16 %v2082
        %v5768 = vunpack.c.l.b16 %v3385
        %v5769 = vunpack.c.h.b16 %v2082
        %v5770 = vunpack.c.h.b16 %v3385
        %v5771 = vunpack.c.l.b16 %v4502
        %v5772 = vunpack.c.l.b16 %v5582
        %v5773 = vunpack.c.h.b16 %v4502
        %v5774 = vunpack.c.h.b16 %v5582
        %v5775 = vpack.c.b16 %v5648, %v5647
        %v5776 = vpack.c.b16 %v5650, %v5649
        %v5777 = vpack.c.b16 %v5652, %v5651
        %v5778 = vpack.c.b16 %v5654, %v5653
        %v5779 = vpack.c.b16 %v5656, %v5655
        %v5780 = vpack.c.b16 %v5658, %v5657
        %v5781 = vpack.c.b16 %v5660, %v5659
        %v5782 = vpack.c.b16 %v5662, %v5661
        %v5783 = vpack.c.b16 %v5664, %v5663
        %v5784 = vpack.c.b16 %v5666, %v5665
        %v5785 = vpack.c.b16 %v5668, %v5667
        %v5786 = vpack.c.b16 %v5670, %v5669
        %v5787 = vpack.c.b16 %v5672, %v5671
        %v5788 = vpack.c.b16 %v5674, %v5673
        %v5789 = vpack.c.b16 %v5676, %v5675
        %v5790 = vpack.c.b16 %v5678, %v5677
        %v5791 = vpack.c.b16 %v5680, %v5679
        %v5792 = vpack.c.b16 %v5682, %v5681
        %v5793 = vpack.c.b16 %v5684, %v5683
        %v5794 = vpack.c.b16 %v5686, %v5685
        %v5795 = vpack.c.b16 %v5688, %v5687
        %v5796 = vpack.c.b16 %v5690, %v5689
        %v5797 = vpack.c.b16 %v5692, %v5691
        %v5798 = vpack.c.b16 %v5694, %v5693
        %v5799 = vpack.c.b16 %v5696, %v5695
        %v5800 = vpack.c.b16 %v5698, %v5697
        %v5801 = vpack.c.b16 %v5700, %v5699
        %v5802 = vpack.c.b16 %v5702, %v5701
        %v5803 = vpack.c.b16 %v5704, %v5703
        %v5804 = vpack.c.b16 %v5706, %v5705
        %v5805 = vpack.c.b16 %v5708, %v5707
        %v5806 = vpack.c.b16 %v5710, %v5709
        %v5807 = vpack.c.b16 %v5712, %v5711
        %v5808 = vpack.c.b16 %v5714, %v5713
        %v5809 = vpack.c.b16 %v5716, %v5715
        %v5810 = vpack.c.b16 %v5718, %v5717
        %v5811 = vpack.c.b16 %v5720, %v5719
        %v5812 = vpack.c.b16 %v5722, %v5721
        %v5813 = vpack.c.b16 %v5724, %v5723
        %v5814 = vpack.c.b16 %v5726, %v5725
        %v5815 = vpack.c.b16 %v5728, %v5727
        %v5816 = vpack.c.b16 %v5730, %v5729
        %v5817 = vpack.c.b16 %v5732, %v5731
        %v5818 = vpack.c.b16 %v5734, %v5733
        %v5819 = vpack.c.b16 %v5736, %v5735
        %v5820 = vpack.c.b16 %v5738, %v5737
        %v5821 = vpack.c.b16 %v5740, %v5739
        %v5822 = vpack.c.b16 %v5742, %v5741
        %v5823 = vpack.c.b16 %v5744, %v5743
        %v5824 = vpack.c.b16 %v5746, %v5745
        %v5825 = vpack.c.b16 %v5748, %v5747
        %v5826 = vpack.c.b16 %v5750, %v5749
        %v5827 = vpack.c.b16 %v5752, %v5751
        %v5828 = vpack.c.b16 %v5754, %v5753
        %v5829 = vpack.c.b16 %v5756, %v5755
        %v5830 = vpack.c.b16 %v5758, %v5757
        %v5831 = vpack.c.b16 %v5760, %v5759
        %v5832 = vpack.c.b16 %v5762, %v5761
        %v5833 = vpack.c.b16 %v5764, %v5763
        %v5834 = vpack.c.b16 %v5766, %v5765
        %v5835 = vpack.c.b16 %v5768, %v5767
        %v5836 = vpack.c.b16 %v5770, %v5769
        %v5837 = vpack.c.b16 %v5772, %v5771
        %v5838 = vpack.c.b16 %v5774, %v5773
        %5903 = vst [vmem:[%s167] sm:$0xff] %v5775
        %5904 = vst [vmem:[%s167 + $0x8] sm:$0xff] %v5776
        %5905 = vst [vmem:[%s167 + $0x10] sm:$0xff] %v5777
        %5906 = vst [vmem:[%s167 + $0x18] sm:$0xff] %v5778
        %5907 = vst [vmem:[%s167 + $0x20] sm:$0xff] %v5779
        %5908 = vst [vmem:[%s167 + $0x28] sm:$0xff] %v5780
        %5909 = vst [vmem:[%s167 + $0x30] sm:$0xff] %v5781
        %5910 = vst [vmem:[%s167 + $0x38] sm:$0xff] %v5782
        %5911 = vst [vmem:[%s167 + $0x40] sm:$0xff] %v5783
        %5912 = vst [vmem:[%s167 + $0x48] sm:$0xff] %v5784
        %5913 = vst [vmem:[%s167 + $0x50] sm:$0xff] %v5785
        %5914 = vst [vmem:[%s167 + $0x58] sm:$0xff] %v5786
        %5915 = vst [vmem:[%s167 + $0x60] sm:$0xff] %v5787
        %5916 = vst [vmem:[%s167 + $0x68] sm:$0xff] %v5788
        %5917 = vst [vmem:[%s167 + $0x70] sm:$0xff] %v5789
        %5918 = vst [vmem:[%s167 + $0x78] sm:$0xff] %v5790
        %5919 = vst [vmem:[%s167 + $0x80] sm:$0xff] %v5791
        %5920 = vst [vmem:[%s167 + $0x88] sm:$0xff] %v5792
        %5921 = vst [vmem:[%s167 + $0x90] sm:$0xff] %v5793
        %5922 = vst [vmem:[%s167 + $0x98] sm:$0xff] %v5794
        %5923 = vst [vmem:[%s167 + $0xa0] sm:$0xff] %v5795
        %5924 = vst [vmem:[%s167 + $0xa8] sm:$0xff] %v5796
        %5925 = vst [vmem:[%s167 + $0xb0] sm:$0xff] %v5797
        %5926 = vst [vmem:[%s167 + $0xb8] sm:$0xff] %v5798
        %5927 = vst [vmem:[%s167 + $0xc0] sm:$0xff] %v5799
        %5928 = vst [vmem:[%s167 + $0xc8] sm:$0xff] %v5800
        %5929 = vst [vmem:[%s167 + $0xd0] sm:$0xff] %v5801
        %5930 = vst [vmem:[%s167 + $0xd8] sm:$0xff] %v5802
        %5931 = vst [vmem:[%s167 + $0xe0] sm:$0xff] %v5803
        %5932 = vst [vmem:[%s167 + $0xe8] sm:$0xff] %v5804
        %5933 = vst [vmem:[%s167 + $0xf0] sm:$0xff] %v5805
        %5934 = vst [vmem:[%s167 + $0xf8] sm:$0xff] %v5806
        %5935 = vst [vmem:[%s167 + $0x100] sm:$0xff] %v5807
        %5936 = vst [vmem:[%s167 + $0x108] sm:$0xff] %v5808
        %5937 = vst [vmem:[%s167 + $0x110] sm:$0xff] %v5809
        %5938 = vst [vmem:[%s167 + $0x118] sm:$0xff] %v5810
        %5939 = vst [vmem:[%s167 + $0x120] sm:$0xff] %v5811
        %5940 = vst [vmem:[%s167 + $0x128] sm:$0xff] %v5812
        %5941 = vst [vmem:[%s167 + $0x130] sm:$0xff] %v5813
        %5942 = vst [vmem:[%s167 + $0x138] sm:$0xff] %v5814
        %5943 = vst [vmem:[%s167 + $0x140] sm:$0xff] %v5815
        %5944 = vst [vmem:[%s167 + $0x148] sm:$0xff] %v5816
        %5945 = vst [vmem:[%s167 + $0x150] sm:$0xff] %v5817
        %5946 = vst [vmem:[%s167 + $0x158] sm:$0xff] %v5818
        %5947 = vst [vmem:[%s167 + $0x160] sm:$0xff] %v5819
        %5948 = vst [vmem:[%s167 + $0x168] sm:$0xff] %v5820
        %5949 = vst [vmem:[%s167 + $0x170] sm:$0xff] %v5821
        %5950 = vst [vmem:[%s167 + $0x178] sm:$0xff] %v5822
        %5951 = vst [vmem:[%s167 + $0x180] sm:$0xff] %v5823
        %5952 = vst [vmem:[%s167 + $0x188] sm:$0xff] %v5824
        %5953 = vst [vmem:[%s167 + $0x190] sm:$0xff] %v5825
        %5954 = vst [vmem:[%s167 + $0x198] sm:$0xff] %v5826
        %5955 = vst [vmem:[%s167 + $0x1a0] sm:$0xff] %v5827
        %5956 = vst [vmem:[%s167 + $0x1a8] sm:$0xff] %v5828
        %5957 = vst [vmem:[%s167 + $0x1b0] sm:$0xff] %v5829
        %5958 = vst [vmem:[%s167 + $0x1b8] sm:$0xff] %v5830
        %5959 = vst [vmem:[%s167 + $0x1c0] sm:$0xff] %v5831
        %5960 = vst [vmem:[%s167 + $0x1c8] sm:$0xff] %v5832
        %5961 = vst [vmem:[%s167 + $0x1d0] sm:$0xff] %v5833
        %5962 = vst [vmem:[%s167 + $0x1d8] sm:$0xff] %v5834
        %5963 = vst [vmem:[%s167 + $0x1e0] sm:$0xff] %v5835
        %5964 = vst [vmem:[%s167 + $0x1e8] sm:$0xff] %v5836
        %5965 = vst [vmem:[%s167 + $0x1f0] sm:$0xff] %v5837
        %5966 = vst [vmem:[%s167 + $0x1f8] sm:$0xff] %v5838
        %vm5967 = vcmask 1040384
        %v5968 = vsel %vm5967, %v5496, %v5566
        %vm5969 = vcmask 1041408
        %v5970 = vsel %vm5969, %v5968, 0.0
        %5971 = vst [vmem:[%s174] sm:$0xff] %v5970
        %s5972 = sand.u32 %s76, 1
        %s5973 = scalar_lea.sflag [#allocation3], %s5972
        %s5974 = sand.u32 %s76, 1
        %s5975 = smul.addr %s5974, 512
        %s5976 = scalar_lea.vmem [#allocation2], %s5975
        %s5977 = sand.u32 %s102, 1
        %s5978 = scalar_lea.sflag [#allocation5], %s5977
        %s5979 = sand.u32 %s102, 1
        %s5980 = smul.addr %s5979, 8
        %s5981 = scalar_lea.vmem [#allocation4], %s5980
        // Predicated region
        $region29: #{tpu_custom_call.1} parent=27 // pred_check
          %p5982 = pneg %p86
        $region30: #{tpu_custom_call.1} parent=27 // pred_check_branch
          %5984 = sbr.rel (%p5982) target = $region32
        $region31: #{tpu_custom_call.1} parent=27 // pred_region
          %s5986 = ssub.s32 8192, 8192
          %5987 = vsyncadd %s5973, %s5986
          %s5988 = smul.addr %s21, 128
          %s5989 = smul.addr %s5988, 64
          %s5990 = scalar_lea.hbm %s2, %s5989
          %s5991 = sshll.u32 %s5976, 4
          %s5992 = int_to_ptr.vmem [resolvable:$true] %s5991
          %5997 = dma.vmem_to_hbm [thread:$0]  %s5992, 8192, %s5990, %s5973, 128, 128, 8
        $region32: #{tpu_custom_call.1} parent=27 // pred_fallthru
          _
        // Predicated region
        $region33: #{tpu_custom_call.1} parent=27 // pred_check
          %p5998 = pneg %p112
        $region34: #{tpu_custom_call.1} parent=27 // pred_check_branch
          %6000 = sbr.rel (%p5998) target = $region36
        $region35: #{tpu_custom_call.1} parent=27 // pred_region
          %s6002 = ssub.s32 128, 128
          %6003 = vsyncadd %s5978, %s6002
          %s6004 = smul.addr %s21, 128
          %s6005 = scalar_lea.hbm %s3, %s6004
          %s6007 = sshll.u32 %s5981, 4
          %s6008 = int_to_ptr.vmem [resolvable:$true] %s6007
          %6010 = dma.vmem_to_hbm [thread:$0]  %s6008, 128, %s6005, %s5978
        $region36: #{tpu_custom_call.1} parent=27 // pred_fallthru
          _
      $region28: #{tpu_custom_call.1} parent=5 // pred_fallthru
        _
      %p6011 = scmp.le.s32.totalorder 2, %s16
      // Predicated region
      $region37: #{tpu_custom_call.1} parent=5 // pred_check
        %p6012 = pneg %p6011
      $region38: #{tpu_custom_call.1} parent=5 // pred_check_branch
        %6014 = sbr.rel (%p6012) target = $region40
      $region39: #{tpu_custom_call.1} parent=5 // pred_region
        %s6015 = ssub.s32 %s16, 2
        // Predicated region
        $region41: #{tpu_custom_call.1} parent=39 // pred_check
          %p6016 = pneg %p92
        $region42: #{tpu_custom_call.1} parent=39 // pred_check_branch
          %6018 = sbr.rel (%p6016) target = $region44
        $region43: #{tpu_custom_call.1} parent=39 // pred_region
          %s6019 = sand.u32 %s77, 1
          %s6020 = scalar_lea.sflag [#allocation3], %s6019
          %s6021 = sand.u32 %s77, 1
          %s6022 = smul.addr %s6021, 512
          %s6023 = scalar_lea.vmem [#allocation2], %s6022
          %6024 = dma.done %s6020, 8192
        $region44: #{tpu_custom_call.1} parent=39 // pred_fallthru
          _
        // Predicated region
        $region45: #{tpu_custom_call.1} parent=39 // pred_check
          %p6025 = pneg %p118
        $region46: #{tpu_custom_call.1} parent=39 // pred_check_branch
          %6027 = sbr.rel (%p6025) target = $region48
        $region47: #{tpu_custom_call.1} parent=39 // pred_region
          %s6028 = sand.u32 %s103, 1
          %s6029 = scalar_lea.sflag [#allocation5], %s6028
          %s6030 = sand.u32 %s103, 1
          %s6031 = smul.addr %s6030, 8
          %s6032 = scalar_lea.vmem [#allocation4], %s6031
          %6033 = dma.done %s6029, 128
        $region48: #{tpu_custom_call.1} parent=39 // pred_fallthru
          _
      $region40: #{tpu_custom_call.1} parent=5 // pred_fallthru
        _
    $region6: #{tpu_custom_call.1} parent=1 // loop_footer
      %s20 = sadd.s32 1, %s16
    $region7: #{tpu_custom_call.1} parent=1 // loop_footer_branch
      %15 = sbr.rel target = $region3
    $region8: #{tpu_custom_call.1} parent=1 // loop_exit
      _
    %6034 = vsyncpa [#allocation3], 1
    %s6035 = scalar_lea.sflag [#allocation3], 1
    %6036 = vsyncpa %s6035, 1
    %6037 = vsyncpa [#allocation5], 1
    %s6038 = scalar_lea.sflag [#allocation5], 1
    %6039 = vsyncpa %s6038, 1

</llo_original>
